<compile_context>
chip_gen: v7x
topology: tpu7x:2x2x1
jax: 0.10.0
libtpu: 0.0.40
codegen_flags: <defaults>
</compile_context>

<pallas_src>
import functools

import jax
import jax.numpy as jnp
import numpy as np
from jax import lax
from jax.experimental import pallas as pl
from jax.experimental.pallas import tpu as pltpu

_PI = float(np.pi)
_TWO_PI = 2.0 * _PI
_SUB = 8       # sublanes per in-kernel chunk
_LANE = 128    # lane width


# ------------------------------- kernel --------------------------------------
def _sg_renderer_kernel(sg_ref, pts_ref, out_ref, *, eval_background, n_chunks,
                        chunk):
    # sg_ref : [K*7, S, 128]   (per SG: 0:3 amp, 3:6 axis, 6:7 sharpness)
    # pts_ref: [C,   S, 128]   (0:3 base, 3:4 metal, 4:5 rough, 5:8 normal,
    #                           8:11 view, 11:12 alpha [only if eval_background])
    K = sg_ref.shape[0] // 7

    def dot3(a, b):  # channel dot over leading axis of size 3 -> [1, chunk, 128]
        return a[0:1] * b[0:1] + a[1:2] * b[1:2] + a[2:3] * b[2:3]

    def rnorm(x):    # normalize(x) == x * rsqrt(max(dot(x,x), 1e-12))
        return x * lax.rsqrt(jnp.maximum(dot3(x, x), 1e-12))

    def safe_sqrt(x):
        return jnp.sqrt(jnp.maximum(x, 1e-12))

    def ggx(a2, ndx):
        return 1.0 / (ndx + safe_sqrt(a2 + (1.0 - a2) * ndx * ndx))

    def srgb_to_linear(s):
        return jnp.where(
            s <= 0.04045,
            s / 12.92,
            jnp.power((jnp.maximum(s, 0.04045) + 0.055) / 1.055, 2.4))

    @pl.loop(0, n_chunks)
    def _per_chunk(c):
        r0 = pl.multiple_of(c * chunk, chunk)
        rows = pl.ds(r0, chunk)

        basecolor = pts_ref[0:3, rows, :]      # [3, chunk, 128]
        metallic = pts_ref[3:4, rows, :]       # [1, chunk, 128]
        roughness = pts_ref[4:5, rows, :]      # [1, chunk, 128]
        normal_raw = pts_ref[5:8, rows, :]     # [3, chunk, 128]
        view_raw = pts_ref[8:11, rows, :]      # [3, chunk, 128]

        # ---------------- SG-independent preamble (hoisted) ------------------
        lin = srgb_to_linear(basecolor)
        one_m_metal = 1.0 - metallic
        diff_over_pi = lin * one_m_metal * (1.0 / _PI)       # diffuse / pi
        specular = 0.04 * one_m_metal + lin * metallic       # mix(0.04, lin, metal)

        normal_raw = jnp.where(normal_raw == 0.0, view_raw, normal_raw)
        normal = rnorm(normal_raw)
        v = rnorm(view_raw)

        a2 = jnp.clip(roughness * roughness, 0.001, 1.0)
        w_amp = 1.0 / (_PI * a2)                             # NDF amplitude (>0)
        ndf_sharp = jnp.clip(2.0 / jnp.maximum(a2, 1e-6), 0.5, 30.0)
        # normalize(reflect(-v, normal)) with normal already unit length
        warp_dir = rnorm(2.0 * dot3(v, normal) * normal - v)
        w_sharp = jnp.clip(
            ndf_sharp / (4.0 * jnp.clip(dot3(normal, v), 1e-4, 1.0)), 0.5, 30.0)

        ndl = jnp.clip(dot3(normal, warp_dir), 0.0, 1.0)
        ndv = jnp.clip(dot3(normal, v), 0.0, 1.0)
        h = rnorm(warp_dir + v)
        ldh = jnp.clip(dot3(warp_dir, h), 0.0, 1.0)

        G = ggx(a2, ndl) * ggx(a2, ndv)
        omldh = 1.0 - ldh
        p2 = omldh * omldh
        pow5 = p2 * p2 * omldh                               # (1-ldh)^5
        F = specular + (1.0 - specular) * pow5
        GFn = G * F * ndl                                    # [3, chunk, 128]
        wsw = w_sharp * warp_dir                             # [3, chunk, 128]
        two_pi_w_amp = _TWO_PI * w_amp                       # [1, chunk, 128]

        brdf = jnp.zeros_like(basecolor)
        env = jnp.zeros_like(basecolor) if eval_background else None

        # ------------------------ K spherical gaussians -----------------------
        for k in range(K):
            o = 7 * k
            amp = jnp.abs(sg_ref[o:o + 3, rows, :])                   # [3,·]
            ax = rnorm(sg_ref[o + 3:o + 6, rows, :])                  # [3,·]
            sharp = jnp.clip(sg_ref[o + 6:o + 7, rows, :], 0.5, 30.0) # [1,·]

            # ---- diffuse (hemispherical SG irradiance fit) ----
            mudn = jnp.clip(dot3(ax, normal), 0.0, 1.0)
            eml = jnp.exp(-sharp)            # arg <= -0.5, no overflow clamp
            em2l = eml * eml                 # == exp(-2*sharp)
            rl = 1.0 / sharp
            scale = 1.0 + 2.0 * em2l - rl
            bias = (eml - em2l) * rl - em2l
            x = safe_sqrt(1.0 - scale)
            x0 = 0.36 * mudn
            x1 = (1.0 / 1.44) * x
            n_ = x0 + x1
            y = jnp.where(jnp.abs(x0) <= x1,
                          n_ * (n_ / jnp.maximum(x, 1e-6)), mudn)
            res = scale * y + bias
            diff_coef = res * (_TWO_PI * rl * (1.0 - em2l))  # res * sg_integral / amp
            brdf = brdf + diff_coef * (amp * diff_over_pi)

            # ---- specular (SG inner product with warped NDF) ----
            um = wsw + sharp * ax
            um_len = safe_sqrt(dot3(um, um))
            other = 1.0 - jnp.exp(-2.0 * um_len)          # arg <= 0
            expo = jnp.exp(um_len - w_sharp - sharp)      # arg <= 0
            spec_coef = (two_pi_w_amp * expo) * (other / um_len)
            # Per-SG ReLU dropped: every factor is provably >= 0
            # (amp=|.|, w_amp>0, expo>0, other in [0,1), G>0, ndl>=0,
            #  F = pow5 + specular*(1-pow5) >= 0 since pow5 in [0,1]).
            brdf = brdf + spec_coef * amp * GFn

            if eval_background:
                cosang = dot3(v, ax)
                env = env + amp * jnp.exp(sharp * (cosang - 1.0))   # arg <= 0

        if eval_background:
            alpha = jnp.clip(pts_ref[11:12, rows, :], 0.0, 1.0)
            out = brdf * alpha + env * (1.0 - alpha)
        else:
            out = brdf
        out_ref[:, rows, :] = jnp.maximum(out, 0.0)


# ------------------------------ wrapper ---------------------------------------
def sg_renderer(sg, basecolor, metallic, roughness, normal, alpha, view_dir,
                eval_background=False, block_points=16384):
    """PyTorch-layout inputs: sg [N,K,7], basecolor [N,3], metallic [N,1] or [N],
       roughness [N,1] or [N], normal [N,3], alpha [N] or [N,1], view_dir [N,3].
       Returns [N,3] float32."""
    N, K, _ = sg.shape
    f32 = jnp.float32
    # Cap block size for v7x (64 MiB physical VMEM).
    block_points = int(min(max(block_points, _SUB * _LANE), 32768))

    def as2d(x):
        return x[:, None] if x.ndim == 1 else x

    # Pad point count to a multiple of 8*128 so every block is vreg-aligned.
    row_block = _SUB * _LANE
    Np = ((N + row_block - 1) // row_block) * row_block
    pad = Np - N
    R = Np // _LANE                                       # rows (multiple of 8)

    def pad_n(x):
        if pad == 0:
            return x
        return jnp.pad(x, ((0, pad),) + ((0, 0),) * (x.ndim - 1))

    # Single transpose/pad of the SG data: [N,K,7] -> [K*7, R, 128].
    sg_t = jnp.transpose(pad_n(sg.astype(f32)), (1, 2, 0)).reshape(K * 7, R, _LANE)

    # All per-point vectors in one array: [N, C] -> [C, R, 128].
    feats = [as2d(basecolor), as2d(metallic), as2d(roughness),
             as2d(normal), as2d(view_dir)]
    if eval_background:
        feats.append(as2d(alpha))
    pts = jnp.concatenate([f.astype(f32) for f in feats], axis=-1)
    C = pts.shape[1]                                      # 11 or 12
    pts_t = jnp.transpose(pad_n(pts), (1, 0)).reshape(C, R, _LANE)

    # Block rows: largest multiple of 8 dividing R that is <= requested size,
    # preferring a grid of >= 2 steps so "parallel" can use both v7x cores.
    want_rows = max(_SUB, (block_points // _LANE) // _SUB * _SUB)
    cands = [d for d in range(_SUB, R + 1, _SUB) if R % d == 0]
    good = [d for d in cands if d <= want_rows and R // d >= 2]
    if good:
        S = max(good)
    else:
        ok = [d for d in cands if d <= want_rows]
        S = max(ok) if ok else _SUB
    n_chunks = S // _SUB
    grid = (R // S,)

    # Explicit scoped-VMEM limit (raises v5e's 16 MiB default; safe on v7x).
    block_bytes = (K * 7 + C + 3) * S * _LANE * 4
    vmem_limit = int(min(max(2.5 * block_bytes + (4 << 20), 32 << 20), 64 << 20))

    kern = functools.partial(
        _sg_renderer_kernel, eval_background=eval_background,
        n_chunks=n_chunks, chunk=_SUB)

    out_t = pl.pallas_call(
        kern,
        out_shape=jax.ShapeDtypeStruct((3, R, _LANE), f32),
        grid=grid,
        in_specs=[pl.BlockSpec((K * 7, S, _LANE), lambda i: (0, i, 0)),
                  pl.BlockSpec((C, S, _LANE), lambda i: (0, i, 0))],
        out_specs=pl.BlockSpec((3, S, _LANE), lambda i: (0, i, 0)),
        compiler_params=pltpu.CompilerParams(
            dimension_semantics=("parallel",),
            vmem_limit_bytes=vmem_limit),
    )(sg_t, pts_t)

    out = jnp.transpose(out_t.reshape(3, Np), (1, 0))     # [Np, 3]
    return out[:N]


# ----------------------- pure-JAX reference (for checking) -------------------
def _ref_forward(sg, basecolor, metallic, roughness, normal, alpha, view_dir,
                 eval_background=False):
    dot = lambda a, b: jnp.sum(a * b, axis=-1, keepdims=True)
    safe_exp = lambda x: jnp.exp(jnp.minimum(x, 87.5))
    safe_sqrt = lambda x: jnp.sqrt(jnp.maximum(x, 1e-12))
    magnitude = lambda x: safe_sqrt(dot(x, x))
    normalize = lambda x: x / magnitude(x)
    sat = lambda x, lo=0.0, hi=1.0: jnp.clip(x, lo, hi)
    srgb = lambda s: jnp.where(
        s <= 0.04045, s / 12.92,
        jnp.power((jnp.maximum(s, 0.04045) + 0.055) / 1.055, 2.4))
    reflect = lambda d, n: d - 2.0 * dot(d, n) * n
    ggx = lambda a2, ndx: 1.0 / (ndx + safe_sqrt(a2 + (1.0 - a2) * ndx * ndx))
    pi = _PI

    if metallic.ndim == 1:
        metallic = metallic[:, None]
    if roughness.ndim == 1:
        roughness = roughness[:, None]

    lin = srgb(basecolor)
    diffuse = (lin * (1.0 - metallic))[:, None]
    specular = (0.04 * (1.0 - metallic) + lin * metallic)[:, None]
    normal = jnp.where(normal == 0.0, view_dir, normal)
    roughness = roughness[:, None]
    normal = normalize(normal)[:, None]
    v = normalize(view_dir)[:, None]

    s_amp = jnp.abs(sg[..., 0:3])
    s_axis = normalize(sg[..., 3:6])
    s_sharp = sat(sg[..., 6:7], 0.5, 30.0)

    a2 = sat(roughness * roughness, 0.001)
    ndf_amp = jnp.broadcast_to(1.0 / (pi * a2), a2.shape[:-1] + (3,))
    ndf_axis = normalize(normal)
    ndf_sharp = sat(2.0 / jnp.maximum(a2, 1e-6), 0.5, 30.0)
    w_amp = jnp.abs(ndf_amp)
    warp_dir = normalize(reflect(-v, ndf_axis))
    w_sharp = sat(ndf_sharp / (4.0 * sat(dot(ndf_axis, v), 0.0001)), 0.5, 30.0)

    ndl = sat(dot(normal, warp_dir))
    ndv = sat(dot(normal, v))
    h = normalize(warp_dir + v)
    ldh = sat(dot(warp_dir, h))

    mudn = sat(dot(s_axis, normal))
    c0 = 0.36
    c1 = 1.0 / (4.0 * c0)
    eml = safe_exp(-s_sharp)
    em2l = eml * eml
    rl = 1.0 / s_sharp
    scale = 1.0 + 2.0 * em2l - rl
    bias = (eml - em2l) * rl - em2l
    x = safe_sqrt(1.0 - scale)
    x0 = c0 * mudn
    x1 = c1 * x
    n_ = x0 + x1
    y = jnp.where(jnp.abs(x0) <= x1, n_ * (n_ / jnp.maximum(x, 1e-6)), mudn)
    res = scale * y + bias
    sg_int = 2.0 * pi * (s_amp / s_sharp) * (1.0 - safe_exp(-2.0 * s_sharp))
    diffuse_eval = res * sg_int * (diffuse / pi)

    um_len = magnitude(w_sharp * warp_dir + s_sharp * s_axis)
    expo = safe_exp(um_len - w_sharp - s_sharp) * w_amp * s_amp
    other = 1.0 - safe_exp(-2.0 * um_len)
    D = 2.0 * pi * expo * other / um_len
    G = ggx(a2, ndl) * ggx(a2, ndv)
    F = specular + (1.0 - specular) * jnp.power(1.0 - ldh, 5.0)
    spec_eval = jnp.maximum(D * G * F * ndl, 0.0)

    brdf = jnp.sum(diffuse_eval + spec_eval, axis=1)
    if eval_background:
        if alpha.ndim == 1:
            alpha = alpha[:, None]
        alpha = jnp.clip(alpha, 0.0, 1.0)
        env = jnp.sum(s_amp * safe_exp(s_sharp * (dot(v, s_axis) - 1.0)), axis=1)
        return jnp.maximum(brdf * alpha + env * (1.0 - alpha), 0.0)
    return jnp.maximum(brdf, 0.0)


if __name__ == "__main__":
    K = 8

    def make_inputs(key, N):
        ks = jax.random.split(key, 9)
        sg_amp = jax.random.uniform(ks[0], (N, K, 3), minval=0.0, maxval=2.0)
        sg_axis = jax.random.normal(ks[1], (N, K, 3))
        sg_sharp = jax.random.uniform(ks[2], (N, K, 1), minval=0.5, maxval=30.0)
        sg = jnp.concatenate([sg_amp, sg_axis, sg_sharp], axis=-1)   # [N, K, 7]
        basecolor = jax.random.uniform(ks[3], (N, 3))
        metallic = jax.random.uniform(ks[4], (N, 1))
        roughness = jax.random.uniform(ks[5], (N, 1), minval=0.05, maxval=1.0)
        normal = jax.random.normal(ks[6], (N, 3))
        view_dir = jax.random.normal(ks[7], (N, 3))
        alpha = jax.random.uniform(ks[8], (N, 1))
        return sg, basecolor, metallic, roughness, normal, alpha, view_dir

    # All in-kernel math is now exact f32; tolerance covers Mosaic-vs-XLA
    # transcendental rounding differences only.
    rtol = atol = 3e-3

    # Case 1: default config (eval_background=False); 2 grid steps x 2 chunks.
    args1 = make_inputs(jax.random.PRNGKey(0), 4096)
    out1 = jax.block_until_ready(
        sg_renderer(*args1, eval_background=False, block_points=2048))
    ref1 = _ref_forward(*args1, eval_background=False)
    assert out1.shape == (4096, 3) and out1.dtype == jnp.float32
    if not np.allclose(np.asarray(out1), np.asarray(ref1), rtol=rtol, atol=atol):
        raise AssertionError("Pallas kernel (eval_background=False) != reference")

    # Case 2: eval_background=True with N not a multiple of 1024 (padding path).
    args2 = make_inputs(jax.random.PRNGKey(1), 1000)
    out2 = jax.block_until_ready(sg_renderer(*args2, eval_background=True))
    ref2 = _ref_forward(*args2, eval_background=True)
    assert out2.shape == (1000, 3) and out2.dtype == jnp.float32
    if not np.allclose(np.asarray(out2), np.asarray(ref2), rtol=rtol, atol=atol):
        raise AssertionError("Pallas kernel (eval_background=True) != reference")

    print("KERNEL_OK")
</pallas_src>

<mosaic_0001>
module attributes {stable_mosaic.version = 11 : i64} {
  func.func @_sg_renderer_kernel(%arg0: i32, %arg1: memref<56x16x128xf32, #tpu.memory_space<vmem>>, %arg2: memref<11x16x128xf32, #tpu.memory_space<vmem>>, %arg3: memref<3x16x128xf32, #tpu.memory_space<vmem>>) attributes {dimension_semantics = [#tpu.dimension_semantics<parallel>], iteration_bounds = array<i64: 2>, scalar_prefetch = 0 : i64, scratch_operands = 0 : i64, tpu.core_type = #tpu.core_type<tc>, window_params = [{transform_indices = @transform_0, window_bounds = array<i64: 56, 16, 128>}, {transform_indices = @transform_1, window_bounds = array<i64: 11, 16, 128>}, {transform_indices = @transform_2, window_bounds = array<i64: 3, 16, 128>}]} {
    %c0_i32 = arith.constant 0 : i32
    %c2_i32 = arith.constant 2 : i32
    %0 = arith.addi %c0_i32, %c2_i32 : i32
    %c1_i32 = arith.constant 1 : i32
    scf.for %arg4 = %c0_i32 to %0 step %c1_i32  : i32 {
      %c1_i32_1 = arith.constant 1 : i32
      %1 = arith.muli %arg4, %c1_i32_1 : i32
      %c0_i32_2 = arith.constant 0 : i32
      %2 = arith.addi %c0_i32_2, %1 : i32
      %c8_i32 = arith.constant 8 : i32
      %3 = arith.muli %2, %c8_i32 : i32
      %4 = tpu.assume_multiple %3, 8 : i32
      %c0 = arith.constant 0 : index
      %5 = arith.index_cast %4 : i32 to index
      %c0_3 = arith.constant 0 : index
      %6 = vector.load %arg2[%c0, %5, %c0_3] : memref<11x16x128xf32, #tpu.memory_space<vmem>>, vector<3x8x128xf32>
      %c3 = arith.constant 3 : index
      %7 = arith.index_cast %4 : i32 to index
      %c0_4 = arith.constant 0 : index
      %8 = vector.load %arg2[%c3, %7, %c0_4] : memref<11x16x128xf32, #tpu.memory_space<vmem>>, vector<1x8x128xf32>
      %c4 = arith.constant 4 : index
      %9 = arith.index_cast %4 : i32 to index
      %c0_5 = arith.constant 0 : index
      %10 = vector.load %arg2[%c4, %9, %c0_5] : memref<11x16x128xf32, #tpu.memory_space<vmem>>, vector<1x8x128xf32>
      %c5 = arith.constant 5 : index
      %11 = arith.index_cast %4 : i32 to index
      %c0_6 = arith.constant 0 : index
      %12 = vector.load %arg2[%c5, %11, %c0_6] : memref<11x16x128xf32, #tpu.memory_space<vmem>>, vector<3x8x128xf32>
      %c8 = arith.constant 8 : index
      %13 = arith.index_cast %4 : i32 to index
      %c0_7 = arith.constant 0 : index
      %14 = vector.load %arg2[%c8, %13, %c0_7] : memref<11x16x128xf32, #tpu.memory_space<vmem>>, vector<3x8x128xf32>
      %cst = arith.constant 4.045000e-02 : f32
      %15 = vector.broadcast %cst : f32 to vector<3x8x128xf32>
      %16 = arith.cmpf ole, %6, %15 : vector<3x8x128xf32>
      %cst_8 = arith.constant 1.292000e+01 : f32
      %17 = vector.broadcast %cst_8 : f32 to vector<3x8x128xf32>
      %18 = arith.divf %6, %17 : vector<3x8x128xf32>
      %cst_9 = arith.constant 4.045000e-02 : f32
      %19 = vector.broadcast %cst_9 : f32 to vector<3x8x128xf32>
      %20 = arith.maximumf %6, %19 : vector<3x8x128xf32>
      %cst_10 = arith.constant 5.500000e-02 : f32
      %21 = vector.broadcast %cst_10 : f32 to vector<3x8x128xf32>
      %22 = arith.addf %20, %21 : vector<3x8x128xf32>
      %cst_11 = arith.constant 1.055000e+00 : f32
      %23 = vector.broadcast %cst_11 : f32 to vector<3x8x128xf32>
      %24 = arith.divf %22, %23 : vector<3x8x128xf32>
      %cst_12 = arith.constant 2.400000e+00 : f32
      %25 = vector.broadcast %cst_12 : f32 to vector<3x8x128xf32>
      %26 = math.powf %24, %25 : vector<3x8x128xf32>
      %27 = arith.select %16, %18, %26 : vector<3x8x128xi1>, vector<3x8x128xf32>
      %cst_13 = arith.constant 1.000000e+00 : f32
      %28 = vector.broadcast %cst_13 : f32 to vector<1x8x128xf32>
      %29 = arith.subf %28, %8 : vector<1x8x128xf32>
      %30 = vector.broadcast %29 : vector<1x8x128xf32> to vector<3x8x128xf32>
      %31 = arith.mulf %27, %30 : vector<3x8x128xf32>
      %cst_14 = arith.constant 0.318309873 : f32
      %32 = vector.broadcast %cst_14 : f32 to vector<3x8x128xf32>
      %33 = arith.mulf %31, %32 : vector<3x8x128xf32>
      %cst_15 = arith.constant 4.000000e-02 : f32
      %34 = vector.broadcast %cst_15 : f32 to vector<1x8x128xf32>
      %35 = arith.mulf %34, %29 : vector<1x8x128xf32>
      %36 = vector.broadcast %8 : vector<1x8x128xf32> to vector<3x8x128xf32>
      %37 = arith.mulf %27, %36 : vector<3x8x128xf32>
      %38 = vector.broadcast %35 : vector<1x8x128xf32> to vector<3x8x128xf32>
      %39 = arith.addf %38, %37 : vector<3x8x128xf32>
      %cst_16 = arith.constant 0.000000e+00 : f32
      %40 = vector.broadcast %cst_16 : f32 to vector<3x8x128xf32>
      %41 = arith.cmpf oeq, %12, %40 : vector<3x8x128xf32>
      %42 = arith.select %41, %14, %12 : vector<3x8x128xi1>, vector<3x8x128xf32>
      %43 = vector.extract_strided_slice %42 {offsets = [0, 0, 0], sizes = [1, 8, 128], strides = [1, 1, 1]} : vector<3x8x128xf32> to vector<1x8x128xf32>
      %44 = vector.extract_strided_slice %42 {offsets = [0, 0, 0], sizes = [1, 8, 128], strides = [1, 1, 1]} : vector<3x8x128xf32> to vector<1x8x128xf32>
      %45 = arith.mulf %43, %44 : vector<1x8x128xf32>
      %46 = vector.extract_strided_slice %42 {offsets = [1, 0, 0], sizes = [1, 8, 128], strides = [1, 1, 1]} : vector<3x8x128xf32> to vector<1x8x128xf32>
      %47 = vector.extract_strided_slice %42 {offsets = [1, 0, 0], sizes = [1, 8, 128], strides = [1, 1, 1]} : vector<3x8x128xf32> to vector<1x8x128xf32>
      %48 = arith.mulf %46, %47 : vector<1x8x128xf32>
      %49 = arith.addf %45, %48 : vector<1x8x128xf32>
      %50 = vector.extract_strided_slice %42 {offsets = [2, 0, 0], sizes = [1, 8, 128], strides = [1, 1, 1]} : vector<3x8x128xf32> to vector<1x8x128xf32>
      %51 = vector.extract_strided_slice %42 {offsets = [2, 0, 0], sizes = [1, 8, 128], strides = [1, 1, 1]} : vector<3x8x128xf32> to vector<1x8x128xf32>
      %52 = arith.mulf %50, %51 : vector<1x8x128xf32>
      %53 = arith.addf %49, %52 : vector<1x8x128xf32>
      %cst_17 = arith.constant 9.99999996E-13 : f32
      %54 = vector.broadcast %cst_17 : f32 to vector<1x8x128xf32>
      %55 = arith.maximumf %53, %54 : vector<1x8x128xf32>
      %56 = math.rsqrt %55 : vector<1x8x128xf32>
      %57 = vector.broadcast %56 : vector<1x8x128xf32> to vector<3x8x128xf32>
      %58 = arith.mulf %42, %57 : vector<3x8x128xf32>
      %59 = vector.extract_strided_slice %14 {offsets = [0, 0, 0], sizes = [1, 8, 128], strides = [1, 1, 1]} : vector<3x8x128xf32> to vector<1x8x128xf32>
      %60 = vector.extract_strided_slice %14 {offsets = [0, 0, 0], sizes = [1, 8, 128], strides = [1, 1, 1]} : vector<3x8x128xf32> to vector<1x8x128xf32>
      %61 = arith.mulf %59, %60 : vector<1x8x128xf32>
      %62 = vector.extract_strided_slice %14 {offsets = [1, 0, 0], sizes = [1, 8, 128], strides = [1, 1, 1]} : vector<3x8x128xf32> to vector<1x8x128xf32>
      %63 = vector.extract_strided_slice %14 {offsets = [1, 0, 0], sizes = [1, 8, 128], strides = [1, 1, 1]} : vector<3x8x128xf32> to vector<1x8x128xf32>
      %64 = arith.mulf %62, %63 : vector<1x8x128xf32>
      %65 = arith.addf %61, %64 : vector<1x8x128xf32>
      %66 = vector.extract_strided_slice %14 {offsets = [2, 0, 0], sizes = [1, 8, 128], strides = [1, 1, 1]} : vector<3x8x128xf32> to vector<1x8x128xf32>
      %67 = vector.extract_strided_slice %14 {offsets = [2, 0, 0], sizes = [1, 8, 128], strides = [1, 1, 1]} : vector<3x8x128xf32> to vector<1x8x128xf32>
      %68 = arith.mulf %66, %67 : vector<1x8x128xf32>
      %69 = arith.addf %65, %68 : vector<1x8x128xf32>
      %cst_18 = arith.constant 9.99999996E-13 : f32
      %70 = vector.broadcast %cst_18 : f32 to vector<1x8x128xf32>
      %71 = arith.maximumf %69, %70 : vector<1x8x128xf32>
      %72 = math.rsqrt %71 : vector<1x8x128xf32>
      %73 = vector.broadcast %72 : vector<1x8x128xf32> to vector<3x8x128xf32>
      %74 = arith.mulf %14, %73 : vector<3x8x128xf32>
      %75 = arith.mulf %10, %10 : vector<1x8x128xf32>
      %cst_19 = arith.constant 1.000000e-03 : f32
      %cst_20 = arith.constant 1.000000e+00 : f32
      %76 = vector.broadcast %cst_19 : f32 to vector<1x8x128xf32>
      %77 = arith.maximumf %76, %75 : vector<1x8x128xf32>
      %78 = vector.broadcast %cst_20 : f32 to vector<1x8x128xf32>
      %79 = arith.minimumf %78, %77 : vector<1x8x128xf32>
      %cst_21 = arith.constant 3.14159274 : f32
      %80 = vector.broadcast %cst_21 : f32 to vector<1x8x128xf32>
      %81 = arith.mulf %80, %79 : vector<1x8x128xf32>
      %cst_22 = arith.constant 1.000000e+00 : f32
      %82 = vector.broadcast %cst_22 : f32 to vector<1x8x128xf32>
      %83 = arith.divf %82, %81 : vector<1x8x128xf32>
      %cst_23 = arith.constant 9.99999997E-7 : f32
      %84 = vector.broadcast %cst_23 : f32 to vector<1x8x128xf32>
      %85 = arith.maximumf %79, %84 : vector<1x8x128xf32>
      %cst_24 = arith.constant 2.000000e+00 : f32
      %86 = vector.broadcast %cst_24 : f32 to vector<1x8x128xf32>
      %87 = arith.divf %86, %85 : vector<1x8x128xf32>
      %cst_25 = arith.constant 5.000000e-01 : f32
      %cst_26 = arith.constant 3.000000e+01 : f32
      %88 = vector.broadcast %cst_25 : f32 to vector<1x8x128xf32>
      %89 = arith.maximumf %88, %87 : vector<1x8x128xf32>
      %90 = vector.broadcast %cst_26 : f32 to vector<1x8x128xf32>
      %91 = arith.minimumf %90, %89 : vector<1x8x128xf32>
      %92 = vector.extract_strided_slice %74 {offsets = [0, 0, 0], sizes = [1, 8, 128], strides = [1, 1, 1]} : vector<3x8x128xf32> to vector<1x8x128xf32>
      %93 = vector.extract_strided_slice %58 {offsets = [0, 0, 0], sizes = [1, 8, 128], strides = [1, 1, 1]} : vector<3x8x128xf32> to vector<1x8x128xf32>
      %94 = arith.mulf %92, %93 : vector<1x8x128xf32>
      %95 = vector.extract_strided_slice %74 {offsets = [1, 0, 0], sizes = [1, 8, 128], strides = [1, 1, 1]} : vector<3x8x128xf32> to vector<1x8x128xf32>
      %96 = vector.extract_strided_slice %58 {offsets = [1, 0, 0], sizes = [1, 8, 128], strides = [1, 1, 1]} : vector<3x8x128xf32> to vector<1x8x128xf32>
      %97 = arith.mulf %95, %96 : vector<1x8x128xf32>
      %98 = arith.addf %94, %97 : vector<1x8x128xf32>
      %99 = vector.extract_strided_slice %74 {offsets = [2, 0, 0], sizes = [1, 8, 128], strides = [1, 1, 1]} : vector<3x8x128xf32> to vector<1x8x128xf32>
      %100 = vector.extract_strided_slice %58 {offsets = [2, 0, 0], sizes = [1, 8, 128], strides = [1, 1, 1]} : vector<3x8x128xf32> to vector<1x8x128xf32>
      %101 = arith.mulf %99, %100 : vector<1x8x128xf32>
      %102 = arith.addf %98, %101 : vector<1x8x128xf32>
      %cst_27 = arith.constant 2.000000e+00 : f32
      %103 = vector.broadcast %cst_27 : f32 to vector<1x8x128xf32>
      %104 = arith.mulf %103, %102 : vector<1x8x128xf32>
      %105 = vector.broadcast %104 : vector<1x8x128xf32> to vector<3x8x128xf32>
      %106 = arith.mulf %105, %58 : vector<3x8x128xf32>
      %107 = arith.subf %106, %74 : vector<3x8x128xf32>
      %108 = vector.extract_strided_slice %107 {offsets = [0, 0, 0], sizes = [1, 8, 128], strides = [1, 1, 1]} : vector<3x8x128xf32> to vector<1x8x128xf32>
      %109 = vector.extract_strided_slice %107 {offsets = [0, 0, 0], sizes = [1, 8, 128], strides = [1, 1, 1]} : vector<3x8x128xf32> to vector<1x8x128xf32>
      %110 = arith.mulf %108, %109 : vector<1x8x128xf32>
      %111 = vector.extract_strided_slice %107 {offsets = [1, 0, 0], sizes = [1, 8, 128], strides = [1, 1, 1]} : vector<3x8x128xf32> to vector<1x8x128xf32>
      %112 = vector.extract_strided_slice %107 {offsets = [1, 0, 0], sizes = [1, 8, 128], strides = [1, 1, 1]} : vector<3x8x128xf32> to vector<1x8x128xf32>
      %113 = arith.mulf %111, %112 : vector<1x8x128xf32>
      %114 = arith.addf %110, %113 : vector<1x8x128xf32>
      %115 = vector.extract_strided_slice %107 {offsets = [2, 0, 0], sizes = [1, 8, 128], strides = [1, 1, 1]} : vector<3x8x128xf32> to vector<1x8x128xf32>
      %116 = vector.extract_strided_slice %107 {offsets = [2, 0, 0], sizes = [1, 8, 128], strides = [1, 1, 1]} : vector<3x8x128xf32> to vector<1x8x128xf32>
      %117 = arith.mulf %115, %116 : vector<1x8x128xf32>
      %118 = arith.addf %114, %117 : vector<1x8x128xf32>
      %cst_28 = arith.constant 9.99999996E-13 : f32
      %119 = vector.broadcast %cst_28 : f32 to vector<1x8x128xf32>
      %120 = arith.maximumf %118, %119 : vector<1x8x128xf32>
      %121 = math.rsqrt %120 : vector<1x8x128xf32>
      %122 = vector.broadcast %121 : vector<1x8x128xf32> to vector<3x8x128xf32>
      %123 = arith.mulf %107, %122 : vector<3x8x128xf32>
      %124 = vector.extract_strided_slice %58 {offsets = [0, 0, 0], sizes = [1, 8, 128], strides = [1, 1, 1]} : vector<3x8x128xf32> to vector<1x8x128xf32>
      %125 = vector.extract_strided_slice %74 {offsets = [0, 0, 0], sizes = [1, 8, 128], strides = [1, 1, 1]} : vector<3x8x128xf32> to vector<1x8x128xf32>
      %126 = arith.mulf %124, %125 : vector<1x8x128xf32>
      %127 = vector.extract_strided_slice %58 {offsets = [1, 0, 0], sizes = [1, 8, 128], strides = [1, 1, 1]} : vector<3x8x128xf32> to vector<1x8x128xf32>
      %128 = vector.extract_strided_slice %74 {offsets = [1, 0, 0], sizes = [1, 8, 128], strides = [1, 1, 1]} : vector<3x8x128xf32> to vector<1x8x128xf32>
      %129 = arith.mulf %127, %128 : vector<1x8x128xf32>
      %130 = arith.addf %126, %129 : vector<1x8x128xf32>
      %131 = vector.extract_strided_slice %58 {offsets = [2, 0, 0], sizes = [1, 8, 128], strides = [1, 1, 1]} : vector<3x8x128xf32> to vector<1x8x128xf32>
      %132 = vector.extract_strided_slice %74 {offsets = [2, 0, 0], sizes = [1, 8, 128], strides = [1, 1, 1]} : vector<3x8x128xf32> to vector<1x8x128xf32>
      %133 = arith.mulf %131, %132 : vector<1x8x128xf32>
      %134 = arith.addf %130, %133 : vector<1x8x128xf32>
      %cst_29 = arith.constant 9.99999974E-5 : f32
      %cst_30 = arith.constant 1.000000e+00 : f32
      %135 = vector.broadcast %cst_29 : f32 to vector<1x8x128xf32>
      %136 = arith.maximumf %135, %134 : vector<1x8x128xf32>
      %137 = vector.broadcast %cst_30 : f32 to vector<1x8x128xf32>
      %138 = arith.minimumf %137, %136 : vector<1x8x128xf32>
      %cst_31 = arith.constant 4.000000e+00 : f32
      %139 = vector.broadcast %cst_31 : f32 to vector<1x8x128xf32>
      %140 = arith.mulf %139, %138 : vector<1x8x128xf32>
      %141 = arith.divf %91, %140 : vector<1x8x128xf32>
      %cst_32 = arith.constant 5.000000e-01 : f32
      %cst_33 = arith.constant 3.000000e+01 : f32
      %142 = vector.broadcast %cst_32 : f32 to vector<1x8x128xf32>
      %143 = arith.maximumf %142, %141 : vector<1x8x128xf32>
      %144 = vector.broadcast %cst_33 : f32 to vector<1x8x128xf32>
      %145 = arith.minimumf %144, %143 : vector<1x8x128xf32>
      %146 = vector.extract_strided_slice %58 {offsets = [0, 0, 0], sizes = [1, 8, 128], strides = [1, 1, 1]} : vector<3x8x128xf32> to vector<1x8x128xf32>
      %147 = vector.extract_strided_slice %123 {offsets = [0, 0, 0], sizes = [1, 8, 128], strides = [1, 1, 1]} : vector<3x8x128xf32> to vector<1x8x128xf32>
      %148 = arith.mulf %146, %147 : vector<1x8x128xf32>
      %149 = vector.extract_strided_slice %58 {offsets = [1, 0, 0], sizes = [1, 8, 128], strides = [1, 1, 1]} : vector<3x8x128xf32> to vector<1x8x128xf32>
      %150 = vector.extract_strided_slice %123 {offsets = [1, 0, 0], sizes = [1, 8, 128], strides = [1, 1, 1]} : vector<3x8x128xf32> to vector<1x8x128xf32>
      %151 = arith.mulf %149, %150 : vector<1x8x128xf32>
      %152 = arith.addf %148, %151 : vector<1x8x128xf32>
      %153 = vector.extract_strided_slice %58 {offsets = [2, 0, 0], sizes = [1, 8, 128], strides = [1, 1, 1]} : vector<3x8x128xf32> to vector<1x8x128xf32>
      %154 = vector.extract_strided_slice %123 {offsets = [2, 0, 0], sizes = [1, 8, 128], strides = [1, 1, 1]} : vector<3x8x128xf32> to vector<1x8x128xf32>
      %155 = arith.mulf %153, %154 : vector<1x8x128xf32>
      %156 = arith.addf %152, %155 : vector<1x8x128xf32>
      %cst_34 = arith.constant 0.000000e+00 : f32
      %cst_35 = arith.constant 1.000000e+00 : f32
      %157 = vector.broadcast %cst_34 : f32 to vector<1x8x128xf32>
      %158 = arith.maximumf %157, %156 : vector<1x8x128xf32>
      %159 = vector.broadcast %cst_35 : f32 to vector<1x8x128xf32>
      %160 = arith.minimumf %159, %158 : vector<1x8x128xf32>
      %161 = vector.extract_strided_slice %58 {offsets = [0, 0, 0], sizes = [1, 8, 128], strides = [1, 1, 1]} : vector<3x8x128xf32> to vector<1x8x128xf32>
      %162 = vector.extract_strided_slice %74 {offsets = [0, 0, 0], sizes = [1, 8, 128], strides = [1, 1, 1]} : vector<3x8x128xf32> to vector<1x8x128xf32>
      %163 = arith.mulf %161, %162 : vector<1x8x128xf32>
      %164 = vector.extract_strided_slice %58 {offsets = [1, 0, 0], sizes = [1, 8, 128], strides = [1, 1, 1]} : vector<3x8x128xf32> to vector<1x8x128xf32>
      %165 = vector.extract_strided_slice %74 {offsets = [1, 0, 0], sizes = [1, 8, 128], strides = [1, 1, 1]} : vector<3x8x128xf32> to vector<1x8x128xf32>
      %166 = arith.mulf %164, %165 : vector<1x8x128xf32>
      %167 = arith.addf %163, %166 : vector<1x8x128xf32>
      %168 = vector.extract_strided_slice %58 {offsets = [2, 0, 0], sizes = [1, 8, 128], strides = [1, 1, 1]} : vector<3x8x128xf32> to vector<1x8x128xf32>
      %169 = vector.extract_strided_slice %74 {offsets = [2, 0, 0], sizes = [1, 8, 128], strides = [1, 1, 1]} : vector<3x8x128xf32> to vector<1x8x128xf32>
      %170 = arith.mulf %168, %169 : vector<1x8x128xf32>
      %171 = arith.addf %167, %170 : vector<1x8x128xf32>
      %cst_36 = arith.constant 0.000000e+00 : f32
      %cst_37 = arith.constant 1.000000e+00 : f32
      %172 = vector.broadcast %cst_36 : f32 to vector<1x8x128xf32>
      %173 = arith.maximumf %172, %171 : vector<1x8x128xf32>
      %174 = vector.broadcast %cst_37 : f32 to vector<1x8x128xf32>
      %175 = arith.minimumf %174, %173 : vector<1x8x128xf32>
      %176 = arith.addf %123, %74 : vector<3x8x128xf32>
      %177 = vector.extract_strided_slice %176 {offsets = [0, 0, 0], sizes = [1, 8, 128], strides = [1, 1, 1]} : vector<3x8x128xf32> to vector<1x8x128xf32>
      %178 = vector.extract_strided_slice %176 {offsets = [0, 0, 0], sizes = [1, 8, 128], strides = [1, 1, 1]} : vector<3x8x128xf32> to vector<1x8x128xf32>
      %179 = arith.mulf %177, %178 : vector<1x8x128xf32>
      %180 = vector.extract_strided_slice %176 {offsets = [1, 0, 0], sizes = [1, 8, 128], strides = [1, 1, 1]} : vector<3x8x128xf32> to vector<1x8x128xf32>
      %181 = vector.extract_strided_slice %176 {offsets = [1, 0, 0], sizes = [1, 8, 128], strides = [1, 1, 1]} : vector<3x8x128xf32> to vector<1x8x128xf32>
      %182 = arith.mulf %180, %181 : vector<1x8x128xf32>
      %183 = arith.addf %179, %182 : vector<1x8x128xf32>
      %184 = vector.extract_strided_slice %176 {offsets = [2, 0, 0], sizes = [1, 8, 128], strides = [1, 1, 1]} : vector<3x8x128xf32> to vector<1x8x128xf32>
      %185 = vector.extract_strided_slice %176 {offsets = [2, 0, 0], sizes = [1, 8, 128], strides = [1, 1, 1]} : vector<3x8x128xf32> to vector<1x8x128xf32>
      %186 = arith.mulf %184, %185 : vector<1x8x128xf32>
      %187 = arith.addf %183, %186 : vector<1x8x128xf32>
      %cst_38 = arith.constant 9.99999996E-13 : f32
      %188 = vector.broadcast %cst_38 : f32 to vector<1x8x128xf32>
      %189 = arith.maximumf %187, %188 : vector<1x8x128xf32>
      %190 = math.rsqrt %189 : vector<1x8x128xf32>
      %191 = vector.broadcast %190 : vector<1x8x128xf32> to vector<3x8x128xf32>
      %192 = arith.mulf %176, %191 : vector<3x8x128xf32>
      %193 = vector.extract_strided_slice %123 {offsets = [0, 0, 0], sizes = [1, 8, 128], strides = [1, 1, 1]} : vector<3x8x128xf32> to vector<1x8x128xf32>
      %194 = vector.extract_strided_slice %192 {offsets = [0, 0, 0], sizes = [1, 8, 128], strides = [1, 1, 1]} : vector<3x8x128xf32> to vector<1x8x128xf32>
      %195 = arith.mulf %193, %194 : vector<1x8x128xf32>
      %196 = vector.extract_strided_slice %123 {offsets = [1, 0, 0], sizes = [1, 8, 128], strides = [1, 1, 1]} : vector<3x8x128xf32> to vector<1x8x128xf32>
      %197 = vector.extract_strided_slice %192 {offsets = [1, 0, 0], sizes = [1, 8, 128], strides = [1, 1, 1]} : vector<3x8x128xf32> to vector<1x8x128xf32>
      %198 = arith.mulf %196, %197 : vector<1x8x128xf32>
      %199 = arith.addf %195, %198 : vector<1x8x128xf32>
      %200 = vector.extract_strided_slice %123 {offsets = [2, 0, 0], sizes = [1, 8, 128], strides = [1, 1, 1]} : vector<3x8x128xf32> to vector<1x8x128xf32>
      %201 = vector.extract_strided_slice %192 {offsets = [2, 0, 0], sizes = [1, 8, 128], strides = [1, 1, 1]} : vector<3x8x128xf32> to vector<1x8x128xf32>
      %202 = arith.mulf %200, %201 : vector<1x8x128xf32>
      %203 = arith.addf %199, %202 : vector<1x8x128xf32>
      %cst_39 = arith.constant 0.000000e+00 : f32
      %cst_40 = arith.constant 1.000000e+00 : f32
      %204 = vector.broadcast %cst_39 : f32 to vector<1x8x128xf32>
      %205 = arith.maximumf %204, %203 : vector<1x8x128xf32>
      %206 = vector.broadcast %cst_40 : f32 to vector<1x8x128xf32>
      %207 = arith.minimumf %206, %205 : vector<1x8x128xf32>
      %cst_41 = arith.constant 1.000000e+00 : f32
      %208 = vector.broadcast %cst_41 : f32 to vector<1x8x128xf32>
      %209 = arith.subf %208, %79 : vector<1x8x128xf32>
      %210 = arith.mulf %209, %160 : vector<1x8x128xf32>
      %211 = arith.mulf %210, %160 : vector<1x8x128xf32>
      %212 = arith.addf %79, %211 : vector<1x8x128xf32>
      %cst_42 = arith.constant 9.99999996E-13 : f32
      %213 = vector.broadcast %cst_42 : f32 to vector<1x8x128xf32>
      %214 = arith.maximumf %212, %213 : vector<1x8x128xf32>
      %215 = math.sqrt %214 : vector<1x8x128xf32>
      %216 = arith.addf %160, %215 : vector<1x8x128xf32>
      %cst_43 = arith.constant 1.000000e+00 : f32
      %217 = vector.broadcast %cst_43 : f32 to vector<1x8x128xf32>
      %218 = arith.divf %217, %216 : vector<1x8x128xf32>
      %cst_44 = arith.constant 1.000000e+00 : f32
      %219 = vector.broadcast %cst_44 : f32 to vector<1x8x128xf32>
      %220 = arith.subf %219, %79 : vector<1x8x128xf32>
      %221 = arith.mulf %220, %175 : vector<1x8x128xf32>
      %222 = arith.mulf %221, %175 : vector<1x8x128xf32>
      %223 = arith.addf %79, %222 : vector<1x8x128xf32>
      %cst_45 = arith.constant 9.99999996E-13 : f32
      %224 = vector.broadcast %cst_45 : f32 to vector<1x8x128xf32>
      %225 = arith.maximumf %223, %224 : vector<1x8x128xf32>
      %226 = math.sqrt %225 : vector<1x8x128xf32>
      %227 = arith.addf %175, %226 : vector<1x8x128xf32>
      %cst_46 = arith.constant 1.000000e+00 : f32
      %228 = vector.broadcast %cst_46 : f32 to vector<1x8x128xf32>
      %229 = arith.divf %228, %227 : vector<1x8x128xf32>
      %230 = arith.mulf %218, %229 : vector<1x8x128xf32>
      %cst_47 = arith.constant 1.000000e+00 : f32
      %231 = vector.broadcast %cst_47 : f32 to vector<1x8x128xf32>
      %232 = arith.subf %231, %207 : vector<1x8x128xf32>
      %233 = arith.mulf %232, %232 : vector<1x8x128xf32>
      %234 = arith.mulf %233, %233 : vector<1x8x128xf32>
      %235 = arith.mulf %234, %232 : vector<1x8x128xf32>
      %cst_48 = arith.constant 1.000000e+00 : f32
      %236 = vector.broadcast %cst_48 : f32 to vector<3x8x128xf32>
      %237 = arith.subf %236, %39 : vector<3x8x128xf32>
      %238 = vector.broadcast %235 : vector<1x8x128xf32> to vector<3x8x128xf32>
      %239 = arith.mulf %237, %238 : vector<3x8x128xf32>
      %240 = arith.addf %39, %239 : vector<3x8x128xf32>
      %241 = vector.broadcast %230 : vector<1x8x128xf32> to vector<3x8x128xf32>
      %242 = arith.mulf %241, %240 : vector<3x8x128xf32>
      %243 = vector.broadcast %160 : vector<1x8x128xf32> to vector<3x8x128xf32>
      %244 = arith.mulf %242, %243 : vector<3x8x128xf32>
      %245 = vector.broadcast %145 : vector<1x8x128xf32> to vector<3x8x128xf32>
      %246 = arith.mulf %245, %123 : vector<3x8x128xf32>
      %cst_49 = arith.constant 6.28318548 : f32
      %247 = vector.broadcast %cst_49 : f32 to vector<1x8x128xf32>
      %248 = arith.mulf %247, %83 : vector<1x8x128xf32>
      %cst_50 = arith.constant 0.000000e+00 : f32
      %249 = vector.broadcast %cst_50 : f32 to vector<3x8x128xf32>
      %c0_51 = arith.constant 0 : index
      %250 = arith.index_cast %4 : i32 to index
      %c0_52 = arith.constant 0 : index
      %251 = vector.load %arg1[%c0_51, %250, %c0_52] : memref<56x16x128xf32, #tpu.memory_space<vmem>>, vector<3x8x128xf32>
      %252 = math.absf %251 : vector<3x8x128xf32>
      %c3_53 = arith.constant 3 : index
      %253 = arith.index_cast %4 : i32 to index
      %c0_54 = arith.constant 0 : index
      %254 = vector.load %arg1[%c3_53, %253, %c0_54] : memref<56x16x128xf32, #tpu.memory_space<vmem>>, vector<3x8x128xf32>
      %255 = vector.extract_strided_slice %254 {offsets = [0, 0, 0], sizes = [1, 8, 128], strides = [1, 1, 1]} : vector<3x8x128xf32> to vector<1x8x128xf32>
      %256 = vector.extract_strided_slice %254 {offsets = [0, 0, 0], sizes = [1, 8, 128], strides = [1, 1, 1]} : vector<3x8x128xf32> to vector<1x8x128xf32>
      %257 = arith.mulf %255, %256 : vector<1x8x128xf32>
      %258 = vector.extract_strided_slice %254 {offsets = [1, 0, 0], sizes = [1, 8, 128], strides = [1, 1, 1]} : vector<3x8x128xf32> to vector<1x8x128xf32>
      %259 = vector.extract_strided_slice %254 {offsets = [1, 0, 0], sizes = [1, 8, 128], strides = [1, 1, 1]} : vector<3x8x128xf32> to vector<1x8x128xf32>
      %260 = arith.mulf %258, %259 : vector<1x8x128xf32>
      %261 = arith.addf %257, %260 : vector<1x8x128xf32>
      %262 = vector.extract_strided_slice %254 {offsets = [2, 0, 0], sizes = [1, 8, 128], strides = [1, 1, 1]} : vector<3x8x128xf32> to vector<1x8x128xf32>
      %263 = vector.extract_strided_slice %254 {offsets = [2, 0, 0], sizes = [1, 8, 128], strides = [1, 1, 1]} : vector<3x8x128xf32> to vector<1x8x128xf32>
      %264 = arith.mulf %262, %263 : vector<1x8x128xf32>
      %265 = arith.addf %261, %264 : vector<1x8x128xf32>
      %cst_55 = arith.constant 9.99999996E-13 : f32
      %266 = vector.broadcast %cst_55 : f32 to vector<1x8x128xf32>
      %267 = arith.maximumf %265, %266 : vector<1x8x128xf32>
      %268 = math.rsqrt %267 : vector<1x8x128xf32>
      %269 = vector.broadcast %268 : vector<1x8x128xf32> to vector<3x8x128xf32>
      %270 = arith.mulf %254, %269 : vector<3x8x128xf32>
      %c6 = arith.constant 6 : index
      %271 = arith.index_cast %4 : i32 to index
      %c0_56 = arith.constant 0 : index
      %272 = vector.load %arg1[%c6, %271, %c0_56] : memref<56x16x128xf32, #tpu.memory_space<vmem>>, vector<1x8x128xf32>
      %cst_57 = arith.constant 5.000000e-01 : f32
      %cst_58 = arith.constant 3.000000e+01 : f32
      %273 = vector.broadcast %cst_57 : f32 to vector<1x8x128xf32>
      %274 = arith.maximumf %273, %272 : vector<1x8x128xf32>
      %275 = vector.broadcast %cst_58 : f32 to vector<1x8x128xf32>
      %276 = arith.minimumf %275, %274 : vector<1x8x128xf32>
      %277 = vector.extract_strided_slice %270 {offsets = [0, 0, 0], sizes = [1, 8, 128], strides = [1, 1, 1]} : vector<3x8x128xf32> to vector<1x8x128xf32>
      %278 = vector.extract_strided_slice %58 {offsets = [0, 0, 0], sizes = [1, 8, 128], strides = [1, 1, 1]} : vector<3x8x128xf32> to vector<1x8x128xf32>
      %279 = arith.mulf %277, %278 : vector<1x8x128xf32>
      %280 = vector.extract_strided_slice %270 {offsets = [1, 0, 0], sizes = [1, 8, 128], strides = [1, 1, 1]} : vector<3x8x128xf32> to vector<1x8x128xf32>
      %281 = vector.extract_strided_slice %58 {offsets = [1, 0, 0], sizes = [1, 8, 128], strides = [1, 1, 1]} : vector<3x8x128xf32> to vector<1x8x128xf32>
      %282 = arith.mulf %280, %281 : vector<1x8x128xf32>
      %283 = arith.addf %279, %282 : vector<1x8x128xf32>
      %284 = vector.extract_strided_slice %270 {offsets = [2, 0, 0], sizes = [1, 8, 128], strides = [1, 1, 1]} : vector<3x8x128xf32> to vector<1x8x128xf32>
      %285 = vector.extract_strided_slice %58 {offsets = [2, 0, 0], sizes = [1, 8, 128], strides = [1, 1, 1]} : vector<3x8x128xf32> to vector<1x8x128xf32>
      %286 = arith.mulf %284, %285 : vector<1x8x128xf32>
      %287 = arith.addf %283, %286 : vector<1x8x128xf32>
      %cst_59 = arith.constant 0.000000e+00 : f32
      %cst_60 = arith.constant 1.000000e+00 : f32
      %288 = vector.broadcast %cst_59 : f32 to vector<1x8x128xf32>
      %289 = arith.maximumf %288, %287 : vector<1x8x128xf32>
      %290 = vector.broadcast %cst_60 : f32 to vector<1x8x128xf32>
      %291 = arith.minimumf %290, %289 : vector<1x8x128xf32>
      %cst_61 = arith.constant 0.000000e+00 : f32
      %292 = vector.broadcast %cst_61 : f32 to vector<1x8x128xf32>
      %293 = arith.subf %292, %276 : vector<1x8x128xf32>
      %294 = math.exp %293 : vector<1x8x128xf32>
      %295 = arith.mulf %294, %294 : vector<1x8x128xf32>
      %cst_62 = arith.constant 1.000000e+00 : f32
      %296 = vector.broadcast %cst_62 : f32 to vector<1x8x128xf32>
      %297 = arith.divf %296, %276 : vector<1x8x128xf32>
      %cst_63 = arith.constant 2.000000e+00 : f32
      %298 = vector.broadcast %cst_63 : f32 to vector<1x8x128xf32>
      %299 = arith.mulf %298, %295 : vector<1x8x128xf32>
      %cst_64 = arith.constant 1.000000e+00 : f32
      %300 = vector.broadcast %cst_64 : f32 to vector<1x8x128xf32>
      %301 = arith.addf %300, %299 : vector<1x8x128xf32>
      %302 = arith.subf %301, %297 : vector<1x8x128xf32>
      %303 = arith.subf %294, %295 : vector<1x8x128xf32>
      %304 = arith.mulf %303, %297 : vector<1x8x128xf32>
      %305 = arith.subf %304, %295 : vector<1x8x128xf32>
      %cst_65 = arith.constant 1.000000e+00 : f32
      %306 = vector.broadcast %cst_65 : f32 to vector<1x8x128xf32>
      %307 = arith.subf %306, %302 : vector<1x8x128xf32>
      %cst_66 = arith.constant 9.99999996E-13 : f32
      %308 = vector.broadcast %cst_66 : f32 to vector<1x8x128xf32>
      %309 = arith.maximumf %307, %308 : vector<1x8x128xf32>
      %310 = math.sqrt %309 : vector<1x8x128xf32>
      %cst_67 = arith.constant 3.600000e-01 : f32
      %311 = vector.broadcast %cst_67 : f32 to vector<1x8x128xf32>
      %312 = arith.mulf %311, %291 : vector<1x8x128xf32>
      %cst_68 = arith.constant 0.694444418 : f32
      %313 = vector.broadcast %cst_68 : f32 to vector<1x8x128xf32>
      %314 = arith.mulf %313, %310 : vector<1x8x128xf32>
      %315 = arith.addf %312, %314 : vector<1x8x128xf32>
      %316 = math.absf %312 : vector<1x8x128xf32>
      %317 = arith.cmpf ole, %316, %314 : vector<1x8x128xf32>
      %cst_69 = arith.constant 9.99999997E-7 : f32
      %318 = vector.broadcast %cst_69 : f32 to vector<1x8x128xf32>
      %319 = arith.maximumf %310, %318 : vector<1x8x128xf32>
      %320 = arith.divf %315, %319 : vector<1x8x128xf32>
      %321 = arith.mulf %315, %320 : vector<1x8x128xf32>
      %322 = arith.select %317, %321, %291 : vector<1x8x128xi1>, vector<1x8x128xf32>
      %323 = arith.mulf %302, %322 : vector<1x8x128xf32>
      %324 = arith.addf %323, %305 : vector<1x8x128xf32>
      %cst_70 = arith.constant 6.28318548 : f32
      %325 = vector.broadcast %cst_70 : f32 to vector<1x8x128xf32>
      %326 = arith.mulf %325, %297 : vector<1x8x128xf32>
      %cst_71 = arith.constant 1.000000e+00 : f32
      %327 = vector.broadcast %cst_71 : f32 to vector<1x8x128xf32>
      %328 = arith.subf %327, %295 : vector<1x8x128xf32>
      %329 = arith.mulf %326, %328 : vector<1x8x128xf32>
      %330 = arith.mulf %324, %329 : vector<1x8x128xf32>
      %331 = arith.mulf %252, %33 : vector<3x8x128xf32>
      %332 = vector.broadcast %330 : vector<1x8x128xf32> to vector<3x8x128xf32>
      %333 = arith.mulf %332, %331 : vector<3x8x128xf32>
      %334 = arith.addf %249, %333 : vector<3x8x128xf32>
      %335 = vector.broadcast %276 : vector<1x8x128xf32> to vector<3x8x128xf32>
      %336 = arith.mulf %335, %270 : vector<3x8x128xf32>
      %337 = arith.addf %246, %336 : vector<3x8x128xf32>
      %338 = vector.extract_strided_slice %337 {offsets = [0, 0, 0], sizes = [1, 8, 128], strides = [1, 1, 1]} : vector<3x8x128xf32> to vector<1x8x128xf32>
      %339 = vector.extract_strided_slice %337 {offsets = [0, 0, 0], sizes = [1, 8, 128], strides = [1, 1, 1]} : vector<3x8x128xf32> to vector<1x8x128xf32>
      %340 = arith.mulf %338, %339 : vector<1x8x128xf32>
      %341 = vector.extract_strided_slice %337 {offsets = [1, 0, 0], sizes = [1, 8, 128], strides = [1, 1, 1]} : vector<3x8x128xf32> to vector<1x8x128xf32>
      %342 = vector.extract_strided_slice %337 {offsets = [1, 0, 0], sizes = [1, 8, 128], strides = [1, 1, 1]} : vector<3x8x128xf32> to vector<1x8x128xf32>
      %343 = arith.mulf %341, %342 : vector<1x8x128xf32>
      %344 = arith.addf %340, %343 : vector<1x8x128xf32>
      %345 = vector.extract_strided_slice %337 {offsets = [2, 0, 0], sizes = [1, 8, 128], strides = [1, 1, 1]} : vector<3x8x128xf32> to vector<1x8x128xf32>
      %346 = vector.extract_strided_slice %337 {offsets = [2, 0, 0], sizes = [1, 8, 128], strides = [1, 1, 1]} : vector<3x8x128xf32> to vector<1x8x128xf32>
      %347 = arith.mulf %345, %346 : vector<1x8x128xf32>
      %348 = arith.addf %344, %347 : vector<1x8x128xf32>
      %cst_72 = arith.constant 9.99999996E-13 : f32
      %349 = vector.broadcast %cst_72 : f32 to vector<1x8x128xf32>
      %350 = arith.maximumf %348, %349 : vector<1x8x128xf32>
      %351 = math.sqrt %350 : vector<1x8x128xf32>
      %cst_73 = arith.constant -2.000000e+00 : f32
      %352 = vector.broadcast %cst_73 : f32 to vector<1x8x128xf32>
      %353 = arith.mulf %352, %351 : vector<1x8x128xf32>
      %354 = math.exp %353 : vector<1x8x128xf32>
      %cst_74 = arith.constant 1.000000e+00 : f32
      %355 = vector.broadcast %cst_74 : f32 to vector<1x8x128xf32>
      %356 = arith.subf %355, %354 : vector<1x8x128xf32>
      %357 = arith.subf %351, %145 : vector<1x8x128xf32>
      %358 = arith.subf %357, %276 : vector<1x8x128xf32>
      %359 = math.exp %358 : vector<1x8x128xf32>
      %360 = arith.mulf %248, %359 : vector<1x8x128xf32>
      %361 = arith.divf %356, %351 : vector<1x8x128xf32>
      %362 = arith.mulf %360, %361 : vector<1x8x128xf32>
      %363 = vector.broadcast %362 : vector<1x8x128xf32> to vector<3x8x128xf32>
      %364 = arith.mulf %363, %252 : vector<3x8x128xf32>
      %365 = arith.mulf %364, %244 : vector<3x8x128xf32>
      %366 = arith.addf %334, %365 : vector<3x8x128xf32>
      %c7 = arith.constant 7 : index
      %367 = arith.index_cast %4 : i32 to index
      %c0_75 = arith.constant 0 : index
      %368 = vector.load %arg1[%c7, %367, %c0_75] : memref<56x16x128xf32, #tpu.memory_space<vmem>>, vector<3x8x128xf32>
      %369 = math.absf %368 : vector<3x8x128xf32>
      %c10 = arith.constant 10 : index
      %370 = arith.index_cast %4 : i32 to index
      %c0_76 = arith.constant 0 : index
      %371 = vector.load %arg1[%c10, %370, %c0_76] : memref<56x16x128xf32, #tpu.memory_space<vmem>>, vector<3x8x128xf32>
      %372 = vector.extract_strided_slice %371 {offsets = [0, 0, 0], sizes = [1, 8, 128], strides = [1, 1, 1]} : vector<3x8x128xf32> to vector<1x8x128xf32>
      %373 = vector.extract_strided_slice %371 {offsets = [0, 0, 0], sizes = [1, 8, 128], strides = [1, 1, 1]} : vector<3x8x128xf32> to vector<1x8x128xf32>
      %374 = arith.mulf %372, %373 : vector<1x8x128xf32>
      %375 = vector.extract_strided_slice %371 {offsets = [1, 0, 0], sizes = [1, 8, 128], strides = [1, 1, 1]} : vector<3x8x128xf32> to vector<1x8x128xf32>
      %376 = vector.extract_strided_slice %371 {offsets = [1, 0, 0], sizes = [1, 8, 128], strides = [1, 1, 1]} : vector<3x8x128xf32> to vector<1x8x128xf32>
      %377 = arith.mulf %375, %376 : vector<1x8x128xf32>
      %378 = arith.addf %374, %377 : vector<1x8x128xf32>
      %379 = vector.extract_strided_slice %371 {offsets = [2, 0, 0], sizes = [1, 8, 128], strides = [1, 1, 1]} : vector<3x8x128xf32> to vector<1x8x128xf32>
      %380 = vector.extract_strided_slice %371 {offsets = [2, 0, 0], sizes = [1, 8, 128], strides = [1, 1, 1]} : vector<3x8x128xf32> to vector<1x8x128xf32>
      %381 = arith.mulf %379, %380 : vector<1x8x128xf32>
      %382 = arith.addf %378, %381 : vector<1x8x128xf32>
      %cst_77 = arith.constant 9.99999996E-13 : f32
      %383 = vector.broadcast %cst_77 : f32 to vector<1x8x128xf32>
      %384 = arith.maximumf %382, %383 : vector<1x8x128xf32>
      %385 = math.rsqrt %384 : vector<1x8x128xf32>
      %386 = vector.broadcast %385 : vector<1x8x128xf32> to vector<3x8x128xf32>
      %387 = arith.mulf %371, %386 : vector<3x8x128xf32>
      %c13 = arith.constant 13 : index
      %388 = arith.index_cast %4 : i32 to index
      %c0_78 = arith.constant 0 : index
      %389 = vector.load %arg1[%c13, %388, %c0_78] : memref<56x16x128xf32, #tpu.memory_space<vmem>>, vector<1x8x128xf32>
      %cst_79 = arith.constant 5.000000e-01 : f32
      %cst_80 = arith.constant 3.000000e+01 : f32
      %390 = vector.broadcast %cst_79 : f32 to vector<1x8x128xf32>
      %391 = arith.maximumf %390, %389 : vector<1x8x128xf32>
      %392 = vector.broadcast %cst_80 : f32 to vector<1x8x128xf32>
      %393 = arith.minimumf %392, %391 : vector<1x8x128xf32>
      %394 = vector.extract_strided_slice %387 {offsets = [0, 0, 0], sizes = [1, 8, 128], strides = [1, 1, 1]} : vector<3x8x128xf32> to vector<1x8x128xf32>
      %395 = vector.extract_strided_slice %58 {offsets = [0, 0, 0], sizes = [1, 8, 128], strides = [1, 1, 1]} : vector<3x8x128xf32> to vector<1x8x128xf32>
      %396 = arith.mulf %394, %395 : vector<1x8x128xf32>
      %397 = vector.extract_strided_slice %387 {offsets = [1, 0, 0], sizes = [1, 8, 128], strides = [1, 1, 1]} : vector<3x8x128xf32> to vector<1x8x128xf32>
      %398 = vector.extract_strided_slice %58 {offsets = [1, 0, 0], sizes = [1, 8, 128], strides = [1, 1, 1]} : vector<3x8x128xf32> to vector<1x8x128xf32>
      %399 = arith.mulf %397, %398 : vector<1x8x128xf32>
      %400 = arith.addf %396, %399 : vector<1x8x128xf32>
      %401 = vector.extract_strided_slice %387 {offsets = [2, 0, 0], sizes = [1, 8, 128], strides = [1, 1, 1]} : vector<3x8x128xf32> to vector<1x8x128xf32>
      %402 = vector.extract_strided_slice %58 {offsets = [2, 0, 0], sizes = [1, 8, 128], strides = [1, 1, 1]} : vector<3x8x128xf32> to vector<1x8x128xf32>
      %403 = arith.mulf %401, %402 : vector<1x8x128xf32>
      %404 = arith.addf %400, %403 : vector<1x8x128xf32>
      %cst_81 = arith.constant 0.000000e+00 : f32
      %cst_82 = arith.constant 1.000000e+00 : f32
      %405 = vector.broadcast %cst_81 : f32 to vector<1x8x128xf32>
      %406 = arith.maximumf %405, %404 : vector<1x8x128xf32>
      %407 = vector.broadcast %cst_82 : f32 to vector<1x8x128xf32>
      %408 = arith.minimumf %407, %406 : vector<1x8x128xf32>
      %cst_83 = arith.constant 0.000000e+00 : f32
      %409 = vector.broadcast %cst_83 : f32 to vector<1x8x128xf32>
      %410 = arith.subf %409, %393 : vector<1x8x128xf32>
      %411 = math.exp %410 : vector<1x8x128xf32>
      %412 = arith.mulf %411, %411 : vector<1x8x128xf32>
      %cst_84 = arith.constant 1.000000e+00 : f32
      %413 = vector.broadcast %cst_84 : f32 to vector<1x8x128xf32>
      %414 = arith.divf %413, %393 : vector<1x8x128xf32>
      %cst_85 = arith.constant 2.000000e+00 : f32
      %415 = vector.broadcast %cst_85 : f32 to vector<1x8x128xf32>
      %416 = arith.mulf %415, %412 : vector<1x8x128xf32>
      %cst_86 = arith.constant 1.000000e+00 : f32
      %417 = vector.broadcast %cst_86 : f32 to vector<1x8x128xf32>
      %418 = arith.addf %417, %416 : vector<1x8x128xf32>
      %419 = arith.subf %418, %414 : vector<1x8x128xf32>
      %420 = arith.subf %411, %412 : vector<1x8x128xf32>
      %421 = arith.mulf %420, %414 : vector<1x8x128xf32>
      %422 = arith.subf %421, %412 : vector<1x8x128xf32>
      %cst_87 = arith.constant 1.000000e+00 : f32
      %423 = vector.broadcast %cst_87 : f32 to vector<1x8x128xf32>
      %424 = arith.subf %423, %419 : vector<1x8x128xf32>
      %cst_88 = arith.constant 9.99999996E-13 : f32
      %425 = vector.broadcast %cst_88 : f32 to vector<1x8x128xf32>
      %426 = arith.maximumf %424, %425 : vector<1x8x128xf32>
      %427 = math.sqrt %426 : vector<1x8x128xf32>
      %cst_89 = arith.constant 3.600000e-01 : f32
      %428 = vector.broadcast %cst_89 : f32 to vector<1x8x128xf32>
      %429 = arith.mulf %428, %408 : vector<1x8x128xf32>
      %cst_90 = arith.constant 0.694444418 : f32
      %430 = vector.broadcast %cst_90 : f32 to vector<1x8x128xf32>
      %431 = arith.mulf %430, %427 : vector<1x8x128xf32>
      %432 = arith.addf %429, %431 : vector<1x8x128xf32>
      %433 = math.absf %429 : vector<1x8x128xf32>
      %434 = arith.cmpf ole, %433, %431 : vector<1x8x128xf32>
      %cst_91 = arith.constant 9.99999997E-7 : f32
      %435 = vector.broadcast %cst_91 : f32 to vector<1x8x128xf32>
      %436 = arith.maximumf %427, %435 : vector<1x8x128xf32>
      %437 = arith.divf %432, %436 : vector<1x8x128xf32>
      %438 = arith.mulf %432, %437 : vector<1x8x128xf32>
      %439 = arith.select %434, %438, %408 : vector<1x8x128xi1>, vector<1x8x128xf32>
      %440 = arith.mulf %419, %439 : vector<1x8x128xf32>
      %441 = arith.addf %440, %422 : vector<1x8x128xf32>
      %cst_92 = arith.constant 6.28318548 : f32
      %442 = vector.broadcast %cst_92 : f32 to vector<1x8x128xf32>
      %443 = arith.mulf %442, %414 : vector<1x8x128xf32>
      %cst_93 = arith.constant 1.000000e+00 : f32
      %444 = vector.broadcast %cst_93 : f32 to vector<1x8x128xf32>
      %445 = arith.subf %444, %412 : vector<1x8x128xf32>
      %446 = arith.mulf %443, %445 : vector<1x8x128xf32>
      %447 = arith.mulf %441, %446 : vector<1x8x128xf32>
      %448 = arith.mulf %369, %33 : vector<3x8x128xf32>
      %449 = vector.broadcast %447 : vector<1x8x128xf32> to vector<3x8x128xf32>
      %450 = arith.mulf %449, %448 : vector<3x8x128xf32>
      %451 = arith.addf %366, %450 : vector<3x8x128xf32>
      %452 = vector.broadcast %393 : vector<1x8x128xf32> to vector<3x8x128xf32>
      %453 = arith.mulf %452, %387 : vector<3x8x128xf32>
      %454 = arith.addf %246, %453 : vector<3x8x128xf32>
      %455 = vector.extract_strided_slice %454 {offsets = [0, 0, 0], sizes = [1, 8, 128], strides = [1, 1, 1]} : vector<3x8x128xf32> to vector<1x8x128xf32>
      %456 = vector.extract_strided_slice %454 {offsets = [0, 0, 0], sizes = [1, 8, 128], strides = [1, 1, 1]} : vector<3x8x128xf32> to vector<1x8x128xf32>
      %457 = arith.mulf %455, %456 : vector<1x8x128xf32>
      %458 = vector.extract_strided_slice %454 {offsets = [1, 0, 0], sizes = [1, 8, 128], strides = [1, 1, 1]} : vector<3x8x128xf32> to vector<1x8x128xf32>
      %459 = vector.extract_strided_slice %454 {offsets = [1, 0, 0], sizes = [1, 8, 128], strides = [1, 1, 1]} : vector<3x8x128xf32> to vector<1x8x128xf32>
      %460 = arith.mulf %458, %459 : vector<1x8x128xf32>
      %461 = arith.addf %457, %460 : vector<1x8x128xf32>
      %462 = vector.extract_strided_slice %454 {offsets = [2, 0, 0], sizes = [1, 8, 128], strides = [1, 1, 1]} : vector<3x8x128xf32> to vector<1x8x128xf32>
      %463 = vector.extract_strided_slice %454 {offsets = [2, 0, 0], sizes = [1, 8, 128], strides = [1, 1, 1]} : vector<3x8x128xf32> to vector<1x8x128xf32>
      %464 = arith.mulf %462, %463 : vector<1x8x128xf32>
      %465 = arith.addf %461, %464 : vector<1x8x128xf32>
      %cst_94 = arith.constant 9.99999996E-13 : f32
      %466 = vector.broadcast %cst_94 : f32 to vector<1x8x128xf32>
      %467 = arith.maximumf %465, %466 : vector<1x8x128xf32>
      %468 = math.sqrt %467 : vector<1x8x128xf32>
      %cst_95 = arith.constant -2.000000e+00 : f32
      %469 = vector.broadcast %cst_95 : f32 to vector<1x8x128xf32>
      %470 = arith.mulf %469, %468 : vector<1x8x128xf32>
      %471 = math.exp %470 : vector<1x8x128xf32>
      %cst_96 = arith.constant 1.000000e+00 : f32
      %472 = vector.broadcast %cst_96 : f32 to vector<1x8x128xf32>
      %473 = arith.subf %472, %471 : vector<1x8x128xf32>
      %474 = arith.subf %468, %145 : vector<1x8x128xf32>
      %475 = arith.subf %474, %393 : vector<1x8x128xf32>
      %476 = math.exp %475 : vector<1x8x128xf32>
      %477 = arith.mulf %248, %476 : vector<1x8x128xf32>
      %478 = arith.divf %473, %468 : vector<1x8x128xf32>
      %479 = arith.mulf %477, %478 : vector<1x8x128xf32>
      %480 = vector.broadcast %479 : vector<1x8x128xf32> to vector<3x8x128xf32>
      %481 = arith.mulf %480, %369 : vector<3x8x128xf32>
      %482 = arith.mulf %481, %244 : vector<3x8x128xf32>
      %483 = arith.addf %451, %482 : vector<3x8x128xf32>
      %c14 = arith.constant 14 : index
      %484 = arith.index_cast %4 : i32 to index
      %c0_97 = arith.constant 0 : index
      %485 = vector.load %arg1[%c14, %484, %c0_97] : memref<56x16x128xf32, #tpu.memory_space<vmem>>, vector<3x8x128xf32>
      %486 = math.absf %485 : vector<3x8x128xf32>
      %c17 = arith.constant 17 : index
      %487 = arith.index_cast %4 : i32 to index
      %c0_98 = arith.constant 0 : index
      %488 = vector.load %arg1[%c17, %487, %c0_98] : memref<56x16x128xf32, #tpu.memory_space<vmem>>, vector<3x8x128xf32>
      %489 = vector.extract_strided_slice %488 {offsets = [0, 0, 0], sizes = [1, 8, 128], strides = [1, 1, 1]} : vector<3x8x128xf32> to vector<1x8x128xf32>
      %490 = vector.extract_strided_slice %488 {offsets = [0, 0, 0], sizes = [1, 8, 128], strides = [1, 1, 1]} : vector<3x8x128xf32> to vector<1x8x128xf32>
      %491 = arith.mulf %489, %490 : vector<1x8x128xf32>
      %492 = vector.extract_strided_slice %488 {offsets = [1, 0, 0], sizes = [1, 8, 128], strides = [1, 1, 1]} : vector<3x8x128xf32> to vector<1x8x128xf32>
      %493 = vector.extract_strided_slice %488 {offsets = [1, 0, 0], sizes = [1, 8, 128], strides = [1, 1, 1]} : vector<3x8x128xf32> to vector<1x8x128xf32>
      %494 = arith.mulf %492, %493 : vector<1x8x128xf32>
      %495 = arith.addf %491, %494 : vector<1x8x128xf32>
      %496 = vector.extract_strided_slice %488 {offsets = [2, 0, 0], sizes = [1, 8, 128], strides = [1, 1, 1]} : vector<3x8x128xf32> to vector<1x8x128xf32>
      %497 = vector.extract_strided_slice %488 {offsets = [2, 0, 0], sizes = [1, 8, 128], strides = [1, 1, 1]} : vector<3x8x128xf32> to vector<1x8x128xf32>
      %498 = arith.mulf %496, %497 : vector<1x8x128xf32>
      %499 = arith.addf %495, %498 : vector<1x8x128xf32>
      %cst_99 = arith.constant 9.99999996E-13 : f32
      %500 = vector.broadcast %cst_99 : f32 to vector<1x8x128xf32>
      %501 = arith.maximumf %499, %500 : vector<1x8x128xf32>
      %502 = math.rsqrt %501 : vector<1x8x128xf32>
      %503 = vector.broadcast %502 : vector<1x8x128xf32> to vector<3x8x128xf32>
      %504 = arith.mulf %488, %503 : vector<3x8x128xf32>
      %c20 = arith.constant 20 : index
      %505 = arith.index_cast %4 : i32 to index
      %c0_100 = arith.constant 0 : index
      %506 = vector.load %arg1[%c20, %505, %c0_100] : memref<56x16x128xf32, #tpu.memory_space<vmem>>, vector<1x8x128xf32>
      %cst_101 = arith.constant 5.000000e-01 : f32
      %cst_102 = arith.constant 3.000000e+01 : f32
      %507 = vector.broadcast %cst_101 : f32 to vector<1x8x128xf32>
      %508 = arith.maximumf %507, %506 : vector<1x8x128xf32>
      %509 = vector.broadcast %cst_102 : f32 to vector<1x8x128xf32>
      %510 = arith.minimumf %509, %508 : vector<1x8x128xf32>
      %511 = vector.extract_strided_slice %504 {offsets = [0, 0, 0], sizes = [1, 8, 128], strides = [1, 1, 1]} : vector<3x8x128xf32> to vector<1x8x128xf32>
      %512 = vector.extract_strided_slice %58 {offsets = [0, 0, 0], sizes = [1, 8, 128], strides = [1, 1, 1]} : vector<3x8x128xf32> to vector<1x8x128xf32>
      %513 = arith.mulf %511, %512 : vector<1x8x128xf32>
      %514 = vector.extract_strided_slice %504 {offsets = [1, 0, 0], sizes = [1, 8, 128], strides = [1, 1, 1]} : vector<3x8x128xf32> to vector<1x8x128xf32>
      %515 = vector.extract_strided_slice %58 {offsets = [1, 0, 0], sizes = [1, 8, 128], strides = [1, 1, 1]} : vector<3x8x128xf32> to vector<1x8x128xf32>
      %516 = arith.mulf %514, %515 : vector<1x8x128xf32>
      %517 = arith.addf %513, %516 : vector<1x8x128xf32>
      %518 = vector.extract_strided_slice %504 {offsets = [2, 0, 0], sizes = [1, 8, 128], strides = [1, 1, 1]} : vector<3x8x128xf32> to vector<1x8x128xf32>
      %519 = vector.extract_strided_slice %58 {offsets = [2, 0, 0], sizes = [1, 8, 128], strides = [1, 1, 1]} : vector<3x8x128xf32> to vector<1x8x128xf32>
      %520 = arith.mulf %518, %519 : vector<1x8x128xf32>
      %521 = arith.addf %517, %520 : vector<1x8x128xf32>
      %cst_103 = arith.constant 0.000000e+00 : f32
      %cst_104 = arith.constant 1.000000e+00 : f32
      %522 = vector.broadcast %cst_103 : f32 to vector<1x8x128xf32>
      %523 = arith.maximumf %522, %521 : vector<1x8x128xf32>
      %524 = vector.broadcast %cst_104 : f32 to vector<1x8x128xf32>
      %525 = arith.minimumf %524, %523 : vector<1x8x128xf32>
      %cst_105 = arith.constant 0.000000e+00 : f32
      %526 = vector.broadcast %cst_105 : f32 to vector<1x8x128xf32>
      %527 = arith.subf %526, %510 : vector<1x8x128xf32>
      %528 = math.exp %527 : vector<1x8x128xf32>
      %529 = arith.mulf %528, %528 : vector<1x8x128xf32>
      %cst_106 = arith.constant 1.000000e+00 : f32
      %530 = vector.broadcast %cst_106 : f32 to vector<1x8x128xf32>
      %531 = arith.divf %530, %510 : vector<1x8x128xf32>
      %cst_107 = arith.constant 2.000000e+00 : f32
      %532 = vector.broadcast %cst_107 : f32 to vector<1x8x128xf32>
      %533 = arith.mulf %532, %529 : vector<1x8x128xf32>
      %cst_108 = arith.constant 1.000000e+00 : f32
      %534 = vector.broadcast %cst_108 : f32 to vector<1x8x128xf32>
      %535 = arith.addf %534, %533 : vector<1x8x128xf32>
      %536 = arith.subf %535, %531 : vector<1x8x128xf32>
      %537 = arith.subf %528, %529 : vector<1x8x128xf32>
      %538 = arith.mulf %537, %531 : vector<1x8x128xf32>
      %539 = arith.subf %538, %529 : vector<1x8x128xf32>
      %cst_109 = arith.constant 1.000000e+00 : f32
      %540 = vector.broadcast %cst_109 : f32 to vector<1x8x128xf32>
      %541 = arith.subf %540, %536 : vector<1x8x128xf32>
      %cst_110 = arith.constant 9.99999996E-13 : f32
      %542 = vector.broadcast %cst_110 : f32 to vector<1x8x128xf32>
      %543 = arith.maximumf %541, %542 : vector<1x8x128xf32>
      %544 = math.sqrt %543 : vector<1x8x128xf32>
      %cst_111 = arith.constant 3.600000e-01 : f32
      %545 = vector.broadcast %cst_111 : f32 to vector<1x8x128xf32>
      %546 = arith.mulf %545, %525 : vector<1x8x128xf32>
      %cst_112 = arith.constant 0.694444418 : f32
      %547 = vector.broadcast %cst_112 : f32 to vector<1x8x128xf32>
      %548 = arith.mulf %547, %544 : vector<1x8x128xf32>
      %549 = arith.addf %546, %548 : vector<1x8x128xf32>
      %550 = math.absf %546 : vector<1x8x128xf32>
      %551 = arith.cmpf ole, %550, %548 : vector<1x8x128xf32>
      %cst_113 = arith.constant 9.99999997E-7 : f32
      %552 = vector.broadcast %cst_113 : f32 to vector<1x8x128xf32>
      %553 = arith.maximumf %544, %552 : vector<1x8x128xf32>
      %554 = arith.divf %549, %553 : vector<1x8x128xf32>
      %555 = arith.mulf %549, %554 : vector<1x8x128xf32>
      %556 = arith.select %551, %555, %525 : vector<1x8x128xi1>, vector<1x8x128xf32>
      %557 = arith.mulf %536, %556 : vector<1x8x128xf32>
      %558 = arith.addf %557, %539 : vector<1x8x128xf32>
      %cst_114 = arith.constant 6.28318548 : f32
      %559 = vector.broadcast %cst_114 : f32 to vector<1x8x128xf32>
      %560 = arith.mulf %559, %531 : vector<1x8x128xf32>
      %cst_115 = arith.constant 1.000000e+00 : f32
      %561 = vector.broadcast %cst_115 : f32 to vector<1x8x128xf32>
      %562 = arith.subf %561, %529 : vector<1x8x128xf32>
      %563 = arith.mulf %560, %562 : vector<1x8x128xf32>
      %564 = arith.mulf %558, %563 : vector<1x8x128xf32>
      %565 = arith.mulf %486, %33 : vector<3x8x128xf32>
      %566 = vector.broadcast %564 : vector<1x8x128xf32> to vector<3x8x128xf32>
      %567 = arith.mulf %566, %565 : vector<3x8x128xf32>
      %568 = arith.addf %483, %567 : vector<3x8x128xf32>
      %569 = vector.broadcast %510 : vector<1x8x128xf32> to vector<3x8x128xf32>
      %570 = arith.mulf %569, %504 : vector<3x8x128xf32>
      %571 = arith.addf %246, %570 : vector<3x8x128xf32>
      %572 = vector.extract_strided_slice %571 {offsets = [0, 0, 0], sizes = [1, 8, 128], strides = [1, 1, 1]} : vector<3x8x128xf32> to vector<1x8x128xf32>
      %573 = vector.extract_strided_slice %571 {offsets = [0, 0, 0], sizes = [1, 8, 128], strides = [1, 1, 1]} : vector<3x8x128xf32> to vector<1x8x128xf32>
      %574 = arith.mulf %572, %573 : vector<1x8x128xf32>
      %575 = vector.extract_strided_slice %571 {offsets = [1, 0, 0], sizes = [1, 8, 128], strides = [1, 1, 1]} : vector<3x8x128xf32> to vector<1x8x128xf32>
      %576 = vector.extract_strided_slice %571 {offsets = [1, 0, 0], sizes = [1, 8, 128], strides = [1, 1, 1]} : vector<3x8x128xf32> to vector<1x8x128xf32>
      %577 = arith.mulf %575, %576 : vector<1x8x128xf32>
      %578 = arith.addf %574, %577 : vector<1x8x128xf32>
      %579 = vector.extract_strided_slice %571 {offsets = [2, 0, 0], sizes = [1, 8, 128], strides = [1, 1, 1]} : vector<3x8x128xf32> to vector<1x8x128xf32>
      %580 = vector.extract_strided_slice %571 {offsets = [2, 0, 0], sizes = [1, 8, 128], strides = [1, 1, 1]} : vector<3x8x128xf32> to vector<1x8x128xf32>
      %581 = arith.mulf %579, %580 : vector<1x8x128xf32>
      %582 = arith.addf %578, %581 : vector<1x8x128xf32>
      %cst_116 = arith.constant 9.99999996E-13 : f32
      %583 = vector.broadcast %cst_116 : f32 to vector<1x8x128xf32>
      %584 = arith.maximumf %582, %583 : vector<1x8x128xf32>
      %585 = math.sqrt %584 : vector<1x8x128xf32>
      %cst_117 = arith.constant -2.000000e+00 : f32
      %586 = vector.broadcast %cst_117 : f32 to vector<1x8x128xf32>
      %587 = arith.mulf %586, %585 : vector<1x8x128xf32>
      %588 = math.exp %587 : vector<1x8x128xf32>
      %cst_118 = arith.constant 1.000000e+00 : f32
      %589 = vector.broadcast %cst_118 : f32 to vector<1x8x128xf32>
      %590 = arith.subf %589, %588 : vector<1x8x128xf32>
      %591 = arith.subf %585, %145 : vector<1x8x128xf32>
      %592 = arith.subf %591, %510 : vector<1x8x128xf32>
      %593 = math.exp %592 : vector<1x8x128xf32>
      %594 = arith.mulf %248, %593 : vector<1x8x128xf32>
      %595 = arith.divf %590, %585 : vector<1x8x128xf32>
      %596 = arith.mulf %594, %595 : vector<1x8x128xf32>
      %597 = vector.broadcast %596 : vector<1x8x128xf32> to vector<3x8x128xf32>
      %598 = arith.mulf %597, %486 : vector<3x8x128xf32>
      %599 = arith.mulf %598, %244 : vector<3x8x128xf32>
      %600 = arith.addf %568, %599 : vector<3x8x128xf32>
      %c21 = arith.constant 21 : index
      %601 = arith.index_cast %4 : i32 to index
      %c0_119 = arith.constant 0 : index
      %602 = vector.load %arg1[%c21, %601, %c0_119] : memref<56x16x128xf32, #tpu.memory_space<vmem>>, vector<3x8x128xf32>
      %603 = math.absf %602 : vector<3x8x128xf32>
      %c24 = arith.constant 24 : index
      %604 = arith.index_cast %4 : i32 to index
      %c0_120 = arith.constant 0 : index
      %605 = vector.load %arg1[%c24, %604, %c0_120] : memref<56x16x128xf32, #tpu.memory_space<vmem>>, vector<3x8x128xf32>
      %606 = vector.extract_strided_slice %605 {offsets = [0, 0, 0], sizes = [1, 8, 128], strides = [1, 1, 1]} : vector<3x8x128xf32> to vector<1x8x128xf32>
      %607 = vector.extract_strided_slice %605 {offsets = [0, 0, 0], sizes = [1, 8, 128], strides = [1, 1, 1]} : vector<3x8x128xf32> to vector<1x8x128xf32>
      %608 = arith.mulf %606, %607 : vector<1x8x128xf32>
      %609 = vector.extract_strided_slice %605 {offsets = [1, 0, 0], sizes = [1, 8, 128], strides = [1, 1, 1]} : vector<3x8x128xf32> to vector<1x8x128xf32>
      %610 = vector.extract_strided_slice %605 {offsets = [1, 0, 0], sizes = [1, 8, 128], strides = [1, 1, 1]} : vector<3x8x128xf32> to vector<1x8x128xf32>
      %611 = arith.mulf %609, %610 : vector<1x8x128xf32>
      %612 = arith.addf %608, %611 : vector<1x8x128xf32>
      %613 = vector.extract_strided_slice %605 {offsets = [2, 0, 0], sizes = [1, 8, 128], strides = [1, 1, 1]} : vector<3x8x128xf32> to vector<1x8x128xf32>
      %614 = vector.extract_strided_slice %605 {offsets = [2, 0, 0], sizes = [1, 8, 128], strides = [1, 1, 1]} : vector<3x8x128xf32> to vector<1x8x128xf32>
      %615 = arith.mulf %613, %614 : vector<1x8x128xf32>
      %616 = arith.addf %612, %615 : vector<1x8x128xf32>
      %cst_121 = arith.constant 9.99999996E-13 : f32
      %617 = vector.broadcast %cst_121 : f32 to vector<1x8x128xf32>
      %618 = arith.maximumf %616, %617 : vector<1x8x128xf32>
      %619 = math.rsqrt %618 : vector<1x8x128xf32>
      %620 = vector.broadcast %619 : vector<1x8x128xf32> to vector<3x8x128xf32>
      %621 = arith.mulf %605, %620 : vector<3x8x128xf32>
      %c27 = arith.constant 27 : index
      %622 = arith.index_cast %4 : i32 to index
      %c0_122 = arith.constant 0 : index
      %623 = vector.load %arg1[%c27, %622, %c0_122] : memref<56x16x128xf32, #tpu.memory_space<vmem>>, vector<1x8x128xf32>
      %cst_123 = arith.constant 5.000000e-01 : f32
      %cst_124 = arith.constant 3.000000e+01 : f32
      %624 = vector.broadcast %cst_123 : f32 to vector<1x8x128xf32>
      %625 = arith.maximumf %624, %623 : vector<1x8x128xf32>
      %626 = vector.broadcast %cst_124 : f32 to vector<1x8x128xf32>
      %627 = arith.minimumf %626, %625 : vector<1x8x128xf32>
      %628 = vector.extract_strided_slice %621 {offsets = [0, 0, 0], sizes = [1, 8, 128], strides = [1, 1, 1]} : vector<3x8x128xf32> to vector<1x8x128xf32>
      %629 = vector.extract_strided_slice %58 {offsets = [0, 0, 0], sizes = [1, 8, 128], strides = [1, 1, 1]} : vector<3x8x128xf32> to vector<1x8x128xf32>
      %630 = arith.mulf %628, %629 : vector<1x8x128xf32>
      %631 = vector.extract_strided_slice %621 {offsets = [1, 0, 0], sizes = [1, 8, 128], strides = [1, 1, 1]} : vector<3x8x128xf32> to vector<1x8x128xf32>
      %632 = vector.extract_strided_slice %58 {offsets = [1, 0, 0], sizes = [1, 8, 128], strides = [1, 1, 1]} : vector<3x8x128xf32> to vector<1x8x128xf32>
      %633 = arith.mulf %631, %632 : vector<1x8x128xf32>
      %634 = arith.addf %630, %633 : vector<1x8x128xf32>
      %635 = vector.extract_strided_slice %621 {offsets = [2, 0, 0], sizes = [1, 8, 128], strides = [1, 1, 1]} : vector<3x8x128xf32> to vector<1x8x128xf32>
      %636 = vector.extract_strided_slice %58 {offsets = [2, 0, 0], sizes = [1, 8, 128], strides = [1, 1, 1]} : vector<3x8x128xf32> to vector<1x8x128xf32>
      %637 = arith.mulf %635, %636 : vector<1x8x128xf32>
      %638 = arith.addf %634, %637 : vector<1x8x128xf32>
      %cst_125 = arith.constant 0.000000e+00 : f32
      %cst_126 = arith.constant 1.000000e+00 : f32
      %639 = vector.broadcast %cst_125 : f32 to vector<1x8x128xf32>
      %640 = arith.maximumf %639, %638 : vector<1x8x128xf32>
      %641 = vector.broadcast %cst_126 : f32 to vector<1x8x128xf32>
      %642 = arith.minimumf %641, %640 : vector<1x8x128xf32>
      %cst_127 = arith.constant 0.000000e+00 : f32
      %643 = vector.broadcast %cst_127 : f32 to vector<1x8x128xf32>
      %644 = arith.subf %643, %627 : vector<1x8x128xf32>
      %645 = math.exp %644 : vector<1x8x128xf32>
      %646 = arith.mulf %645, %645 : vector<1x8x128xf32>
      %cst_128 = arith.constant 1.000000e+00 : f32
      %647 = vector.broadcast %cst_128 : f32 to vector<1x8x128xf32>
      %648 = arith.divf %647, %627 : vector<1x8x128xf32>
      %cst_129 = arith.constant 2.000000e+00 : f32
      %649 = vector.broadcast %cst_129 : f32 to vector<1x8x128xf32>
      %650 = arith.mulf %649, %646 : vector<1x8x128xf32>
      %cst_130 = arith.constant 1.000000e+00 : f32
      %651 = vector.broadcast %cst_130 : f32 to vector<1x8x128xf32>
      %652 = arith.addf %651, %650 : vector<1x8x128xf32>
      %653 = arith.subf %652, %648 : vector<1x8x128xf32>
      %654 = arith.subf %645, %646 : vector<1x8x128xf32>
      %655 = arith.mulf %654, %648 : vector<1x8x128xf32>
      %656 = arith.subf %655, %646 : vector<1x8x128xf32>
      %cst_131 = arith.constant 1.000000e+00 : f32
      %657 = vector.broadcast %cst_131 : f32 to vector<1x8x128xf32>
      %658 = arith.subf %657, %653 : vector<1x8x128xf32>
      %cst_132 = arith.constant 9.99999996E-13 : f32
      %659 = vector.broadcast %cst_132 : f32 to vector<1x8x128xf32>
      %660 = arith.maximumf %658, %659 : vector<1x8x128xf32>
      %661 = math.sqrt %660 : vector<1x8x128xf32>
      %cst_133 = arith.constant 3.600000e-01 : f32
      %662 = vector.broadcast %cst_133 : f32 to vector<1x8x128xf32>
      %663 = arith.mulf %662, %642 : vector<1x8x128xf32>
      %cst_134 = arith.constant 0.694444418 : f32
      %664 = vector.broadcast %cst_134 : f32 to vector<1x8x128xf32>
      %665 = arith.mulf %664, %661 : vector<1x8x128xf32>
      %666 = arith.addf %663, %665 : vector<1x8x128xf32>
      %667 = math.absf %663 : vector<1x8x128xf32>
      %668 = arith.cmpf ole, %667, %665 : vector<1x8x128xf32>
      %cst_135 = arith.constant 9.99999997E-7 : f32
      %669 = vector.broadcast %cst_135 : f32 to vector<1x8x128xf32>
      %670 = arith.maximumf %661, %669 : vector<1x8x128xf32>
      %671 = arith.divf %666, %670 : vector<1x8x128xf32>
      %672 = arith.mulf %666, %671 : vector<1x8x128xf32>
      %673 = arith.select %668, %672, %642 : vector<1x8x128xi1>, vector<1x8x128xf32>
      %674 = arith.mulf %653, %673 : vector<1x8x128xf32>
      %675 = arith.addf %674, %656 : vector<1x8x128xf32>
      %cst_136 = arith.constant 6.28318548 : f32
      %676 = vector.broadcast %cst_136 : f32 to vector<1x8x128xf32>
      %677 = arith.mulf %676, %648 : vector<1x8x128xf32>
      %cst_137 = arith.constant 1.000000e+00 : f32
      %678 = vector.broadcast %cst_137 : f32 to vector<1x8x128xf32>
      %679 = arith.subf %678, %646 : vector<1x8x128xf32>
      %680 = arith.mulf %677, %679 : vector<1x8x128xf32>
      %681 = arith.mulf %675, %680 : vector<1x8x128xf32>
      %682 = arith.mulf %603, %33 : vector<3x8x128xf32>
      %683 = vector.broadcast %681 : vector<1x8x128xf32> to vector<3x8x128xf32>
      %684 = arith.mulf %683, %682 : vector<3x8x128xf32>
      %685 = arith.addf %600, %684 : vector<3x8x128xf32>
      %686 = vector.broadcast %627 : vector<1x8x128xf32> to vector<3x8x128xf32>
      %687 = arith.mulf %686, %621 : vector<3x8x128xf32>
      %688 = arith.addf %246, %687 : vector<3x8x128xf32>
      %689 = vector.extract_strided_slice %688 {offsets = [0, 0, 0], sizes = [1, 8, 128], strides = [1, 1, 1]} : vector<3x8x128xf32> to vector<1x8x128xf32>
      %690 = vector.extract_strided_slice %688 {offsets = [0, 0, 0], sizes = [1, 8, 128], strides = [1, 1, 1]} : vector<3x8x128xf32> to vector<1x8x128xf32>
      %691 = arith.mulf %689, %690 : vector<1x8x128xf32>
      %692 = vector.extract_strided_slice %688 {offsets = [1, 0, 0], sizes = [1, 8, 128], strides = [1, 1, 1]} : vector<3x8x128xf32> to vector<1x8x128xf32>
      %693 = vector.extract_strided_slice %688 {offsets = [1, 0, 0], sizes = [1, 8, 128], strides = [1, 1, 1]} : vector<3x8x128xf32> to vector<1x8x128xf32>
      %694 = arith.mulf %692, %693 : vector<1x8x128xf32>
      %695 = arith.addf %691, %694 : vector<1x8x128xf32>
      %696 = vector.extract_strided_slice %688 {offsets = [2, 0, 0], sizes = [1, 8, 128], strides = [1, 1, 1]} : vector<3x8x128xf32> to vector<1x8x128xf32>
      %697 = vector.extract_strided_slice %688 {offsets = [2, 0, 0], sizes = [1, 8, 128], strides = [1, 1, 1]} : vector<3x8x128xf32> to vector<1x8x128xf32>
      %698 = arith.mulf %696, %697 : vector<1x8x128xf32>
      %699 = arith.addf %695, %698 : vector<1x8x128xf32>
      %cst_138 = arith.constant 9.99999996E-13 : f32
      %700 = vector.broadcast %cst_138 : f32 to vector<1x8x128xf32>
      %701 = arith.maximumf %699, %700 : vector<1x8x128xf32>
      %702 = math.sqrt %701 : vector<1x8x128xf32>
      %cst_139 = arith.constant -2.000000e+00 : f32
      %703 = vector.broadcast %cst_139 : f32 to vector<1x8x128xf32>
      %704 = arith.mulf %703, %702 : vector<1x8x128xf32>
      %705 = math.exp %704 : vector<1x8x128xf32>
      %cst_140 = arith.constant 1.000000e+00 : f32
      %706 = vector.broadcast %cst_140 : f32 to vector<1x8x128xf32>
      %707 = arith.subf %706, %705 : vector<1x8x128xf32>
      %708 = arith.subf %702, %145 : vector<1x8x128xf32>
      %709 = arith.subf %708, %627 : vector<1x8x128xf32>
      %710 = math.exp %709 : vector<1x8x128xf32>
      %711 = arith.mulf %248, %710 : vector<1x8x128xf32>
      %712 = arith.divf %707, %702 : vector<1x8x128xf32>
      %713 = arith.mulf %711, %712 : vector<1x8x128xf32>
      %714 = vector.broadcast %713 : vector<1x8x128xf32> to vector<3x8x128xf32>
      %715 = arith.mulf %714, %603 : vector<3x8x128xf32>
      %716 = arith.mulf %715, %244 : vector<3x8x128xf32>
      %717 = arith.addf %685, %716 : vector<3x8x128xf32>
      %c28 = arith.constant 28 : index
      %718 = arith.index_cast %4 : i32 to index
      %c0_141 = arith.constant 0 : index
      %719 = vector.load %arg1[%c28, %718, %c0_141] : memref<56x16x128xf32, #tpu.memory_space<vmem>>, vector<3x8x128xf32>
      %720 = math.absf %719 : vector<3x8x128xf32>
      %c31 = arith.constant 31 : index
      %721 = arith.index_cast %4 : i32 to index
      %c0_142 = arith.constant 0 : index
      %722 = vector.load %arg1[%c31, %721, %c0_142] : memref<56x16x128xf32, #tpu.memory_space<vmem>>, vector<3x8x128xf32>
      %723 = vector.extract_strided_slice %722 {offsets = [0, 0, 0], sizes = [1, 8, 128], strides = [1, 1, 1]} : vector<3x8x128xf32> to vector<1x8x128xf32>
      %724 = vector.extract_strided_slice %722 {offsets = [0, 0, 0], sizes = [1, 8, 128], strides = [1, 1, 1]} : vector<3x8x128xf32> to vector<1x8x128xf32>
      %725 = arith.mulf %723, %724 : vector<1x8x128xf32>
      %726 = vector.extract_strided_slice %722 {offsets = [1, 0, 0], sizes = [1, 8, 128], strides = [1, 1, 1]} : vector<3x8x128xf32> to vector<1x8x128xf32>
      %727 = vector.extract_strided_slice %722 {offsets = [1, 0, 0], sizes = [1, 8, 128], strides = [1, 1, 1]} : vector<3x8x128xf32> to vector<1x8x128xf32>
      %728 = arith.mulf %726, %727 : vector<1x8x128xf32>
      %729 = arith.addf %725, %728 : vector<1x8x128xf32>
      %730 = vector.extract_strided_slice %722 {offsets = [2, 0, 0], sizes = [1, 8, 128], strides = [1, 1, 1]} : vector<3x8x128xf32> to vector<1x8x128xf32>
      %731 = vector.extract_strided_slice %722 {offsets = [2, 0, 0], sizes = [1, 8, 128], strides = [1, 1, 1]} : vector<3x8x128xf32> to vector<1x8x128xf32>
      %732 = arith.mulf %730, %731 : vector<1x8x128xf32>
      %733 = arith.addf %729, %732 : vector<1x8x128xf32>
      %cst_143 = arith.constant 9.99999996E-13 : f32
      %734 = vector.broadcast %cst_143 : f32 to vector<1x8x128xf32>
      %735 = arith.maximumf %733, %734 : vector<1x8x128xf32>
      %736 = math.rsqrt %735 : vector<1x8x128xf32>
      %737 = vector.broadcast %736 : vector<1x8x128xf32> to vector<3x8x128xf32>
      %738 = arith.mulf %722, %737 : vector<3x8x128xf32>
      %c34 = arith.constant 34 : index
      %739 = arith.index_cast %4 : i32 to index
      %c0_144 = arith.constant 0 : index
      %740 = vector.load %arg1[%c34, %739, %c0_144] : memref<56x16x128xf32, #tpu.memory_space<vmem>>, vector<1x8x128xf32>
      %cst_145 = arith.constant 5.000000e-01 : f32
      %cst_146 = arith.constant 3.000000e+01 : f32
      %741 = vector.broadcast %cst_145 : f32 to vector<1x8x128xf32>
      %742 = arith.maximumf %741, %740 : vector<1x8x128xf32>
      %743 = vector.broadcast %cst_146 : f32 to vector<1x8x128xf32>
      %744 = arith.minimumf %743, %742 : vector<1x8x128xf32>
      %745 = vector.extract_strided_slice %738 {offsets = [0, 0, 0], sizes = [1, 8, 128], strides = [1, 1, 1]} : vector<3x8x128xf32> to vector<1x8x128xf32>
      %746 = vector.extract_strided_slice %58 {offsets = [0, 0, 0], sizes = [1, 8, 128], strides = [1, 1, 1]} : vector<3x8x128xf32> to vector<1x8x128xf32>
      %747 = arith.mulf %745, %746 : vector<1x8x128xf32>
      %748 = vector.extract_strided_slice %738 {offsets = [1, 0, 0], sizes = [1, 8, 128], strides = [1, 1, 1]} : vector<3x8x128xf32> to vector<1x8x128xf32>
      %749 = vector.extract_strided_slice %58 {offsets = [1, 0, 0], sizes = [1, 8, 128], strides = [1, 1, 1]} : vector<3x8x128xf32> to vector<1x8x128xf32>
      %750 = arith.mulf %748, %749 : vector<1x8x128xf32>
      %751 = arith.addf %747, %750 : vector<1x8x128xf32>
      %752 = vector.extract_strided_slice %738 {offsets = [2, 0, 0], sizes = [1, 8, 128], strides = [1, 1, 1]} : vector<3x8x128xf32> to vector<1x8x128xf32>
      %753 = vector.extract_strided_slice %58 {offsets = [2, 0, 0], sizes = [1, 8, 128], strides = [1, 1, 1]} : vector<3x8x128xf32> to vector<1x8x128xf32>
      %754 = arith.mulf %752, %753 : vector<1x8x128xf32>
      %755 = arith.addf %751, %754 : vector<1x8x128xf32>
      %cst_147 = arith.constant 0.000000e+00 : f32
      %cst_148 = arith.constant 1.000000e+00 : f32
      %756 = vector.broadcast %cst_147 : f32 to vector<1x8x128xf32>
      %757 = arith.maximumf %756, %755 : vector<1x8x128xf32>
      %758 = vector.broadcast %cst_148 : f32 to vector<1x8x128xf32>
      %759 = arith.minimumf %758, %757 : vector<1x8x128xf32>
      %cst_149 = arith.constant 0.000000e+00 : f32
      %760 = vector.broadcast %cst_149 : f32 to vector<1x8x128xf32>
      %761 = arith.subf %760, %744 : vector<1x8x128xf32>
      %762 = math.exp %761 : vector<1x8x128xf32>
      %763 = arith.mulf %762, %762 : vector<1x8x128xf32>
      %cst_150 = arith.constant 1.000000e+00 : f32
      %764 = vector.broadcast %cst_150 : f32 to vector<1x8x128xf32>
      %765 = arith.divf %764, %744 : vector<1x8x128xf32>
      %cst_151 = arith.constant 2.000000e+00 : f32
      %766 = vector.broadcast %cst_151 : f32 to vector<1x8x128xf32>
      %767 = arith.mulf %766, %763 : vector<1x8x128xf32>
      %cst_152 = arith.constant 1.000000e+00 : f32
      %768 = vector.broadcast %cst_152 : f32 to vector<1x8x128xf32>
      %769 = arith.addf %768, %767 : vector<1x8x128xf32>
      %770 = arith.subf %769, %765 : vector<1x8x128xf32>
      %771 = arith.subf %762, %763 : vector<1x8x128xf32>
      %772 = arith.mulf %771, %765 : vector<1x8x128xf32>
      %773 = arith.subf %772, %763 : vector<1x8x128xf32>
      %cst_153 = arith.constant 1.000000e+00 : f32
      %774 = vector.broadcast %cst_153 : f32 to vector<1x8x128xf32>
      %775 = arith.subf %774, %770 : vector<1x8x128xf32>
      %cst_154 = arith.constant 9.99999996E-13 : f32
      %776 = vector.broadcast %cst_154 : f32 to vector<1x8x128xf32>
      %777 = arith.maximumf %775, %776 : vector<1x8x128xf32>
      %778 = math.sqrt %777 : vector<1x8x128xf32>
      %cst_155 = arith.constant 3.600000e-01 : f32
      %779 = vector.broadcast %cst_155 : f32 to vector<1x8x128xf32>
      %780 = arith.mulf %779, %759 : vector<1x8x128xf32>
      %cst_156 = arith.constant 0.694444418 : f32
      %781 = vector.broadcast %cst_156 : f32 to vector<1x8x128xf32>
      %782 = arith.mulf %781, %778 : vector<1x8x128xf32>
      %783 = arith.addf %780, %782 : vector<1x8x128xf32>
      %784 = math.absf %780 : vector<1x8x128xf32>
      %785 = arith.cmpf ole, %784, %782 : vector<1x8x128xf32>
      %cst_157 = arith.constant 9.99999997E-7 : f32
      %786 = vector.broadcast %cst_157 : f32 to vector<1x8x128xf32>
      %787 = arith.maximumf %778, %786 : vector<1x8x128xf32>
      %788 = arith.divf %783, %787 : vector<1x8x128xf32>
      %789 = arith.mulf %783, %788 : vector<1x8x128xf32>
      %790 = arith.select %785, %789, %759 : vector<1x8x128xi1>, vector<1x8x128xf32>
      %791 = arith.mulf %770, %790 : vector<1x8x128xf32>
      %792 = arith.addf %791, %773 : vector<1x8x128xf32>
      %cst_158 = arith.constant 6.28318548 : f32
      %793 = vector.broadcast %cst_158 : f32 to vector<1x8x128xf32>
      %794 = arith.mulf %793, %765 : vector<1x8x128xf32>
      %cst_159 = arith.constant 1.000000e+00 : f32
      %795 = vector.broadcast %cst_159 : f32 to vector<1x8x128xf32>
      %796 = arith.subf %795, %763 : vector<1x8x128xf32>
      %797 = arith.mulf %794, %796 : vector<1x8x128xf32>
      %798 = arith.mulf %792, %797 : vector<1x8x128xf32>
      %799 = arith.mulf %720, %33 : vector<3x8x128xf32>
      %800 = vector.broadcast %798 : vector<1x8x128xf32> to vector<3x8x128xf32>
      %801 = arith.mulf %800, %799 : vector<3x8x128xf32>
      %802 = arith.addf %717, %801 : vector<3x8x128xf32>
      %803 = vector.broadcast %744 : vector<1x8x128xf32> to vector<3x8x128xf32>
      %804 = arith.mulf %803, %738 : vector<3x8x128xf32>
      %805 = arith.addf %246, %804 : vector<3x8x128xf32>
      %806 = vector.extract_strided_slice %805 {offsets = [0, 0, 0], sizes = [1, 8, 128], strides = [1, 1, 1]} : vector<3x8x128xf32> to vector<1x8x128xf32>
      %807 = vector.extract_strided_slice %805 {offsets = [0, 0, 0], sizes = [1, 8, 128], strides = [1, 1, 1]} : vector<3x8x128xf32> to vector<1x8x128xf32>
      %808 = arith.mulf %806, %807 : vector<1x8x128xf32>
      %809 = vector.extract_strided_slice %805 {offsets = [1, 0, 0], sizes = [1, 8, 128], strides = [1, 1, 1]} : vector<3x8x128xf32> to vector<1x8x128xf32>
      %810 = vector.extract_strided_slice %805 {offsets = [1, 0, 0], sizes = [1, 8, 128], strides = [1, 1, 1]} : vector<3x8x128xf32> to vector<1x8x128xf32>
      %811 = arith.mulf %809, %810 : vector<1x8x128xf32>
      %812 = arith.addf %808, %811 : vector<1x8x128xf32>
      %813 = vector.extract_strided_slice %805 {offsets = [2, 0, 0], sizes = [1, 8, 128], strides = [1, 1, 1]} : vector<3x8x128xf32> to vector<1x8x128xf32>
      %814 = vector.extract_strided_slice %805 {offsets = [2, 0, 0], sizes = [1, 8, 128], strides = [1, 1, 1]} : vector<3x8x128xf32> to vector<1x8x128xf32>
      %815 = arith.mulf %813, %814 : vector<1x8x128xf32>
      %816 = arith.addf %812, %815 : vector<1x8x128xf32>
      %cst_160 = arith.constant 9.99999996E-13 : f32
      %817 = vector.broadcast %cst_160 : f32 to vector<1x8x128xf32>
      %818 = arith.maximumf %816, %817 : vector<1x8x128xf32>
      %819 = math.sqrt %818 : vector<1x8x128xf32>
      %cst_161 = arith.constant -2.000000e+00 : f32
      %820 = vector.broadcast %cst_161 : f32 to vector<1x8x128xf32>
      %821 = arith.mulf %820, %819 : vector<1x8x128xf32>
      %822 = math.exp %821 : vector<1x8x128xf32>
      %cst_162 = arith.constant 1.000000e+00 : f32
      %823 = vector.broadcast %cst_162 : f32 to vector<1x8x128xf32>
      %824 = arith.subf %823, %822 : vector<1x8x128xf32>
      %825 = arith.subf %819, %145 : vector<1x8x128xf32>
      %826 = arith.subf %825, %744 : vector<1x8x128xf32>
      %827 = math.exp %826 : vector<1x8x128xf32>
      %828 = arith.mulf %248, %827 : vector<1x8x128xf32>
      %829 = arith.divf %824, %819 : vector<1x8x128xf32>
      %830 = arith.mulf %828, %829 : vector<1x8x128xf32>
      %831 = vector.broadcast %830 : vector<1x8x128xf32> to vector<3x8x128xf32>
      %832 = arith.mulf %831, %720 : vector<3x8x128xf32>
      %833 = arith.mulf %832, %244 : vector<3x8x128xf32>
      %834 = arith.addf %802, %833 : vector<3x8x128xf32>
      %c35 = arith.constant 35 : index
      %835 = arith.index_cast %4 : i32 to index
      %c0_163 = arith.constant 0 : index
      %836 = vector.load %arg1[%c35, %835, %c0_163] : memref<56x16x128xf32, #tpu.memory_space<vmem>>, vector<3x8x128xf32>
      %837 = math.absf %836 : vector<3x8x128xf32>
      %c38 = arith.constant 38 : index
      %838 = arith.index_cast %4 : i32 to index
      %c0_164 = arith.constant 0 : index
      %839 = vector.load %arg1[%c38, %838, %c0_164] : memref<56x16x128xf32, #tpu.memory_space<vmem>>, vector<3x8x128xf32>
      %840 = vector.extract_strided_slice %839 {offsets = [0, 0, 0], sizes = [1, 8, 128], strides = [1, 1, 1]} : vector<3x8x128xf32> to vector<1x8x128xf32>
      %841 = vector.extract_strided_slice %839 {offsets = [0, 0, 0], sizes = [1, 8, 128], strides = [1, 1, 1]} : vector<3x8x128xf32> to vector<1x8x128xf32>
      %842 = arith.mulf %840, %841 : vector<1x8x128xf32>
      %843 = vector.extract_strided_slice %839 {offsets = [1, 0, 0], sizes = [1, 8, 128], strides = [1, 1, 1]} : vector<3x8x128xf32> to vector<1x8x128xf32>
      %844 = vector.extract_strided_slice %839 {offsets = [1, 0, 0], sizes = [1, 8, 128], strides = [1, 1, 1]} : vector<3x8x128xf32> to vector<1x8x128xf32>
      %845 = arith.mulf %843, %844 : vector<1x8x128xf32>
      %846 = arith.addf %842, %845 : vector<1x8x128xf32>
      %847 = vector.extract_strided_slice %839 {offsets = [2, 0, 0], sizes = [1, 8, 128], strides = [1, 1, 1]} : vector<3x8x128xf32> to vector<1x8x128xf32>
      %848 = vector.extract_strided_slice %839 {offsets = [2, 0, 0], sizes = [1, 8, 128], strides = [1, 1, 1]} : vector<3x8x128xf32> to vector<1x8x128xf32>
      %849 = arith.mulf %847, %848 : vector<1x8x128xf32>
      %850 = arith.addf %846, %849 : vector<1x8x128xf32>
      %cst_165 = arith.constant 9.99999996E-13 : f32
      %851 = vector.broadcast %cst_165 : f32 to vector<1x8x128xf32>
      %852 = arith.maximumf %850, %851 : vector<1x8x128xf32>
      %853 = math.rsqrt %852 : vector<1x8x128xf32>
      %854 = vector.broadcast %853 : vector<1x8x128xf32> to vector<3x8x128xf32>
      %855 = arith.mulf %839, %854 : vector<3x8x128xf32>
      %c41 = arith.constant 41 : index
      %856 = arith.index_cast %4 : i32 to index
      %c0_166 = arith.constant 0 : index
      %857 = vector.load %arg1[%c41, %856, %c0_166] : memref<56x16x128xf32, #tpu.memory_space<vmem>>, vector<1x8x128xf32>
      %cst_167 = arith.constant 5.000000e-01 : f32
      %cst_168 = arith.constant 3.000000e+01 : f32
      %858 = vector.broadcast %cst_167 : f32 to vector<1x8x128xf32>
      %859 = arith.maximumf %858, %857 : vector<1x8x128xf32>
      %860 = vector.broadcast %cst_168 : f32 to vector<1x8x128xf32>
      %861 = arith.minimumf %860, %859 : vector<1x8x128xf32>
      %862 = vector.extract_strided_slice %855 {offsets = [0, 0, 0], sizes = [1, 8, 128], strides = [1, 1, 1]} : vector<3x8x128xf32> to vector<1x8x128xf32>
      %863 = vector.extract_strided_slice %58 {offsets = [0, 0, 0], sizes = [1, 8, 128], strides = [1, 1, 1]} : vector<3x8x128xf32> to vector<1x8x128xf32>
      %864 = arith.mulf %862, %863 : vector<1x8x128xf32>
      %865 = vector.extract_strided_slice %855 {offsets = [1, 0, 0], sizes = [1, 8, 128], strides = [1, 1, 1]} : vector<3x8x128xf32> to vector<1x8x128xf32>
      %866 = vector.extract_strided_slice %58 {offsets = [1, 0, 0], sizes = [1, 8, 128], strides = [1, 1, 1]} : vector<3x8x128xf32> to vector<1x8x128xf32>
      %867 = arith.mulf %865, %866 : vector<1x8x128xf32>
      %868 = arith.addf %864, %867 : vector<1x8x128xf32>
      %869 = vector.extract_strided_slice %855 {offsets = [2, 0, 0], sizes = [1, 8, 128], strides = [1, 1, 1]} : vector<3x8x128xf32> to vector<1x8x128xf32>
      %870 = vector.extract_strided_slice %58 {offsets = [2, 0, 0], sizes = [1, 8, 128], strides = [1, 1, 1]} : vector<3x8x128xf32> to vector<1x8x128xf32>
      %871 = arith.mulf %869, %870 : vector<1x8x128xf32>
      %872 = arith.addf %868, %871 : vector<1x8x128xf32>
      %cst_169 = arith.constant 0.000000e+00 : f32
      %cst_170 = arith.constant 1.000000e+00 : f32
      %873 = vector.broadcast %cst_169 : f32 to vector<1x8x128xf32>
      %874 = arith.maximumf %873, %872 : vector<1x8x128xf32>
      %875 = vector.broadcast %cst_170 : f32 to vector<1x8x128xf32>
      %876 = arith.minimumf %875, %874 : vector<1x8x128xf32>
      %cst_171 = arith.constant 0.000000e+00 : f32
      %877 = vector.broadcast %cst_171 : f32 to vector<1x8x128xf32>
      %878 = arith.subf %877, %861 : vector<1x8x128xf32>
      %879 = math.exp %878 : vector<1x8x128xf32>
      %880 = arith.mulf %879, %879 : vector<1x8x128xf32>
      %cst_172 = arith.constant 1.000000e+00 : f32
      %881 = vector.broadcast %cst_172 : f32 to vector<1x8x128xf32>
      %882 = arith.divf %881, %861 : vector<1x8x128xf32>
      %cst_173 = arith.constant 2.000000e+00 : f32
      %883 = vector.broadcast %cst_173 : f32 to vector<1x8x128xf32>
      %884 = arith.mulf %883, %880 : vector<1x8x128xf32>
      %cst_174 = arith.constant 1.000000e+00 : f32
      %885 = vector.broadcast %cst_174 : f32 to vector<1x8x128xf32>
      %886 = arith.addf %885, %884 : vector<1x8x128xf32>
      %887 = arith.subf %886, %882 : vector<1x8x128xf32>
      %888 = arith.subf %879, %880 : vector<1x8x128xf32>
      %889 = arith.mulf %888, %882 : vector<1x8x128xf32>
      %890 = arith.subf %889, %880 : vector<1x8x128xf32>
      %cst_175 = arith.constant 1.000000e+00 : f32
      %891 = vector.broadcast %cst_175 : f32 to vector<1x8x128xf32>
      %892 = arith.subf %891, %887 : vector<1x8x128xf32>
      %cst_176 = arith.constant 9.99999996E-13 : f32
      %893 = vector.broadcast %cst_176 : f32 to vector<1x8x128xf32>
      %894 = arith.maximumf %892, %893 : vector<1x8x128xf32>
      %895 = math.sqrt %894 : vector<1x8x128xf32>
      %cst_177 = arith.constant 3.600000e-01 : f32
      %896 = vector.broadcast %cst_177 : f32 to vector<1x8x128xf32>
      %897 = arith.mulf %896, %876 : vector<1x8x128xf32>
      %cst_178 = arith.constant 0.694444418 : f32
      %898 = vector.broadcast %cst_178 : f32 to vector<1x8x128xf32>
      %899 = arith.mulf %898, %895 : vector<1x8x128xf32>
      %900 = arith.addf %897, %899 : vector<1x8x128xf32>
      %901 = math.absf %897 : vector<1x8x128xf32>
      %902 = arith.cmpf ole, %901, %899 : vector<1x8x128xf32>
      %cst_179 = arith.constant 9.99999997E-7 : f32
      %903 = vector.broadcast %cst_179 : f32 to vector<1x8x128xf32>
      %904 = arith.maximumf %895, %903 : vector<1x8x128xf32>
      %905 = arith.divf %900, %904 : vector<1x8x128xf32>
      %906 = arith.mulf %900, %905 : vector<1x8x128xf32>
      %907 = arith.select %902, %906, %876 : vector<1x8x128xi1>, vector<1x8x128xf32>
      %908 = arith.mulf %887, %907 : vector<1x8x128xf32>
      %909 = arith.addf %908, %890 : vector<1x8x128xf32>
      %cst_180 = arith.constant 6.28318548 : f32
      %910 = vector.broadcast %cst_180 : f32 to vector<1x8x128xf32>
      %911 = arith.mulf %910, %882 : vector<1x8x128xf32>
      %cst_181 = arith.constant 1.000000e+00 : f32
      %912 = vector.broadcast %cst_181 : f32 to vector<1x8x128xf32>
      %913 = arith.subf %912, %880 : vector<1x8x128xf32>
      %914 = arith.mulf %911, %913 : vector<1x8x128xf32>
      %915 = arith.mulf %909, %914 : vector<1x8x128xf32>
      %916 = arith.mulf %837, %33 : vector<3x8x128xf32>
      %917 = vector.broadcast %915 : vector<1x8x128xf32> to vector<3x8x128xf32>
      %918 = arith.mulf %917, %916 : vector<3x8x128xf32>
      %919 = arith.addf %834, %918 : vector<3x8x128xf32>
      %920 = vector.broadcast %861 : vector<1x8x128xf32> to vector<3x8x128xf32>
      %921 = arith.mulf %920, %855 : vector<3x8x128xf32>
      %922 = arith.addf %246, %921 : vector<3x8x128xf32>
      %923 = vector.extract_strided_slice %922 {offsets = [0, 0, 0], sizes = [1, 8, 128], strides = [1, 1, 1]} : vector<3x8x128xf32> to vector<1x8x128xf32>
      %924 = vector.extract_strided_slice %922 {offsets = [0, 0, 0], sizes = [1, 8, 128], strides = [1, 1, 1]} : vector<3x8x128xf32> to vector<1x8x128xf32>
      %925 = arith.mulf %923, %924 : vector<1x8x128xf32>
      %926 = vector.extract_strided_slice %922 {offsets = [1, 0, 0], sizes = [1, 8, 128], strides = [1, 1, 1]} : vector<3x8x128xf32> to vector<1x8x128xf32>
      %927 = vector.extract_strided_slice %922 {offsets = [1, 0, 0], sizes = [1, 8, 128], strides = [1, 1, 1]} : vector<3x8x128xf32> to vector<1x8x128xf32>
      %928 = arith.mulf %926, %927 : vector<1x8x128xf32>
      %929 = arith.addf %925, %928 : vector<1x8x128xf32>
      %930 = vector.extract_strided_slice %922 {offsets = [2, 0, 0], sizes = [1, 8, 128], strides = [1, 1, 1]} : vector<3x8x128xf32> to vector<1x8x128xf32>
      %931 = vector.extract_strided_slice %922 {offsets = [2, 0, 0], sizes = [1, 8, 128], strides = [1, 1, 1]} : vector<3x8x128xf32> to vector<1x8x128xf32>
      %932 = arith.mulf %930, %931 : vector<1x8x128xf32>
      %933 = arith.addf %929, %932 : vector<1x8x128xf32>
      %cst_182 = arith.constant 9.99999996E-13 : f32
      %934 = vector.broadcast %cst_182 : f32 to vector<1x8x128xf32>
      %935 = arith.maximumf %933, %934 : vector<1x8x128xf32>
      %936 = math.sqrt %935 : vector<1x8x128xf32>
      %cst_183 = arith.constant -2.000000e+00 : f32
      %937 = vector.broadcast %cst_183 : f32 to vector<1x8x128xf32>
      %938 = arith.mulf %937, %936 : vector<1x8x128xf32>
      %939 = math.exp %938 : vector<1x8x128xf32>
      %cst_184 = arith.constant 1.000000e+00 : f32
      %940 = vector.broadcast %cst_184 : f32 to vector<1x8x128xf32>
      %941 = arith.subf %940, %939 : vector<1x8x128xf32>
      %942 = arith.subf %936, %145 : vector<1x8x128xf32>
      %943 = arith.subf %942, %861 : vector<1x8x128xf32>
      %944 = math.exp %943 : vector<1x8x128xf32>
      %945 = arith.mulf %248, %944 : vector<1x8x128xf32>
      %946 = arith.divf %941, %936 : vector<1x8x128xf32>
      %947 = arith.mulf %945, %946 : vector<1x8x128xf32>
      %948 = vector.broadcast %947 : vector<1x8x128xf32> to vector<3x8x128xf32>
      %949 = arith.mulf %948, %837 : vector<3x8x128xf32>
      %950 = arith.mulf %949, %244 : vector<3x8x128xf32>
      %951 = arith.addf %919, %950 : vector<3x8x128xf32>
      %c42 = arith.constant 42 : index
      %952 = arith.index_cast %4 : i32 to index
      %c0_185 = arith.constant 0 : index
      %953 = vector.load %arg1[%c42, %952, %c0_185] : memref<56x16x128xf32, #tpu.memory_space<vmem>>, vector<3x8x128xf32>
      %954 = math.absf %953 : vector<3x8x128xf32>
      %c45 = arith.constant 45 : index
      %955 = arith.index_cast %4 : i32 to index
      %c0_186 = arith.constant 0 : index
      %956 = vector.load %arg1[%c45, %955, %c0_186] : memref<56x16x128xf32, #tpu.memory_space<vmem>>, vector<3x8x128xf32>
      %957 = vector.extract_strided_slice %956 {offsets = [0, 0, 0], sizes = [1, 8, 128], strides = [1, 1, 1]} : vector<3x8x128xf32> to vector<1x8x128xf32>
      %958 = vector.extract_strided_slice %956 {offsets = [0, 0, 0], sizes = [1, 8, 128], strides = [1, 1, 1]} : vector<3x8x128xf32> to vector<1x8x128xf32>
      %959 = arith.mulf %957, %958 : vector<1x8x128xf32>
      %960 = vector.extract_strided_slice %956 {offsets = [1, 0, 0], sizes = [1, 8, 128], strides = [1, 1, 1]} : vector<3x8x128xf32> to vector<1x8x128xf32>
      %961 = vector.extract_strided_slice %956 {offsets = [1, 0, 0], sizes = [1, 8, 128], strides = [1, 1, 1]} : vector<3x8x128xf32> to vector<1x8x128xf32>
      %962 = arith.mulf %960, %961 : vector<1x8x128xf32>
      %963 = arith.addf %959, %962 : vector<1x8x128xf32>
      %964 = vector.extract_strided_slice %956 {offsets = [2, 0, 0], sizes = [1, 8, 128], strides = [1, 1, 1]} : vector<3x8x128xf32> to vector<1x8x128xf32>
      %965 = vector.extract_strided_slice %956 {offsets = [2, 0, 0], sizes = [1, 8, 128], strides = [1, 1, 1]} : vector<3x8x128xf32> to vector<1x8x128xf32>
      %966 = arith.mulf %964, %965 : vector<1x8x128xf32>
      %967 = arith.addf %963, %966 : vector<1x8x128xf32>
      %cst_187 = arith.constant 9.99999996E-13 : f32
      %968 = vector.broadcast %cst_187 : f32 to vector<1x8x128xf32>
      %969 = arith.maximumf %967, %968 : vector<1x8x128xf32>
      %970 = math.rsqrt %969 : vector<1x8x128xf32>
      %971 = vector.broadcast %970 : vector<1x8x128xf32> to vector<3x8x128xf32>
      %972 = arith.mulf %956, %971 : vector<3x8x128xf32>
      %c48 = arith.constant 48 : index
      %973 = arith.index_cast %4 : i32 to index
      %c0_188 = arith.constant 0 : index
      %974 = vector.load %arg1[%c48, %973, %c0_188] : memref<56x16x128xf32, #tpu.memory_space<vmem>>, vector<1x8x128xf32>
      %cst_189 = arith.constant 5.000000e-01 : f32
      %cst_190 = arith.constant 3.000000e+01 : f32
      %975 = vector.broadcast %cst_189 : f32 to vector<1x8x128xf32>
      %976 = arith.maximumf %975, %974 : vector<1x8x128xf32>
      %977 = vector.broadcast %cst_190 : f32 to vector<1x8x128xf32>
      %978 = arith.minimumf %977, %976 : vector<1x8x128xf32>
      %979 = vector.extract_strided_slice %972 {offsets = [0, 0, 0], sizes = [1, 8, 128], strides = [1, 1, 1]} : vector<3x8x128xf32> to vector<1x8x128xf32>
      %980 = vector.extract_strided_slice %58 {offsets = [0, 0, 0], sizes = [1, 8, 128], strides = [1, 1, 1]} : vector<3x8x128xf32> to vector<1x8x128xf32>
      %981 = arith.mulf %979, %980 : vector<1x8x128xf32>
      %982 = vector.extract_strided_slice %972 {offsets = [1, 0, 0], sizes = [1, 8, 128], strides = [1, 1, 1]} : vector<3x8x128xf32> to vector<1x8x128xf32>
      %983 = vector.extract_strided_slice %58 {offsets = [1, 0, 0], sizes = [1, 8, 128], strides = [1, 1, 1]} : vector<3x8x128xf32> to vector<1x8x128xf32>
      %984 = arith.mulf %982, %983 : vector<1x8x128xf32>
      %985 = arith.addf %981, %984 : vector<1x8x128xf32>
      %986 = vector.extract_strided_slice %972 {offsets = [2, 0, 0], sizes = [1, 8, 128], strides = [1, 1, 1]} : vector<3x8x128xf32> to vector<1x8x128xf32>
      %987 = vector.extract_strided_slice %58 {offsets = [2, 0, 0], sizes = [1, 8, 128], strides = [1, 1, 1]} : vector<3x8x128xf32> to vector<1x8x128xf32>
      %988 = arith.mulf %986, %987 : vector<1x8x128xf32>
      %989 = arith.addf %985, %988 : vector<1x8x128xf32>
      %cst_191 = arith.constant 0.000000e+00 : f32
      %cst_192 = arith.constant 1.000000e+00 : f32
      %990 = vector.broadcast %cst_191 : f32 to vector<1x8x128xf32>
      %991 = arith.maximumf %990, %989 : vector<1x8x128xf32>
      %992 = vector.broadcast %cst_192 : f32 to vector<1x8x128xf32>
      %993 = arith.minimumf %992, %991 : vector<1x8x128xf32>
      %cst_193 = arith.constant 0.000000e+00 : f32
      %994 = vector.broadcast %cst_193 : f32 to vector<1x8x128xf32>
      %995 = arith.subf %994, %978 : vector<1x8x128xf32>
      %996 = math.exp %995 : vector<1x8x128xf32>
      %997 = arith.mulf %996, %996 : vector<1x8x128xf32>
      %cst_194 = arith.constant 1.000000e+00 : f32
      %998 = vector.broadcast %cst_194 : f32 to vector<1x8x128xf32>
      %999 = arith.divf %998, %978 : vector<1x8x128xf32>
      %cst_195 = arith.constant 2.000000e+00 : f32
      %1000 = vector.broadcast %cst_195 : f32 to vector<1x8x128xf32>
      %1001 = arith.mulf %1000, %997 : vector<1x8x128xf32>
      %cst_196 = arith.constant 1.000000e+00 : f32
      %1002 = vector.broadcast %cst_196 : f32 to vector<1x8x128xf32>
      %1003 = arith.addf %1002, %1001 : vector<1x8x128xf32>
      %1004 = arith.subf %1003, %999 : vector<1x8x128xf32>
      %1005 = arith.subf %996, %997 : vector<1x8x128xf32>
      %1006 = arith.mulf %1005, %999 : vector<1x8x128xf32>
      %1007 = arith.subf %1006, %997 : vector<1x8x128xf32>
      %cst_197 = arith.constant 1.000000e+00 : f32
      %1008 = vector.broadcast %cst_197 : f32 to vector<1x8x128xf32>
      %1009 = arith.subf %1008, %1004 : vector<1x8x128xf32>
      %cst_198 = arith.constant 9.99999996E-13 : f32
      %1010 = vector.broadcast %cst_198 : f32 to vector<1x8x128xf32>
      %1011 = arith.maximumf %1009, %1010 : vector<1x8x128xf32>
      %1012 = math.sqrt %1011 : vector<1x8x128xf32>
      %cst_199 = arith.constant 3.600000e-01 : f32
      %1013 = vector.broadcast %cst_199 : f32 to vector<1x8x128xf32>
      %1014 = arith.mulf %1013, %993 : vector<1x8x128xf32>
      %cst_200 = arith.constant 0.694444418 : f32
      %1015 = vector.broadcast %cst_200 : f32 to vector<1x8x128xf32>
      %1016 = arith.mulf %1015, %1012 : vector<1x8x128xf32>
      %1017 = arith.addf %1014, %1016 : vector<1x8x128xf32>
      %1018 = math.absf %1014 : vector<1x8x128xf32>
      %1019 = arith.cmpf ole, %1018, %1016 : vector<1x8x128xf32>
      %cst_201 = arith.constant 9.99999997E-7 : f32
      %1020 = vector.broadcast %cst_201 : f32 to vector<1x8x128xf32>
      %1021 = arith.maximumf %1012, %1020 : vector<1x8x128xf32>
      %1022 = arith.divf %1017, %1021 : vector<1x8x128xf32>
      %1023 = arith.mulf %1017, %1022 : vector<1x8x128xf32>
      %1024 = arith.select %1019, %1023, %993 : vector<1x8x128xi1>, vector<1x8x128xf32>
      %1025 = arith.mulf %1004, %1024 : vector<1x8x128xf32>
      %1026 = arith.addf %1025, %1007 : vector<1x8x128xf32>
      %cst_202 = arith.constant 6.28318548 : f32
      %1027 = vector.broadcast %cst_202 : f32 to vector<1x8x128xf32>
      %1028 = arith.mulf %1027, %999 : vector<1x8x128xf32>
      %cst_203 = arith.constant 1.000000e+00 : f32
      %1029 = vector.broadcast %cst_203 : f32 to vector<1x8x128xf32>
      %1030 = arith.subf %1029, %997 : vector<1x8x128xf32>
      %1031 = arith.mulf %1028, %1030 : vector<1x8x128xf32>
      %1032 = arith.mulf %1026, %1031 : vector<1x8x128xf32>
      %1033 = arith.mulf %954, %33 : vector<3x8x128xf32>
      %1034 = vector.broadcast %1032 : vector<1x8x128xf32> to vector<3x8x128xf32>
      %1035 = arith.mulf %1034, %1033 : vector<3x8x128xf32>
      %1036 = arith.addf %951, %1035 : vector<3x8x128xf32>
      %1037 = vector.broadcast %978 : vector<1x8x128xf32> to vector<3x8x128xf32>
      %1038 = arith.mulf %1037, %972 : vector<3x8x128xf32>
      %1039 = arith.addf %246, %1038 : vector<3x8x128xf32>
      %1040 = vector.extract_strided_slice %1039 {offsets = [0, 0, 0], sizes = [1, 8, 128], strides = [1, 1, 1]} : vector<3x8x128xf32> to vector<1x8x128xf32>
      %1041 = vector.extract_strided_slice %1039 {offsets = [0, 0, 0], sizes = [1, 8, 128], strides = [1, 1, 1]} : vector<3x8x128xf32> to vector<1x8x128xf32>
      %1042 = arith.mulf %1040, %1041 : vector<1x8x128xf32>
      %1043 = vector.extract_strided_slice %1039 {offsets = [1, 0, 0], sizes = [1, 8, 128], strides = [1, 1, 1]} : vector<3x8x128xf32> to vector<1x8x128xf32>
      %1044 = vector.extract_strided_slice %1039 {offsets = [1, 0, 0], sizes = [1, 8, 128], strides = [1, 1, 1]} : vector<3x8x128xf32> to vector<1x8x128xf32>
      %1045 = arith.mulf %1043, %1044 : vector<1x8x128xf32>
      %1046 = arith.addf %1042, %1045 : vector<1x8x128xf32>
      %1047 = vector.extract_strided_slice %1039 {offsets = [2, 0, 0], sizes = [1, 8, 128], strides = [1, 1, 1]} : vector<3x8x128xf32> to vector<1x8x128xf32>
      %1048 = vector.extract_strided_slice %1039 {offsets = [2, 0, 0], sizes = [1, 8, 128], strides = [1, 1, 1]} : vector<3x8x128xf32> to vector<1x8x128xf32>
      %1049 = arith.mulf %1047, %1048 : vector<1x8x128xf32>
      %1050 = arith.addf %1046, %1049 : vector<1x8x128xf32>
      %cst_204 = arith.constant 9.99999996E-13 : f32
      %1051 = vector.broadcast %cst_204 : f32 to vector<1x8x128xf32>
      %1052 = arith.maximumf %1050, %1051 : vector<1x8x128xf32>
      %1053 = math.sqrt %1052 : vector<1x8x128xf32>
      %cst_205 = arith.constant -2.000000e+00 : f32
      %1054 = vector.broadcast %cst_205 : f32 to vector<1x8x128xf32>
      %1055 = arith.mulf %1054, %1053 : vector<1x8x128xf32>
      %1056 = math.exp %1055 : vector<1x8x128xf32>
      %cst_206 = arith.constant 1.000000e+00 : f32
      %1057 = vector.broadcast %cst_206 : f32 to vector<1x8x128xf32>
      %1058 = arith.subf %1057, %1056 : vector<1x8x128xf32>
      %1059 = arith.subf %1053, %145 : vector<1x8x128xf32>
      %1060 = arith.subf %1059, %978 : vector<1x8x128xf32>
      %1061 = math.exp %1060 : vector<1x8x128xf32>
      %1062 = arith.mulf %248, %1061 : vector<1x8x128xf32>
      %1063 = arith.divf %1058, %1053 : vector<1x8x128xf32>
      %1064 = arith.mulf %1062, %1063 : vector<1x8x128xf32>
      %1065 = vector.broadcast %1064 : vector<1x8x128xf32> to vector<3x8x128xf32>
      %1066 = arith.mulf %1065, %954 : vector<3x8x128xf32>
      %1067 = arith.mulf %1066, %244 : vector<3x8x128xf32>
      %1068 = arith.addf %1036, %1067 : vector<3x8x128xf32>
      %c49 = arith.constant 49 : index
      %1069 = arith.index_cast %4 : i32 to index
      %c0_207 = arith.constant 0 : index
      %1070 = vector.load %arg1[%c49, %1069, %c0_207] : memref<56x16x128xf32, #tpu.memory_space<vmem>>, vector<3x8x128xf32>
      %1071 = math.absf %1070 : vector<3x8x128xf32>
      %c52 = arith.constant 52 : index
      %1072 = arith.index_cast %4 : i32 to index
      %c0_208 = arith.constant 0 : index
      %1073 = vector.load %arg1[%c52, %1072, %c0_208] : memref<56x16x128xf32, #tpu.memory_space<vmem>>, vector<3x8x128xf32>
      %1074 = vector.extract_strided_slice %1073 {offsets = [0, 0, 0], sizes = [1, 8, 128], strides = [1, 1, 1]} : vector<3x8x128xf32> to vector<1x8x128xf32>
      %1075 = vector.extract_strided_slice %1073 {offsets = [0, 0, 0], sizes = [1, 8, 128], strides = [1, 1, 1]} : vector<3x8x128xf32> to vector<1x8x128xf32>
      %1076 = arith.mulf %1074, %1075 : vector<1x8x128xf32>
      %1077 = vector.extract_strided_slice %1073 {offsets = [1, 0, 0], sizes = [1, 8, 128], strides = [1, 1, 1]} : vector<3x8x128xf32> to vector<1x8x128xf32>
      %1078 = vector.extract_strided_slice %1073 {offsets = [1, 0, 0], sizes = [1, 8, 128], strides = [1, 1, 1]} : vector<3x8x128xf32> to vector<1x8x128xf32>
      %1079 = arith.mulf %1077, %1078 : vector<1x8x128xf32>
      %1080 = arith.addf %1076, %1079 : vector<1x8x128xf32>
      %1081 = vector.extract_strided_slice %1073 {offsets = [2, 0, 0], sizes = [1, 8, 128], strides = [1, 1, 1]} : vector<3x8x128xf32> to vector<1x8x128xf32>
      %1082 = vector.extract_strided_slice %1073 {offsets = [2, 0, 0], sizes = [1, 8, 128], strides = [1, 1, 1]} : vector<3x8x128xf32> to vector<1x8x128xf32>
      %1083 = arith.mulf %1081, %1082 : vector<1x8x128xf32>
      %1084 = arith.addf %1080, %1083 : vector<1x8x128xf32>
      %cst_209 = arith.constant 9.99999996E-13 : f32
      %1085 = vector.broadcast %cst_209 : f32 to vector<1x8x128xf32>
      %1086 = arith.maximumf %1084, %1085 : vector<1x8x128xf32>
      %1087 = math.rsqrt %1086 : vector<1x8x128xf32>
      %1088 = vector.broadcast %1087 : vector<1x8x128xf32> to vector<3x8x128xf32>
      %1089 = arith.mulf %1073, %1088 : vector<3x8x128xf32>
      %c55 = arith.constant 55 : index
      %1090 = arith.index_cast %4 : i32 to index
      %c0_210 = arith.constant 0 : index
      %1091 = vector.load %arg1[%c55, %1090, %c0_210] : memref<56x16x128xf32, #tpu.memory_space<vmem>>, vector<1x8x128xf32>
      %cst_211 = arith.constant 5.000000e-01 : f32
      %cst_212 = arith.constant 3.000000e+01 : f32
      %1092 = vector.broadcast %cst_211 : f32 to vector<1x8x128xf32>
      %1093 = arith.maximumf %1092, %1091 : vector<1x8x128xf32>
      %1094 = vector.broadcast %cst_212 : f32 to vector<1x8x128xf32>
      %1095 = arith.minimumf %1094, %1093 : vector<1x8x128xf32>
      %1096 = vector.extract_strided_slice %1089 {offsets = [0, 0, 0], sizes = [1, 8, 128], strides = [1, 1, 1]} : vector<3x8x128xf32> to vector<1x8x128xf32>
      %1097 = vector.extract_strided_slice %58 {offsets = [0, 0, 0], sizes = [1, 8, 128], strides = [1, 1, 1]} : vector<3x8x128xf32> to vector<1x8x128xf32>
      %1098 = arith.mulf %1096, %1097 : vector<1x8x128xf32>
      %1099 = vector.extract_strided_slice %1089 {offsets = [1, 0, 0], sizes = [1, 8, 128], strides = [1, 1, 1]} : vector<3x8x128xf32> to vector<1x8x128xf32>
      %1100 = vector.extract_strided_slice %58 {offsets = [1, 0, 0], sizes = [1, 8, 128], strides = [1, 1, 1]} : vector<3x8x128xf32> to vector<1x8x128xf32>
      %1101 = arith.mulf %1099, %1100 : vector<1x8x128xf32>
      %1102 = arith.addf %1098, %1101 : vector<1x8x128xf32>
      %1103 = vector.extract_strided_slice %1089 {offsets = [2, 0, 0], sizes = [1, 8, 128], strides = [1, 1, 1]} : vector<3x8x128xf32> to vector<1x8x128xf32>
      %1104 = vector.extract_strided_slice %58 {offsets = [2, 0, 0], sizes = [1, 8, 128], strides = [1, 1, 1]} : vector<3x8x128xf32> to vector<1x8x128xf32>
      %1105 = arith.mulf %1103, %1104 : vector<1x8x128xf32>
      %1106 = arith.addf %1102, %1105 : vector<1x8x128xf32>
      %cst_213 = arith.constant 0.000000e+00 : f32
      %cst_214 = arith.constant 1.000000e+00 : f32
      %1107 = vector.broadcast %cst_213 : f32 to vector<1x8x128xf32>
      %1108 = arith.maximumf %1107, %1106 : vector<1x8x128xf32>
      %1109 = vector.broadcast %cst_214 : f32 to vector<1x8x128xf32>
      %1110 = arith.minimumf %1109, %1108 : vector<1x8x128xf32>
      %cst_215 = arith.constant 0.000000e+00 : f32
      %1111 = vector.broadcast %cst_215 : f32 to vector<1x8x128xf32>
      %1112 = arith.subf %1111, %1095 : vector<1x8x128xf32>
      %1113 = math.exp %1112 : vector<1x8x128xf32>
      %1114 = arith.mulf %1113, %1113 : vector<1x8x128xf32>
      %cst_216 = arith.constant 1.000000e+00 : f32
      %1115 = vector.broadcast %cst_216 : f32 to vector<1x8x128xf32>
      %1116 = arith.divf %1115, %1095 : vector<1x8x128xf32>
      %cst_217 = arith.constant 2.000000e+00 : f32
      %1117 = vector.broadcast %cst_217 : f32 to vector<1x8x128xf32>
      %1118 = arith.mulf %1117, %1114 : vector<1x8x128xf32>
      %cst_218 = arith.constant 1.000000e+00 : f32
      %1119 = vector.broadcast %cst_218 : f32 to vector<1x8x128xf32>
      %1120 = arith.addf %1119, %1118 : vector<1x8x128xf32>
      %1121 = arith.subf %1120, %1116 : vector<1x8x128xf32>
      %1122 = arith.subf %1113, %1114 : vector<1x8x128xf32>
      %1123 = arith.mulf %1122, %1116 : vector<1x8x128xf32>
      %1124 = arith.subf %1123, %1114 : vector<1x8x128xf32>
      %cst_219 = arith.constant 1.000000e+00 : f32
      %1125 = vector.broadcast %cst_219 : f32 to vector<1x8x128xf32>
      %1126 = arith.subf %1125, %1121 : vector<1x8x128xf32>
      %cst_220 = arith.constant 9.99999996E-13 : f32
      %1127 = vector.broadcast %cst_220 : f32 to vector<1x8x128xf32>
      %1128 = arith.maximumf %1126, %1127 : vector<1x8x128xf32>
      %1129 = math.sqrt %1128 : vector<1x8x128xf32>
      %cst_221 = arith.constant 3.600000e-01 : f32
      %1130 = vector.broadcast %cst_221 : f32 to vector<1x8x128xf32>
      %1131 = arith.mulf %1130, %1110 : vector<1x8x128xf32>
      %cst_222 = arith.constant 0.694444418 : f32
      %1132 = vector.broadcast %cst_222 : f32 to vector<1x8x128xf32>
      %1133 = arith.mulf %1132, %1129 : vector<1x8x128xf32>
      %1134 = arith.addf %1131, %1133 : vector<1x8x128xf32>
      %1135 = math.absf %1131 : vector<1x8x128xf32>
      %1136 = arith.cmpf ole, %1135, %1133 : vector<1x8x128xf32>
      %cst_223 = arith.constant 9.99999997E-7 : f32
      %1137 = vector.broadcast %cst_223 : f32 to vector<1x8x128xf32>
      %1138 = arith.maximumf %1129, %1137 : vector<1x8x128xf32>
      %1139 = arith.divf %1134, %1138 : vector<1x8x128xf32>
      %1140 = arith.mulf %1134, %1139 : vector<1x8x128xf32>
      %1141 = arith.select %1136, %1140, %1110 : vector<1x8x128xi1>, vector<1x8x128xf32>
      %1142 = arith.mulf %1121, %1141 : vector<1x8x128xf32>
      %1143 = arith.addf %1142, %1124 : vector<1x8x128xf32>
      %cst_224 = arith.constant 6.28318548 : f32
      %1144 = vector.broadcast %cst_224 : f32 to vector<1x8x128xf32>
      %1145 = arith.mulf %1144, %1116 : vector<1x8x128xf32>
      %cst_225 = arith.constant 1.000000e+00 : f32
      %1146 = vector.broadcast %cst_225 : f32 to vector<1x8x128xf32>
      %1147 = arith.subf %1146, %1114 : vector<1x8x128xf32>
      %1148 = arith.mulf %1145, %1147 : vector<1x8x128xf32>
      %1149 = arith.mulf %1143, %1148 : vector<1x8x128xf32>
      %1150 = arith.mulf %1071, %33 : vector<3x8x128xf32>
      %1151 = vector.broadcast %1149 : vector<1x8x128xf32> to vector<3x8x128xf32>
      %1152 = arith.mulf %1151, %1150 : vector<3x8x128xf32>
      %1153 = arith.addf %1068, %1152 : vector<3x8x128xf32>
      %1154 = vector.broadcast %1095 : vector<1x8x128xf32> to vector<3x8x128xf32>
      %1155 = arith.mulf %1154, %1089 : vector<3x8x128xf32>
      %1156 = arith.addf %246, %1155 : vector<3x8x128xf32>
      %1157 = vector.extract_strided_slice %1156 {offsets = [0, 0, 0], sizes = [1, 8, 128], strides = [1, 1, 1]} : vector<3x8x128xf32> to vector<1x8x128xf32>
      %1158 = vector.extract_strided_slice %1156 {offsets = [0, 0, 0], sizes = [1, 8, 128], strides = [1, 1, 1]} : vector<3x8x128xf32> to vector<1x8x128xf32>
      %1159 = arith.mulf %1157, %1158 : vector<1x8x128xf32>
      %1160 = vector.extract_strided_slice %1156 {offsets = [1, 0, 0], sizes = [1, 8, 128], strides = [1, 1, 1]} : vector<3x8x128xf32> to vector<1x8x128xf32>
      %1161 = vector.extract_strided_slice %1156 {offsets = [1, 0, 0], sizes = [1, 8, 128], strides = [1, 1, 1]} : vector<3x8x128xf32> to vector<1x8x128xf32>
      %1162 = arith.mulf %1160, %1161 : vector<1x8x128xf32>
      %1163 = arith.addf %1159, %1162 : vector<1x8x128xf32>
      %1164 = vector.extract_strided_slice %1156 {offsets = [2, 0, 0], sizes = [1, 8, 128], strides = [1, 1, 1]} : vector<3x8x128xf32> to vector<1x8x128xf32>
      %1165 = vector.extract_strided_slice %1156 {offsets = [2, 0, 0], sizes = [1, 8, 128], strides = [1, 1, 1]} : vector<3x8x128xf32> to vector<1x8x128xf32>
      %1166 = arith.mulf %1164, %1165 : vector<1x8x128xf32>
      %1167 = arith.addf %1163, %1166 : vector<1x8x128xf32>
      %cst_226 = arith.constant 9.99999996E-13 : f32
      %1168 = vector.broadcast %cst_226 : f32 to vector<1x8x128xf32>
      %1169 = arith.maximumf %1167, %1168 : vector<1x8x128xf32>
      %1170 = math.sqrt %1169 : vector<1x8x128xf32>
      %cst_227 = arith.constant -2.000000e+00 : f32
      %1171 = vector.broadcast %cst_227 : f32 to vector<1x8x128xf32>
      %1172 = arith.mulf %1171, %1170 : vector<1x8x128xf32>
      %1173 = math.exp %1172 : vector<1x8x128xf32>
      %cst_228 = arith.constant 1.000000e+00 : f32
      %1174 = vector.broadcast %cst_228 : f32 to vector<1x8x128xf32>
      %1175 = arith.subf %1174, %1173 : vector<1x8x128xf32>
      %1176 = arith.subf %1170, %145 : vector<1x8x128xf32>
      %1177 = arith.subf %1176, %1095 : vector<1x8x128xf32>
      %1178 = math.exp %1177 : vector<1x8x128xf32>
      %1179 = arith.mulf %248, %1178 : vector<1x8x128xf32>
      %1180 = arith.divf %1175, %1170 : vector<1x8x128xf32>
      %1181 = arith.mulf %1179, %1180 : vector<1x8x128xf32>
      %1182 = vector.broadcast %1181 : vector<1x8x128xf32> to vector<3x8x128xf32>
      %1183 = arith.mulf %1182, %1071 : vector<3x8x128xf32>
      %1184 = arith.mulf %1183, %244 : vector<3x8x128xf32>
      %1185 = arith.addf %1153, %1184 : vector<3x8x128xf32>
      %cst_229 = arith.constant 0.000000e+00 : f32
      %1186 = vector.broadcast %cst_229 : f32 to vector<3x8x128xf32>
      %1187 = arith.maximumf %1185, %1186 : vector<3x8x128xf32>
      %c0_230 = arith.constant 0 : index
      %1188 = arith.index_cast %4 : i32 to index
      %c0_231 = arith.constant 0 : index
      %1189 = vector.load %arg3[%c0_230, %1188, %c0_231] : memref<3x16x128xf32, #tpu.memory_space<vmem>>, vector<3x8x128xf32>
      tpu.vector_store %arg3[%c0_230, %1188, %c0_231], %1187 {strides = array<i32>} : memref<3x16x128xf32, #tpu.memory_space<vmem>>, vector<3x8x128xf32>,
    }
    %c2_i32_0 = arith.constant 2 : i32
    return
  }
  func.func @transform_0(%arg0: i32) -> (i32, i32, i32) {
    %c0_i32 = arith.constant 0 : i32
    %c0_i32_0 = arith.constant 0 : i32
    %c0_i32_1 = arith.constant 0 : i32
    return %c0_i32, %arg0, %c0_i32_0 : i32, i32, i32
  }
  func.func @transform_1(%arg0: i32) -> (i32, i32, i32) {
    %c0_i32 = arith.constant 0 : i32
    %c0_i32_0 = arith.constant 0 : i32
    %c0_i32_1 = arith.constant 0 : i32
    return %c0_i32, %arg0, %c0_i32_0 : i32, i32, i32
  }
  func.func @transform_2(%arg0: i32) -> (i32, i32, i32) {
    %c0_i32 = arith.constant 0 : i32
    %c0_i32_0 = arith.constant 0 : i32
    %c0_i32_1 = arith.constant 0 : i32
    return %c0_i32, %arg0, %c0_i32_0 : i32, i32, i32
  }
}

</mosaic_0001>

<llo_original>
// kernel: tpu_custom_call.1
$region0: #{tpu_custom_call.1}
  #allocation0 [shape = 'u32[]', space=smem, size = 0x4, offset = 0x4, fixed_abs, tag = 'smem constant byte address 0x4 - core index']
  #allocation1 [shape = 'u32[144,128]{1,0:T(1,128)}', space=vmem, size = 0x12000, scoped, tag = 'internal scratch']
  #allocation8 [shape = 's32[]', space=sflag, size = 0x4, offset = 0, fixed_abs, tag = 'sflag constant byte address 0x0 - dummy sync flag']
  #allocation10 [shape = 's32[]', space=sflag, size = 0x4, offset = 0, fixed_abs, tag = 'sflag constant byte address 0x0 - dummy sync flag']
  #allocation12 [shape = 's32[]', space=sflag, size = 0x4, offset = 0, fixed_abs, tag = 'sflag constant byte address 0x0 - dummy sync flag']
  %s0 = inlined_call_operand.hbm [shape: f32[56,32,128], index: 0, kind: input, shape index: {}]
  %s1 = inlined_call_operand.hbm [shape: f32[11,32,128], index: 1, kind: input, shape index: {}]
  %s2 = inlined_call_operand.hbm [shape: f32[3,32,128], index: 2, kind: output, shape index: {}]
  %s3 = sld [smem:[#allocation0]]
  $region56: #{tpu_custom_call.1} parent=0
    _
  %s5 = ssub.s32 1, %s3
  %s6 = scalar_select 0, %s5, %s3
  $region1: #{tpu_custom_call.1} parent=0
    #allocation2 [shape = 'u8[917504]{0}', space=vmem, size = 0xe0000, scoped, tag = 'input window, operand 0']
    #allocation3 [shape = 's32[2]{0}', space=sflag, size = 0x8, scoped, tag = 'scoped memory for tpu_custom_call.1']
    #allocation4 [shape = 's32[2]{0}', space=sflag, size = 0x8, scoped, tag = 'scoped memory for tpu_custom_call.1']
    #allocation5 [shape = 'u8[180224]{0}', space=vmem, size = 0x2c000, scoped, tag = 'input window, operand 1']
    #allocation6 [shape = 's32[2]{0}', space=sflag, size = 0x8, scoped, tag = 'scoped memory for tpu_custom_call.1']
    #allocation7 [shape = 'u8[49152]{0}', space=vmem, size = 0xc000, scoped, tag = 'output window, operand 0']
    %7 = vsyncpa [#allocation3], 0
    %s8 = scalar_lea.sflag [#allocation3], 1
    %9 = vsyncpa %s8, 0
    %10 = vsyncpa [#allocation6], 0
    %s11 = scalar_lea.sflag [#allocation6], 1
    %12 = vsyncpa %s11, 0
    %13 = vsyncpa [#allocation4], 0
    %s14 = scalar_lea.sflag [#allocation4], 1
    %15 = vsyncpa %s14, 0
    loop: start=0, step=1, limit=4
    $region2: #{tpu_custom_call.1} parent=1 // loop_pre_header
      _
    $region3: #{tpu_custom_call.1} parent=1 // loop_header
      %s17 = sphi 0, %s21
      %p18 = scmp.ge.s32.totalorder %s17, 4
      %s27 = sphi 0, %s29
      %s30 = sphi 0, %s27
      %s31 = sphi 0, %s30
      %s47 = sphi 0, %s31
      %s53 = sphi 0, %s55
      %s56 = sphi 0, %s53
      %s57 = sphi 0, %s56
      %s73 = sphi 0, %s57
      %s79 = sphi 0, %s81
      %s82 = sphi 0, %s79
      %s83 = sphi 0, %s82
      %s99 = sphi 0, %s83
    $region4: #{tpu_custom_call.1} parent=1 // loop_header_branch
      %20 = sbr.rel (%p18) target = $region8
    $region5: #{tpu_custom_call.1} parent=1 // loop_body
      %s22 = ssub.s32 %s17, 1
      %s23 = ssub.s32 %s17, 2
      %s24 = sadd.s32 %s17, 1
      %s25 = ssub.s32 %s17, %s24
      %p26 = scmp.eq.s32.totalorder %s25, 0
      %s28 = sadd.s32 %s27, 1
      %s29 = scalar_select %p26, %s27, %s28
      %p32 = pneg %p26
      %p33 = scmp.eq.s32.totalorder %s17, 1
      %p34 = por %p32, %p33
      %p35 = scmp.ne.s32.totalorder %s27, %s30
      %p36 = scmp.eq.s32.totalorder %s17, 0
      %p37 = por %p35, %p36
      %p38 = scmp.ne.s32.totalorder %s27, %s30
      %p39 = scmp.eq.s32.totalorder %s22, 1
      %p40 = por %p38, %p39
      %p41 = scmp.ne.s32.totalorder %s30, %s31
      %p42 = scmp.eq.s32.totalorder %s22, 0
      %p43 = por %p41, %p42
      %p44 = scmp.ne.s32.totalorder %s30, %s31
      %p45 = scmp.eq.s32.totalorder %s23, 1
      %p46 = por %p44, %p45
      %p48 = scmp.ne.s32.totalorder %s31, %s47
      %p49 = scmp.eq.s32.totalorder %s23, 0
      %p50 = por %p48, %p49
      %s51 = ssub.s32 %s17, %s24
      %p52 = scmp.eq.s32.totalorder %s51, 0
      %s54 = sadd.s32 %s53, 1
      %s55 = scalar_select %p52, %s53, %s54
      %p58 = pneg %p52
      %p59 = scmp.eq.s32.totalorder %s17, 1
      %p60 = por %p58, %p59
      %p61 = scmp.ne.s32.totalorder %s53, %s56
      %p62 = scmp.eq.s32.totalorder %s17, 0
      %p63 = por %p61, %p62
      %p64 = scmp.ne.s32.totalorder %s53, %s56
      %p65 = scmp.eq.s32.totalorder %s22, 1
      %p66 = por %p64, %p65
      %p67 = scmp.ne.s32.totalorder %s56, %s57
      %p68 = scmp.eq.s32.totalorder %s22, 0
      %p69 = por %p67, %p68
      %p70 = scmp.ne.s32.totalorder %s56, %s57
      %p71 = scmp.eq.s32.totalorder %s23, 1
      %p72 = por %p70, %p71
      %p74 = scmp.ne.s32.totalorder %s57, %s73
      %p75 = scmp.eq.s32.totalorder %s23, 0
      %p76 = por %p74, %p75
      %s77 = ssub.s32 %s17, %s24
      %p78 = scmp.eq.s32.totalorder %s77, 0
      %s80 = sadd.s32 %s79, 1
      %s81 = scalar_select %p78, %s79, %s80
      %p84 = pneg %p78
      %p85 = scmp.eq.s32.totalorder %s17, 1
      %p86 = por %p84, %p85
      %p87 = scmp.ne.s32.totalorder %s79, %s82
      %p88 = scmp.eq.s32.totalorder %s17, 0
      %p89 = por %p87, %p88
      %p90 = scmp.ne.s32.totalorder %s79, %s82
      %p91 = scmp.eq.s32.totalorder %s22, 1
      %p92 = por %p90, %p91
      %p93 = scmp.ne.s32.totalorder %s82, %s83
      %p94 = scmp.eq.s32.totalorder %s22, 0
      %p95 = por %p93, %p94
      %p96 = scmp.ne.s32.totalorder %s82, %s83
      %p97 = scmp.eq.s32.totalorder %s23, 1
      %p98 = por %p96, %p97
      %p100 = scmp.ne.s32.totalorder %s83, %s99
      %p101 = scmp.eq.s32.totalorder %s23, 0
      %p102 = por %p100, %p101
      %p103 = scmp.le.s32.totalorder 1, %s17
      %p104 = scmp.lt.s32.totalorder %s17, 3
      %p105 = pnand %p103, %p104
      %p106 = pneg %p105
      // Predicated region
      $region9: #{tpu_custom_call.1} parent=5 // pred_check
        _
      $region10: #{tpu_custom_call.1} parent=5 // pred_check_branch
        %108 = sbr.rel (%p105) target = $region12
      $region11: #{tpu_custom_call.1} parent=5 // pred_region
        %s109 = ssub.s32 %s17, 1
      $region12: #{tpu_custom_call.1} parent=5 // pred_fallthru
        _
      %p110 = scmp.lt.s32.totalorder %s17, 2
      // Predicated region
      $region13: #{tpu_custom_call.1} parent=5 // pred_check
        %p111 = pneg %p110
      $region14: #{tpu_custom_call.1} parent=5 // pred_check_branch
        %113 = sbr.rel (%p111) target = $region16
      $region15: #{tpu_custom_call.1} parent=5 // pred_region
        // Predicated region
        $region17: #{tpu_custom_call.1} parent=15 // pred_check
          %p114 = pneg %p37
        $region18: #{tpu_custom_call.1} parent=15 // pred_check_branch
          %116 = sbr.rel (%p114) target = $region20
        $region19: #{tpu_custom_call.1} parent=15 // pred_region
          #allocation9 [shape = 'u32[6]{0}', space=smem, size = 0x18, scoped, tag = 'DMA stride descriptor']
          %s117 = sand.u32 %s27, 1
          %s118 = scalar_lea.sflag [#allocation3], %s117
          %s119 = sand.u32 %s27, 1
          %s120 = smul.addr %s119, 896
          %s121 = scalar_lea.vmem [#allocation2], %s120
          %s122 = smul.u32 2, %s17
          %s124 = ssub.s32 14336, 14336
          %125 = vsyncadd %s118, %s124
          %s126 = smul.addr %s122, 128
          %s127 = scalar_lea.hbm %s0, %s126
          %s129 = sshll.u32 1, 14
          %s130 = sxor.u32 4294967295, %s129
          %s132 = sld [smem:[#allocation0]]
          %s133 = sadd.s32 2, %s132
          %s135 = sshll.u32 7, 26
          %s136 = sxor.u32 4294967295, %s135
          %s137 = sand.u32 0, %s136
          %s138 = sshll.u32 %s133, 26
          %s139 = sor.u32 %s137, %s138
          %s140 = sshll.u32 %s121, 4
          %s141 = int_to_ptr.vmem [resolvable:$true] %s140
          %147 = sst [smem:[#allocation9]] 512
          %s148 = scalar_lea.smem [#allocation9], 1
          %149 = sst [smem:[%s148]] 256
          %s150 = scalar_lea.smem [#allocation9], 2
          %151 = sst [smem:[%s150]] 2
          %s152 = scalar_lea.smem [#allocation9], 3
          %153 = sst [smem:[%s152]] 128
          %s154 = scalar_lea.smem [#allocation9], 4
          %155 = sst [smem:[%s154]] 128
          %s156 = scalar_lea.smem [#allocation9], 5
          %157 = sst [smem:[%s156]] 8
          %159 = dma.general %s127, 14336, %s141, %s118, [#allocation8], [#allocation9], %s139, 0
        $region20: #{tpu_custom_call.1} parent=15 // pred_fallthru
          _
        // Predicated region
        $region21: #{tpu_custom_call.1} parent=15 // pred_check
          %p160 = pneg %p63
        $region22: #{tpu_custom_call.1} parent=15 // pred_check_branch
          %162 = sbr.rel (%p160) target = $region24
        $region23: #{tpu_custom_call.1} parent=15 // pred_region
          #allocation11 [shape = 'u32[6]{0}', space=smem, size = 0x18, scoped, tag = 'DMA stride descriptor']
          %s163 = sand.u32 %s53, 1
          %s164 = scalar_lea.sflag [#allocation6], %s163
          %s165 = sand.u32 %s53, 1
          %s166 = smul.addr %s165, 176
          %s167 = scalar_lea.vmem [#allocation5], %s166
          %s168 = smul.u32 2, %s17
          %s170 = ssub.s32 2816, 2816
          %171 = vsyncadd %s164, %s170
          %s172 = smul.addr %s168, 128
          %s173 = scalar_lea.hbm %s1, %s172
          %s175 = sshll.u32 1, 14
          %s176 = sxor.u32 4294967295, %s175
          %s178 = sld [smem:[#allocation0]]
          %s179 = sadd.s32 2, %s178
          %s181 = sshll.u32 7, 26
          %s182 = sxor.u32 4294967295, %s181
          %s183 = sand.u32 0, %s182
          %s184 = sshll.u32 %s179, 26
          %s185 = sor.u32 %s183, %s184
          %s186 = sshll.u32 %s167, 4
          %s187 = int_to_ptr.vmem [resolvable:$true] %s186
          %193 = sst [smem:[#allocation11]] 512
          %s194 = scalar_lea.smem [#allocation11], 1
          %195 = sst [smem:[%s194]] 256
          %s196 = scalar_lea.smem [#allocation11], 2
          %197 = sst [smem:[%s196]] 2
          %s198 = scalar_lea.smem [#allocation11], 3
          %199 = sst [smem:[%s198]] 128
          %s200 = scalar_lea.smem [#allocation11], 4
          %201 = sst [smem:[%s200]] 128
          %s202 = scalar_lea.smem [#allocation11], 5
          %203 = sst [smem:[%s202]] 8
          %205 = dma.general %s173, 2816, %s187, %s164, [#allocation10], [#allocation11], %s185, 0
        $region24: #{tpu_custom_call.1} parent=15 // pred_fallthru
          _
      $region16: #{tpu_custom_call.1} parent=5 // pred_fallthru
        _
      %p206 = scmp.le.s32.totalorder 1, %s17
      %p207 = scmp.lt.s32.totalorder %s17, 3
      %p208 = pnand %p206, %p207
      %p209 = pneg %p208
      // Predicated region
      $region25: #{tpu_custom_call.1} parent=5 // pred_check
        _
      $region26: #{tpu_custom_call.1} parent=5 // pred_check_branch
        %211 = sbr.rel (%p208) target = $region28
      $region27: #{tpu_custom_call.1} parent=5 // pred_region
        %s212 = ssub.s32 %s17, 1
        %s213 = sand.u32 %s30, 1
        %s214 = scalar_lea.sflag [#allocation3], %s213
        %s215 = sand.u32 %s30, 1
        %s216 = smul.addr %s215, 896
        %s217 = scalar_lea.vmem [#allocation2], %s216
        // Predicated region
        $region29: #{tpu_custom_call.1} parent=27 // pred_check
          %p218 = pneg %p43
        $region30: #{tpu_custom_call.1} parent=27 // pred_check_branch
          %220 = sbr.rel (%p218) target = $region32
        $region31: #{tpu_custom_call.1} parent=27 // pred_region
          %221 = dma.done %s214, 14336
        $region32: #{tpu_custom_call.1} parent=27 // pred_fallthru
          _
        %s222 = sand.u32 %s56, 1
        %s223 = scalar_lea.sflag [#allocation6], %s222
        %s224 = sand.u32 %s56, 1
        %s225 = smul.addr %s224, 176
        %s226 = scalar_lea.vmem [#allocation5], %s225
        // Predicated region
        $region33: #{tpu_custom_call.1} parent=27 // pred_check
          %p227 = pneg %p69
        $region34: #{tpu_custom_call.1} parent=27 // pred_check_branch
          %229 = sbr.rel (%p227) target = $region36
        $region35: #{tpu_custom_call.1} parent=27 // pred_region
          %230 = dma.done %s223, 2816
        $region36: #{tpu_custom_call.1} parent=27 // pred_fallthru
          _
        %s231 = sand.u32 %s30, 1
        %s232 = scalar_lea.sflag [#allocation3], %s231
        %s233 = sand.u32 %s30, 1
        %s234 = smul.addr %s233, 896
        %s235 = scalar_lea.vmem [#allocation2], %s234
        %p236 = pneg %p43
        %p237 = pneg %p40
        %s238 = sand.u32 %s56, 1
        %s239 = scalar_lea.sflag [#allocation6], %s238
        %s240 = sand.u32 %s56, 1
        %s241 = smul.addr %s240, 176
        %s242 = scalar_lea.vmem [#allocation5], %s241
        %p243 = pneg %p69
        %p244 = pneg %p66
        %p245 = pneg %p95
        %p246 = pneg %p92
        %s247 = sand.u32 %s82, 1
        %s248 = scalar_lea.sflag [#allocation4], %s247
        %s249 = sand.u32 %s82, 1
        %s250 = smul.addr %s249, 48
        %s251 = scalar_lea.vmem [#allocation7], %s250
        %s252 = smul.u32 2, %s22
        %s253 = smul.u32 2, %s22
        %s254 = smul.u32 2, %s22
        loop: start=0, step=1, limit=2
        $region37: #{tpu_custom_call.1} parent=27 // loop_pre_header
          _
        $region38: #{tpu_custom_call.1} parent=27 // loop_header
          %s256 = sphi 0, %s260
          %p257 = scmp.ge.s32.totalorder %s256, 2
        $region39: #{tpu_custom_call.1} parent=27 // loop_header_branch
          %259 = sbr.rel (%p257) target = $region43
        $region40: #{tpu_custom_call.1} parent=27 // loop_body
          %s261 = smul.u32 %s256, 8
          %s262 = scalar_lea.vmem %s226, %s261 [#allocation5]
          %v263 = vld [vmem:[%s262] sm:$0xff]
          %v264 = vld [vmem:[%s262 + $0x10] sm:$0xff]
          %v265 = vld [vmem:[%s262 + $0x20] sm:$0xff]
          %s266 = sadd.s32 %s261, 48
          %s267 = scalar_lea.vmem %s226, %s266 [#allocation5]
          %v268 = vld [vmem:[%s267] sm:$0xff]
          %s269 = sadd.s32 %s261, 64
          %s270 = scalar_lea.vmem %s226, %s269 [#allocation5]
          %v271 = vld [vmem:[%s270] sm:$0xff]
          %s272 = sadd.s32 %s261, 80
          %s273 = scalar_lea.vmem %s226, %s272 [#allocation5]
          %v274 = vld [vmem:[%s273] sm:$0xff]
          %v275 = vld [vmem:[%s273 + $0x10] sm:$0xff]
          %v276 = vld [vmem:[%s273 + $0x20] sm:$0xff]
          %s277 = sadd.s32 %s261, 128
          %s278 = scalar_lea.vmem %s226, %s277 [#allocation5]
          %v279 = vld [vmem:[%s278] sm:$0xff]
          %v280 = vld [vmem:[%s278 + $0x10] sm:$0xff]
          %v281 = vld [vmem:[%s278 + $0x20] sm:$0xff]
          %vm282 = vcmp.le.f32.partialorder %v263, 0.04045
          %vm283 = vcmp.le.f32.partialorder %v264, 0.04045
          %vm284 = vcmp.le.f32.partialorder %v265, 0.04045
          %v285 = vrcp.pop 12.92
          %v286 = vmul.f32 %v263, %v285
          %v287 = vmul.f32 %v264, %v285
          %v288 = vmul.f32 %v265, %v285
          %v289 = vmax.f32 %v263, 0.04045
          %v290 = vmax.f32 %v264, 0.04045
          %v291 = vmax.f32 %v265, 0.04045
          %v292 = vadd.f32 %v289, 0.055
          %v293 = vadd.f32 %v290, 0.055
          %v294 = vadd.f32 %v291, 0.055
          %v295 = vrcp.pop 1.055
          %v296 = vmul.f32 %v292, %v295
          %v297 = vmul.f32 %v293, %v295
          %v298 = vmul.f32 %v294, %v295
          %v299 = vpow.f32 %v296, 2.4
          %v300 = vpow.f32 %v297, 2.4
          %v301 = vpow.f32 %v298, 2.4
          %v302 = vsel %vm282, %v286, %v299
          %v303 = vsel %vm283, %v287, %v300
          %v304 = vsel %vm284, %v288, %v301
          %v305 = vsub.f32 1.0, %v268
          %v306 = vmul.f32 %v302, %v305
          %v307 = vmul.f32 %v303, %v305
          %v308 = vmul.f32 %v304, %v305
          %v309 = vmul.f32 %v306, 0.31830987
          %v310 = vmul.f32 %v307, 0.31830987
          %v311 = vmul.f32 %v308, 0.31830987
          %v312 = vmul.f32 %v305, 0.04
          %v313 = vmul.f32 %v302, %v268
          %v314 = vmul.f32 %v303, %v268
          %v315 = vmul.f32 %v304, %v268
          %v316 = vadd.f32 %v312, %v313
          %v317 = vadd.f32 %v312, %v314
          %v318 = vadd.f32 %v312, %v315
          %vm319 = vcmp.eq.f32.partialorder %v274, 0.0
          %vm320 = vcmp.eq.f32.partialorder %v275, 0.0
          %vm321 = vcmp.eq.f32.partialorder %v276, 0.0
          %v322 = vsel %vm319, %v279, %v274
          %v323 = vsel %vm320, %v280, %v275
          %v324 = vsel %vm321, %v281, %v276
          %v325 = vmul.f32 %v322, %v322
          %v326 = vmul.f32 %v323, %v323
          %v327 = vadd.f32 %v325, %v326
          %v328 = vmul.f32 %v324, %v324
          %v329 = vadd.f32 %v327, %v328
          %v330 = vmax.f32 %v329, 1e-12
          %v331 = vrsqrt.pop %v330
          %v332 = vmul.f32 %v322, %v331
          %v333 = vmul.f32 %v323, %v331
          %v334 = vmul.f32 %v324, %v331
          %v335 = vmul.f32 %v279, %v279
          %v336 = vmul.f32 %v280, %v280
          %v337 = vadd.f32 %v335, %v336
          %v338 = vmul.f32 %v281, %v281
          %v339 = vadd.f32 %v337, %v338
          %v340 = vmax.f32 %v339, 1e-12
          %v341 = vrsqrt.pop %v340
          %v342 = vmul.f32 %v279, %v341
          %v343 = vmul.f32 %v280, %v341
          %v344 = vmul.f32 %v281, %v341
          %v345 = vmul.f32 %v271, %v271
          %v346 = vmax.f32 %v345, 0.001
          %v347 = vmin.f32 %v346, 1.0
          %v348 = vmul.f32 %v347, 3.1415927
          %v349 = vrcp.pop %v348
          %v350 = vmul.f32 1.0, %v349
          %v351 = vmax.f32 %v347, 1e-06
          %v352 = vrcp.pop %v351
          %v353 = vmul.f32 2.0, %v352
          %v354 = vmax.f32 %v353, 0.5
          %v355 = vmin.f32 %v354, 30.0
          %v356 = vmul.f32 %v342, %v332
          %v357 = vmul.f32 %v343, %v333
          %v358 = vadd.f32 %v356, %v357
          %v359 = vmul.f32 %v344, %v334
          %v360 = vadd.f32 %v358, %v359
          %v361 = vmul.f32 %v360, 2.0
          %v362 = vmul.f32 %v361, %v332
          %v363 = vmul.f32 %v361, %v333
          %v364 = vmul.f32 %v361, %v334
          %v365 = vsub.f32 %v362, %v342
          %v366 = vsub.f32 %v363, %v343
          %v367 = vsub.f32 %v364, %v344
          %v368 = vmul.f32 %v365, %v365
          %v369 = vmul.f32 %v366, %v366
          %v370 = vadd.f32 %v368, %v369
          %v371 = vmul.f32 %v367, %v367
          %v372 = vadd.f32 %v370, %v371
          %v373 = vmax.f32 %v372, 1e-12
          %v374 = vrsqrt.pop %v373
          %v375 = vmul.f32 %v365, %v374
          %v376 = vmul.f32 %v366, %v374
          %v377 = vmul.f32 %v367, %v374
          %v378 = vmax.f32 %v360, 0.0001
          %v379 = vmin.f32 %v378, 1.0
          %v380 = vmul.f32 %v379, 4.0
          %v381 = vrcp.pop %v380
          %v382 = vmul.f32 %v355, %v381
          %v383 = vmax.f32 %v382, 0.5
          %v384 = vmin.f32 %v383, 30.0
          %v385 = vmul.f32 %v332, %v375
          %v386 = vmul.f32 %v333, %v376
          %v387 = vadd.f32 %v385, %v386
          %v388 = vmul.f32 %v334, %v377
          %v389 = vadd.f32 %v387, %v388
          %v390 = vmax.f32 %v389, 0.0
          %v391 = vmin.f32 %v390, 1.0
          %v392 = vmax.f32 %v360, 0.0
          %v393 = vmin.f32 %v392, 1.0
          %v394 = vadd.f32 %v375, %v342
          %v395 = vadd.f32 %v376, %v343
          %v396 = vadd.f32 %v377, %v344
          %v397 = vmul.f32 %v394, %v394
          %v398 = vmul.f32 %v395, %v395
          %v399 = vadd.f32 %v397, %v398
          %v400 = vmul.f32 %v396, %v396
          %v401 = vadd.f32 %v399, %v400
          %v402 = vmax.f32 %v401, 1e-12
          %v403 = vrsqrt.pop %v402
          %v404 = vmul.f32 %v394, %v403
          %v405 = vmul.f32 %v395, %v403
          %v406 = vmul.f32 %v396, %v403
          %v407 = vmul.f32 %v375, %v404
          %v408 = vmul.f32 %v376, %v405
          %v409 = vadd.f32 %v407, %v408
          %v410 = vmul.f32 %v377, %v406
          %v411 = vadd.f32 %v409, %v410
          %v412 = vmax.f32 %v411, 0.0
          %v413 = vmin.f32 %v412, 1.0
          %v414 = vsub.f32 1.0, %v347
          %v415 = vmul.f32 %v414, %v391
          %v416 = vmul.f32 %v415, %v391
          %v417 = vadd.f32 %v347, %v416
          %v418 = vmax.f32 %v417, 1e-12
          %v419 = vrsqrt.pop %v418
          %v420 = vmul.f32 %v418, %v419
          %vm421 = vcmp.eq.f32.partialorder %v418, inf
          %v422 = vsel %vm421, %v418, %v420
          %vm423 = vcmp.eq.f32.partialorder %v418, 0.0
          %v424 = vand.u32 %v418, 2147483648
          %v425 = vsel %vm423, %v424, %v422
          %v426 = vadd.f32 %v391, %v425
          %v427 = vrcp.pop %v426
          %v428 = vmul.f32 1.0, %v427
          %v429 = vmul.f32 %v414, %v393
          %v430 = vmul.f32 %v429, %v393
          %v431 = vadd.f32 %v347, %v430
          %v432 = vmax.f32 %v431, 1e-12
          %v433 = vrsqrt.pop %v432
          %v434 = vmul.f32 %v432, %v433
          %vm435 = vcmp.eq.f32.partialorder %v432, inf
          %v436 = vsel %vm435, %v432, %v434
          %vm437 = vcmp.eq.f32.partialorder %v432, 0.0
          %v438 = vand.u32 %v432, 2147483648
          %v439 = vsel %vm437, %v438, %v436
          %v440 = vadd.f32 %v393, %v439
          %v441 = vrcp.pop %v440
          %v442 = vmul.f32 1.0, %v441
          %v443 = vmul.f32 %v428, %v442
          %v444 = vsub.f32 1.0, %v413
          %v445 = vmul.f32 %v444, %v444
          %v446 = vmul.f32 %v445, %v445
          %v447 = vmul.f32 %v446, %v444
          %v448 = vsub.f32 1.0, %v316
          %v449 = vsub.f32 1.0, %v317
          %v450 = vsub.f32 1.0, %v318
          %v451 = vmul.f32 %v448, %v447
          %v452 = vmul.f32 %v449, %v447
          %v453 = vmul.f32 %v450, %v447
          %v454 = vadd.f32 %v316, %v451
          %v455 = vadd.f32 %v317, %v452
          %v456 = vadd.f32 %v318, %v453
          %v457 = vmul.f32 %v443, %v454
          %v458 = vmul.f32 %v443, %v455
          %v459 = vmul.f32 %v443, %v456
          %v460 = vmul.f32 %v457, %v391
          %v461 = vmul.f32 %v458, %v391
          %v462 = vmul.f32 %v459, %v391
          %v463 = vmul.f32 %v384, %v375
          %v464 = vmul.f32 %v384, %v376
          %v465 = vmul.f32 %v384, %v377
          %v466 = vmul.f32 %v350, 6.2831855
          %s467 = scalar_lea.vmem %s217, %s261 [#allocation2]
          %v468 = vld [vmem:[%s467] sm:$0xff]
          %v469 = vld [vmem:[%s467 + $0x10] sm:$0xff]
          %v470 = vld [vmem:[%s467 + $0x20] sm:$0xff]
          %v471 = vand.u32 2147483647, %v468
          %v472 = vand.u32 2147483647, %v469
          %v473 = vand.u32 2147483647, %v470
          %s474 = scalar_lea.vmem %s217, %s266 [#allocation2]
          %v475 = vld [vmem:[%s474] sm:$0xff]
          %v476 = vld [vmem:[%s474 + $0x10] sm:$0xff]
          %v477 = vld [vmem:[%s474 + $0x20] sm:$0xff]
          %v478 = vmul.f32 %v475, %v475
          %v479 = vmul.f32 %v476, %v476
          %v480 = vadd.f32 %v478, %v479
          %v481 = vmul.f32 %v477, %v477
          %v482 = vadd.f32 %v480, %v481
          %v483 = vmax.f32 %v482, 1e-12
          %v484 = vrsqrt.pop %v483
          %v485 = vmul.f32 %v475, %v484
          %v486 = vmul.f32 %v476, %v484
          %v487 = vmul.f32 %v477, %v484
          %s488 = sadd.s32 %s261, 96
          %s489 = scalar_lea.vmem %s217, %s488 [#allocation2]
          %v490 = vld [vmem:[%s489] sm:$0xff]
          %v491 = vmax.f32 %v490, 0.5
          %v492 = vmin.f32 %v491, 30.0
          %v493 = vmul.f32 %v485, %v332
          %v494 = vmul.f32 %v486, %v333
          %v495 = vadd.f32 %v493, %v494
          %v496 = vmul.f32 %v487, %v334
          %v497 = vadd.f32 %v495, %v496
          %v498 = vmax.f32 %v497, 0.0
          %v499 = vmin.f32 %v498, 1.0
          %v500 = vsub.f32 0.0, %v492
          %v501 = vmul.f32 %v500, 1.442695
          %v502 = vpow.pop %v501
          %v503 = vmul.f32 %v502, %v502
          %v504 = vrcp.pop %v492
          %v505 = vmul.f32 1.0, %v504
          %v506 = vmul.f32 %v503, 2.0
          %v507 = vadd.f32 %v506, 1.0
          %v508 = vsub.f32 %v507, %v505
          %v509 = vsub.f32 %v502, %v503
          %v510 = vmul.f32 %v509, %v505
          %v511 = vsub.f32 %v510, %v503
          %v512 = vsub.f32 1.0, %v508
          %v513 = vmax.f32 %v512, 1e-12
          %v514 = vrsqrt.pop %v513
          %v515 = vmul.f32 %v513, %v514
          %vm516 = vcmp.eq.f32.partialorder %v513, inf
          %v517 = vsel %vm516, %v513, %v515
          %vm518 = vcmp.eq.f32.partialorder %v513, 0.0
          %v519 = vand.u32 %v513, 2147483648
          %v520 = vsel %vm518, %v519, %v517
          %v521 = vmul.f32 %v499, 0.36
          %v522 = vmul.f32 %v520, 0.6944444
          %v523 = vadd.f32 %v521, %v522
          %v524 = vand.u32 2147483647, %v521
          %vm525 = vcmp.le.f32.partialorder %v524, %v522
          %v526 = vmax.f32 %v520, 1e-06
          %v527 = vrcp.pop %v526
          %v528 = vmul.f32 %v523, %v527
          %v529 = vmul.f32 %v523, %v528
          %v530 = vsel %vm525, %v529, %v499
          %v531 = vmul.f32 %v508, %v530
          %v532 = vadd.f32 %v531, %v511
          %v533 = vmul.f32 %v505, 6.2831855
          %v534 = vsub.f32 1.0, %v503
          %v535 = vmul.f32 %v533, %v534
          %v536 = vmul.f32 %v532, %v535
          %v537 = vmul.f32 %v471, %v309
          %v538 = vmul.f32 %v472, %v310
          %v539 = vmul.f32 %v473, %v311
          %v540 = vmul.f32 %v536, %v537
          %v541 = vmul.f32 %v536, %v538
          %v542 = vmul.f32 %v536, %v539
          %v543 = vadd.f32 %v540, 0.0
          %v544 = vadd.f32 %v541, 0.0
          %v545 = vadd.f32 %v542, 0.0
          %v546 = vmul.f32 %v492, %v485
          %v547 = vmul.f32 %v492, %v486
          %v548 = vmul.f32 %v492, %v487
          %v549 = vadd.f32 %v463, %v546
          %v550 = vadd.f32 %v464, %v547
          %v551 = vadd.f32 %v465, %v548
          %v552 = vmul.f32 %v549, %v549
          %v553 = vmul.f32 %v550, %v550
          %v554 = vadd.f32 %v552, %v553
          %v555 = vmul.f32 %v551, %v551
          %v556 = vadd.f32 %v554, %v555
          %v557 = vmax.f32 %v556, 1e-12
          %v558 = vrsqrt.pop %v557
          %v559 = vmul.f32 %v557, %v558
          %vm560 = vcmp.eq.f32.partialorder %v557, inf
          %v561 = vsel %vm560, %v557, %v559
          %vm562 = vcmp.eq.f32.partialorder %v557, 0.0
          %v563 = vand.u32 %v557, 2147483648
          %v564 = vsel %vm562, %v563, %v561
          %v565 = vmul.f32 %v564, -2.0
          %v566 = vmul.f32 %v565, 1.442695
          %v567 = vpow.pop %v566
          %v568 = vsub.f32 1.0, %v567
          %v569 = vsub.f32 %v564, %v384
          %v570 = vsub.f32 %v569, %v492
          %v571 = vmul.f32 %v570, 1.442695
          %v572 = vpow.pop %v571
          %v573 = vmul.f32 %v466, %v572
          %v574 = vrcp.pop %v564
          %v575 = vmul.f32 %v568, %v574
          %v576 = vmul.f32 %v573, %v575
          %v577 = vmul.f32 %v576, %v471
          %v578 = vmul.f32 %v576, %v472
          %v579 = vmul.f32 %v576, %v473
          %v580 = vmul.f32 %v577, %v460
          %v581 = vmul.f32 %v578, %v461
          %v582 = vmul.f32 %v579, %v462
          %v583 = vadd.f32 %v543, %v580
          %v584 = vadd.f32 %v544, %v581
          %v585 = vadd.f32 %v545, %v582
          %s586 = sadd.s32 %s261, 112
          %s587 = scalar_lea.vmem %s217, %s586 [#allocation2]
          %v588 = vld [vmem:[%s587] sm:$0xff]
          %v589 = vld [vmem:[%s587 + $0x10] sm:$0xff]
          %v590 = vld [vmem:[%s587 + $0x20] sm:$0xff]
          %v591 = vand.u32 2147483647, %v588
          %v592 = vand.u32 2147483647, %v589
          %v593 = vand.u32 2147483647, %v590
          %s594 = sadd.s32 %s261, 160
          %s595 = scalar_lea.vmem %s217, %s594 [#allocation2]
          %v596 = vld [vmem:[%s595] sm:$0xff]
          %v597 = vld [vmem:[%s595 + $0x10] sm:$0xff]
          %v598 = vld [vmem:[%s595 + $0x20] sm:$0xff]
          %v599 = vmul.f32 %v596, %v596
          %v600 = vmul.f32 %v597, %v597
          %v601 = vadd.f32 %v599, %v600
          %v602 = vmul.f32 %v598, %v598
          %v603 = vadd.f32 %v601, %v602
          %v604 = vmax.f32 %v603, 1e-12
          %v605 = vrsqrt.pop %v604
          %v606 = vmul.f32 %v596, %v605
          %v607 = vmul.f32 %v597, %v605
          %v608 = vmul.f32 %v598, %v605
          %s609 = sadd.s32 %s261, 208
          %s610 = scalar_lea.vmem %s217, %s609 [#allocation2]
          %v611 = vld [vmem:[%s610] sm:$0xff]
          %v612 = vmax.f32 %v611, 0.5
          %v613 = vmin.f32 %v612, 30.0
          %v614 = vmul.f32 %v606, %v332
          %v615 = vmul.f32 %v607, %v333
          %v616 = vadd.f32 %v614, %v615
          %v617 = vmul.f32 %v608, %v334
          %v618 = vadd.f32 %v616, %v617
          %v619 = vmax.f32 %v618, 0.0
          %v620 = vmin.f32 %v619, 1.0
          %v621 = vsub.f32 0.0, %v613
          %v622 = vmul.f32 %v621, 1.442695
          %v623 = vpow.pop %v622
          %v624 = vmul.f32 %v623, %v623
          %v625 = vrcp.pop %v613
          %v626 = vmul.f32 1.0, %v625
          %v627 = vmul.f32 %v624, 2.0
          %v628 = vadd.f32 %v627, 1.0
          %v629 = vsub.f32 %v628, %v626
          %v630 = vsub.f32 %v623, %v624
          %v631 = vmul.f32 %v630, %v626
          %v632 = vsub.f32 %v631, %v624
          %v633 = vsub.f32 1.0, %v629
          %v634 = vmax.f32 %v633, 1e-12
          %v635 = vrsqrt.pop %v634
          %v636 = vmul.f32 %v634, %v635
          %vm637 = vcmp.eq.f32.partialorder %v634, inf
          %v638 = vsel %vm637, %v634, %v636
          %vm639 = vcmp.eq.f32.partialorder %v634, 0.0
          %v640 = vand.u32 %v634, 2147483648
          %v641 = vsel %vm639, %v640, %v638
          %v642 = vmul.f32 %v620, 0.36
          %v643 = vmul.f32 %v641, 0.6944444
          %v644 = vadd.f32 %v642, %v643
          %v645 = vand.u32 2147483647, %v642
          %vm646 = vcmp.le.f32.partialorder %v645, %v643
          %v647 = vmax.f32 %v641, 1e-06
          %v648 = vrcp.pop %v647
          %v649 = vmul.f32 %v644, %v648
          %v650 = vmul.f32 %v644, %v649
          %v651 = vsel %vm646, %v650, %v620
          %v652 = vmul.f32 %v629, %v651
          %v653 = vadd.f32 %v652, %v632
          %v654 = vmul.f32 %v626, 6.2831855
          %v655 = vsub.f32 1.0, %v624
          %v656 = vmul.f32 %v654, %v655
          %v657 = vmul.f32 %v653, %v656
          %v658 = vmul.f32 %v591, %v309
          %v659 = vmul.f32 %v592, %v310
          %v660 = vmul.f32 %v593, %v311
          %v661 = vmul.f32 %v657, %v658
          %v662 = vmul.f32 %v657, %v659
          %v663 = vmul.f32 %v657, %v660
          %v664 = vadd.f32 %v583, %v661
          %v665 = vadd.f32 %v584, %v662
          %v666 = vadd.f32 %v585, %v663
          %v667 = vmul.f32 %v613, %v606
          %v668 = vmul.f32 %v613, %v607
          %v669 = vmul.f32 %v613, %v608
          %v670 = vadd.f32 %v463, %v667
          %v671 = vadd.f32 %v464, %v668
          %v672 = vadd.f32 %v465, %v669
          %v673 = vmul.f32 %v670, %v670
          %v674 = vmul.f32 %v671, %v671
          %v675 = vadd.f32 %v673, %v674
          %v676 = vmul.f32 %v672, %v672
          %v677 = vadd.f32 %v675, %v676
          %v678 = vmax.f32 %v677, 1e-12
          %v679 = vrsqrt.pop %v678
          %v680 = vmul.f32 %v678, %v679
          %vm681 = vcmp.eq.f32.partialorder %v678, inf
          %v682 = vsel %vm681, %v678, %v680
          %vm683 = vcmp.eq.f32.partialorder %v678, 0.0
          %v684 = vand.u32 %v678, 2147483648
          %v685 = vsel %vm683, %v684, %v682
          %v686 = vmul.f32 %v685, -2.0
          %v687 = vmul.f32 %v686, 1.442695
          %v688 = vpow.pop %v687
          %v689 = vsub.f32 1.0, %v688
          %v690 = vsub.f32 %v685, %v384
          %v691 = vsub.f32 %v690, %v613
          %v692 = vmul.f32 %v691, 1.442695
          %v693 = vpow.pop %v692
          %v694 = vmul.f32 %v466, %v693
          %v695 = vrcp.pop %v685
          %v696 = vmul.f32 %v689, %v695
          %v697 = vmul.f32 %v694, %v696
          %v698 = vmul.f32 %v697, %v591
          %v699 = vmul.f32 %v697, %v592
          %v700 = vmul.f32 %v697, %v593
          %v701 = vmul.f32 %v698, %v460
          %v702 = vmul.f32 %v699, %v461
          %v703 = vmul.f32 %v700, %v462
          %v704 = vadd.f32 %v664, %v701
          %v705 = vadd.f32 %v665, %v702
          %v706 = vadd.f32 %v666, %v703
          %s707 = sadd.s32 %s261, 224
          %s708 = scalar_lea.vmem %s217, %s707 [#allocation2]
          %v709 = vld [vmem:[%s708] sm:$0xff]
          %v710 = vld [vmem:[%s708 + $0x10] sm:$0xff]
          %v711 = vld [vmem:[%s708 + $0x20] sm:$0xff]
          %v712 = vand.u32 2147483647, %v709
          %v713 = vand.u32 2147483647, %v710
          %v714 = vand.u32 2147483647, %v711
          %s715 = sadd.s32 %s261, 272
          %s716 = scalar_lea.vmem %s217, %s715 [#allocation2]
          %v717 = vld [vmem:[%s716] sm:$0xff]
          %v718 = vld [vmem:[%s716 + $0x10] sm:$0xff]
          %v719 = vld [vmem:[%s716 + $0x20] sm:$0xff]
          %v720 = vmul.f32 %v717, %v717
          %v721 = vmul.f32 %v718, %v718
          %v722 = vadd.f32 %v720, %v721
          %v723 = vmul.f32 %v719, %v719
          %v724 = vadd.f32 %v722, %v723
          %v725 = vmax.f32 %v724, 1e-12
          %v726 = vrsqrt.pop %v725
          %v727 = vmul.f32 %v717, %v726
          %v728 = vmul.f32 %v718, %v726
          %v729 = vmul.f32 %v719, %v726
          %s730 = sadd.s32 %s261, 320
          %s731 = scalar_lea.vmem %s217, %s730 [#allocation2]
          %v732 = vld [vmem:[%s731] sm:$0xff]
          %v733 = vmax.f32 %v732, 0.5
          %v734 = vmin.f32 %v733, 30.0
          %v735 = vmul.f32 %v727, %v332
          %v736 = vmul.f32 %v728, %v333
          %v737 = vadd.f32 %v735, %v736
          %v738 = vmul.f32 %v729, %v334
          %v739 = vadd.f32 %v737, %v738
          %v740 = vmax.f32 %v739, 0.0
          %v741 = vmin.f32 %v740, 1.0
          %v742 = vsub.f32 0.0, %v734
          %v743 = vmul.f32 %v742, 1.442695
          %v744 = vpow.pop %v743
          %v745 = vmul.f32 %v744, %v744
          %v746 = vrcp.pop %v734
          %v747 = vmul.f32 1.0, %v746
          %v748 = vmul.f32 %v745, 2.0
          %v749 = vadd.f32 %v748, 1.0
          %v750 = vsub.f32 %v749, %v747
          %v751 = vsub.f32 %v744, %v745
          %v752 = vmul.f32 %v751, %v747
          %v753 = vsub.f32 %v752, %v745
          %v754 = vsub.f32 1.0, %v750
          %v755 = vmax.f32 %v754, 1e-12
          %v756 = vrsqrt.pop %v755
          %v757 = vmul.f32 %v755, %v756
          %vm758 = vcmp.eq.f32.partialorder %v755, inf
          %v759 = vsel %vm758, %v755, %v757
          %vm760 = vcmp.eq.f32.partialorder %v755, 0.0
          %v761 = vand.u32 %v755, 2147483648
          %v762 = vsel %vm760, %v761, %v759
          %v763 = vmul.f32 %v741, 0.36
          %v764 = vmul.f32 %v762, 0.6944444
          %v765 = vadd.f32 %v763, %v764
          %v766 = vand.u32 2147483647, %v763
          %vm767 = vcmp.le.f32.partialorder %v766, %v764
          %v768 = vmax.f32 %v762, 1e-06
          %v769 = vrcp.pop %v768
          %v770 = vmul.f32 %v765, %v769
          %v771 = vmul.f32 %v765, %v770
          %v772 = vsel %vm767, %v771, %v741
          %v773 = vmul.f32 %v750, %v772
          %v774 = vadd.f32 %v773, %v753
          %v775 = vmul.f32 %v747, 6.2831855
          %v776 = vsub.f32 1.0, %v745
          %v777 = vmul.f32 %v775, %v776
          %v778 = vmul.f32 %v774, %v777
          %v779 = vmul.f32 %v712, %v309
          %v780 = vmul.f32 %v713, %v310
          %v781 = vmul.f32 %v714, %v311
          %v782 = vmul.f32 %v778, %v779
          %v783 = vmul.f32 %v778, %v780
          %v784 = vmul.f32 %v778, %v781
          %v785 = vadd.f32 %v704, %v782
          %v786 = vadd.f32 %v705, %v783
          %v787 = vadd.f32 %v706, %v784
          %v788 = vmul.f32 %v734, %v727
          %v789 = vmul.f32 %v734, %v728
          %v790 = vmul.f32 %v734, %v729
          %v791 = vadd.f32 %v463, %v788
          %v792 = vadd.f32 %v464, %v789
          %v793 = vadd.f32 %v465, %v790
          %v794 = vmul.f32 %v791, %v791
          %v795 = vmul.f32 %v792, %v792
          %v796 = vadd.f32 %v794, %v795
          %v797 = vmul.f32 %v793, %v793
          %v798 = vadd.f32 %v796, %v797
          %v799 = vmax.f32 %v798, 1e-12
          %v800 = vrsqrt.pop %v799
          %v801 = vmul.f32 %v799, %v800
          %vm802 = vcmp.eq.f32.partialorder %v799, inf
          %v803 = vsel %vm802, %v799, %v801
          %vm804 = vcmp.eq.f32.partialorder %v799, 0.0
          %v805 = vand.u32 %v799, 2147483648
          %v806 = vsel %vm804, %v805, %v803
          %v807 = vmul.f32 %v806, -2.0
          %v808 = vmul.f32 %v807, 1.442695
          %v809 = vpow.pop %v808
          %v810 = vsub.f32 1.0, %v809
          %v811 = vsub.f32 %v806, %v384
          %v812 = vsub.f32 %v811, %v734
          %v813 = vmul.f32 %v812, 1.442695
          %v814 = vpow.pop %v813
          %v815 = vmul.f32 %v466, %v814
          %v816 = vrcp.pop %v806
          %v817 = vmul.f32 %v810, %v816
          %v818 = vmul.f32 %v815, %v817
          %v819 = vmul.f32 %v818, %v712
          %v820 = vmul.f32 %v818, %v713
          %v821 = vmul.f32 %v818, %v714
          %v822 = vmul.f32 %v819, %v460
          %v823 = vmul.f32 %v820, %v461
          %v824 = vmul.f32 %v821, %v462
          %v825 = vadd.f32 %v785, %v822
          %v826 = vadd.f32 %v786, %v823
          %v827 = vadd.f32 %v787, %v824
          %s828 = sadd.s32 %s261, 336
          %s829 = scalar_lea.vmem %s217, %s828 [#allocation2]
          %v830 = vld [vmem:[%s829] sm:$0xff]
          %v831 = vld [vmem:[%s829 + $0x10] sm:$0xff]
          %v832 = vld [vmem:[%s829 + $0x20] sm:$0xff]
          %v833 = vand.u32 2147483647, %v830
          %v834 = vand.u32 2147483647, %v831
          %v835 = vand.u32 2147483647, %v832
          %s836 = sadd.s32 %s261, 384
          %s837 = scalar_lea.vmem %s217, %s836 [#allocation2]
          %v838 = vld [vmem:[%s837] sm:$0xff]
          %v839 = vld [vmem:[%s837 + $0x10] sm:$0xff]
          %v840 = vld [vmem:[%s837 + $0x20] sm:$0xff]
          %v841 = vmul.f32 %v838, %v838
          %v842 = vmul.f32 %v839, %v839
          %v843 = vadd.f32 %v841, %v842
          %v844 = vmul.f32 %v840, %v840
          %v845 = vadd.f32 %v843, %v844
          %v846 = vmax.f32 %v845, 1e-12
          %v847 = vrsqrt.pop %v846
          %v848 = vmul.f32 %v838, %v847
          %v849 = vmul.f32 %v839, %v847
          %v850 = vmul.f32 %v840, %v847
          %s851 = sadd.s32 %s261, 432
          %s852 = scalar_lea.vmem %s217, %s851 [#allocation2]
          %v853 = vld [vmem:[%s852] sm:$0xff]
          %v854 = vmax.f32 %v853, 0.5
          %v855 = vmin.f32 %v854, 30.0
          %v856 = vmul.f32 %v848, %v332
          %v857 = vmul.f32 %v849, %v333
          %v858 = vadd.f32 %v856, %v857
          %v859 = vmul.f32 %v850, %v334
          %v860 = vadd.f32 %v858, %v859
          %v861 = vmax.f32 %v860, 0.0
          %v862 = vmin.f32 %v861, 1.0
          %v863 = vsub.f32 0.0, %v855
          %v864 = vmul.f32 %v863, 1.442695
          %v865 = vpow.pop %v864
          %v866 = vmul.f32 %v865, %v865
          %v867 = vrcp.pop %v855
          %v868 = vmul.f32 1.0, %v867
          %v869 = vmul.f32 %v866, 2.0
          %v870 = vadd.f32 %v869, 1.0
          %v871 = vsub.f32 %v870, %v868
          %v872 = vsub.f32 %v865, %v866
          %v873 = vmul.f32 %v872, %v868
          %v874 = vsub.f32 %v873, %v866
          %v875 = vsub.f32 1.0, %v871
          %v876 = vmax.f32 %v875, 1e-12
          %v877 = vrsqrt.pop %v876
          %v878 = vmul.f32 %v876, %v877
          %vm879 = vcmp.eq.f32.partialorder %v876, inf
          %v880 = vsel %vm879, %v876, %v878
          %vm881 = vcmp.eq.f32.partialorder %v876, 0.0
          %v882 = vand.u32 %v876, 2147483648
          %v883 = vsel %vm881, %v882, %v880
          %v884 = vmul.f32 %v862, 0.36
          %v885 = vmul.f32 %v883, 0.6944444
          %v886 = vadd.f32 %v884, %v885
          %v887 = vand.u32 2147483647, %v884
          %vm888 = vcmp.le.f32.partialorder %v887, %v885
          %v889 = vmax.f32 %v883, 1e-06
          %v890 = vrcp.pop %v889
          %v891 = vmul.f32 %v886, %v890
          %v892 = vmul.f32 %v886, %v891
          %v893 = vsel %vm888, %v892, %v862
          %v894 = vmul.f32 %v871, %v893
          %v895 = vadd.f32 %v894, %v874
          %v896 = vmul.f32 %v868, 6.2831855
          %v897 = vsub.f32 1.0, %v866
          %v898 = vmul.f32 %v896, %v897
          %v899 = vmul.f32 %v895, %v898
          %v900 = vmul.f32 %v833, %v309
          %v901 = vmul.f32 %v834, %v310
          %v902 = vmul.f32 %v835, %v311
          %v903 = vmul.f32 %v899, %v900
          %v904 = vmul.f32 %v899, %v901
          %v905 = vmul.f32 %v899, %v902
          %v906 = vadd.f32 %v825, %v903
          %v907 = vadd.f32 %v826, %v904
          %v908 = vadd.f32 %v827, %v905
          %v909 = vmul.f32 %v855, %v848
          %v910 = vmul.f32 %v855, %v849
          %v911 = vmul.f32 %v855, %v850
          %v912 = vadd.f32 %v463, %v909
          %v913 = vadd.f32 %v464, %v910
          %v914 = vadd.f32 %v465, %v911
          %v915 = vmul.f32 %v912, %v912
          %v916 = vmul.f32 %v913, %v913
          %v917 = vadd.f32 %v915, %v916
          %v918 = vmul.f32 %v914, %v914
          %v919 = vadd.f32 %v917, %v918
          %v920 = vmax.f32 %v919, 1e-12
          %v921 = vrsqrt.pop %v920
          %v922 = vmul.f32 %v920, %v921
          %vm923 = vcmp.eq.f32.partialorder %v920, inf
          %v924 = vsel %vm923, %v920, %v922
          %vm925 = vcmp.eq.f32.partialorder %v920, 0.0
          %v926 = vand.u32 %v920, 2147483648
          %v927 = vsel %vm925, %v926, %v924
          %v928 = vmul.f32 %v927, -2.0
          %v929 = vmul.f32 %v928, 1.442695
          %v930 = vpow.pop %v929
          %v931 = vsub.f32 1.0, %v930
          %v932 = vsub.f32 %v927, %v384
          %v933 = vsub.f32 %v932, %v855
          %v934 = vmul.f32 %v933, 1.442695
          %v935 = vpow.pop %v934
          %v936 = vmul.f32 %v466, %v935
          %v937 = vrcp.pop %v927
          %v938 = vmul.f32 %v931, %v937
          %v939 = vmul.f32 %v936, %v938
          %v940 = vmul.f32 %v939, %v833
          %v941 = vmul.f32 %v939, %v834
          %v942 = vmul.f32 %v939, %v835
          %v943 = vmul.f32 %v940, %v460
          %v944 = vmul.f32 %v941, %v461
          %v945 = vmul.f32 %v942, %v462
          %v946 = vadd.f32 %v906, %v943
          %v947 = vadd.f32 %v907, %v944
          %v948 = vadd.f32 %v908, %v945
          %s949 = sadd.s32 %s261, 448
          %s950 = scalar_lea.vmem %s217, %s949 [#allocation2]
          %v951 = vld [vmem:[%s950] sm:$0xff]
          %v952 = vld [vmem:[%s950 + $0x10] sm:$0xff]
          %v953 = vld [vmem:[%s950 + $0x20] sm:$0xff]
          %v954 = vand.u32 2147483647, %v951
          %v955 = vand.u32 2147483647, %v952
          %v956 = vand.u32 2147483647, %v953
          %s957 = sadd.s32 %s261, 496
          %s958 = scalar_lea.vmem %s217, %s957 [#allocation2]
          %v959 = vld [vmem:[%s958] sm:$0xff]
          %v960 = vld [vmem:[%s958 + $0x10] sm:$0xff]
          %v961 = vld [vmem:[%s958 + $0x20] sm:$0xff]
          %v962 = vmul.f32 %v959, %v959
          %v963 = vmul.f32 %v960, %v960
          %v964 = vadd.f32 %v962, %v963
          %v965 = vmul.f32 %v961, %v961
          %v966 = vadd.f32 %v964, %v965
          %v967 = vmax.f32 %v966, 1e-12
          %v968 = vrsqrt.pop %v967
          %v969 = vmul.f32 %v959, %v968
          %v970 = vmul.f32 %v960, %v968
          %v971 = vmul.f32 %v961, %v968
          %s972 = sadd.s32 %s261, 544
          %s973 = scalar_lea.vmem %s217, %s972 [#allocation2]
          %v974 = vld [vmem:[%s973] sm:$0xff]
          %v975 = vmax.f32 %v974, 0.5
          %v976 = vmin.f32 %v975, 30.0
          %v977 = vmul.f32 %v969, %v332
          %v978 = vmul.f32 %v970, %v333
          %v979 = vadd.f32 %v977, %v978
          %v980 = vmul.f32 %v971, %v334
          %v981 = vadd.f32 %v979, %v980
          %v982 = vmax.f32 %v981, 0.0
          %v983 = vmin.f32 %v982, 1.0
          %v984 = vsub.f32 0.0, %v976
          %v985 = vmul.f32 %v984, 1.442695
          %v986 = vpow.pop %v985
          %v987 = vmul.f32 %v986, %v986
          %v988 = vrcp.pop %v976
          %v989 = vmul.f32 1.0, %v988
          %v990 = vmul.f32 %v987, 2.0
          %v991 = vadd.f32 %v990, 1.0
          %v992 = vsub.f32 %v991, %v989
          %v993 = vsub.f32 %v986, %v987
          %v994 = vmul.f32 %v993, %v989
          %v995 = vsub.f32 %v994, %v987
          %v996 = vsub.f32 1.0, %v992
          %v997 = vmax.f32 %v996, 1e-12
          %v998 = vrsqrt.pop %v997
          %v999 = vmul.f32 %v997, %v998
          %vm1000 = vcmp.eq.f32.partialorder %v997, inf
          %v1001 = vsel %vm1000, %v997, %v999
          %vm1002 = vcmp.eq.f32.partialorder %v997, 0.0
          %v1003 = vand.u32 %v997, 2147483648
          %v1004 = vsel %vm1002, %v1003, %v1001
          %v1005 = vmul.f32 %v983, 0.36
          %v1006 = vmul.f32 %v1004, 0.6944444
          %v1007 = vadd.f32 %v1005, %v1006
          %v1008 = vand.u32 2147483647, %v1005
          %vm1009 = vcmp.le.f32.partialorder %v1008, %v1006
          %v1010 = vmax.f32 %v1004, 1e-06
          %v1011 = vrcp.pop %v1010
          %v1012 = vmul.f32 %v1007, %v1011
          %v1013 = vmul.f32 %v1007, %v1012
          %v1014 = vsel %vm1009, %v1013, %v983
          %v1015 = vmul.f32 %v992, %v1014
          %v1016 = vadd.f32 %v1015, %v995
          %v1017 = vmul.f32 %v989, 6.2831855
          %v1018 = vsub.f32 1.0, %v987
          %v1019 = vmul.f32 %v1017, %v1018
          %v1020 = vmul.f32 %v1016, %v1019
          %v1021 = vmul.f32 %v954, %v309
          %v1022 = vmul.f32 %v955, %v310
          %v1023 = vmul.f32 %v956, %v311
          %v1024 = vmul.f32 %v1020, %v1021
          %v1025 = vmul.f32 %v1020, %v1022
          %v1026 = vmul.f32 %v1020, %v1023
          %v1027 = vadd.f32 %v946, %v1024
          %v1028 = vadd.f32 %v947, %v1025
          %v1029 = vadd.f32 %v948, %v1026
          %v1030 = vmul.f32 %v976, %v969
          %v1031 = vmul.f32 %v976, %v970
          %v1032 = vmul.f32 %v976, %v971
          %v1033 = vadd.f32 %v463, %v1030
          %v1034 = vadd.f32 %v464, %v1031
          %v1035 = vadd.f32 %v465, %v1032
          %v1036 = vmul.f32 %v1033, %v1033
          %v1037 = vmul.f32 %v1034, %v1034
          %v1038 = vadd.f32 %v1036, %v1037
          %v1039 = vmul.f32 %v1035, %v1035
          %v1040 = vadd.f32 %v1038, %v1039
          %v1041 = vmax.f32 %v1040, 1e-12
          %v1042 = vrsqrt.pop %v1041
          %v1043 = vmul.f32 %v1041, %v1042
          %vm1044 = vcmp.eq.f32.partialorder %v1041, inf
          %v1045 = vsel %vm1044, %v1041, %v1043
          %vm1046 = vcmp.eq.f32.partialorder %v1041, 0.0
          %v1047 = vand.u32 %v1041, 2147483648
          %v1048 = vsel %vm1046, %v1047, %v1045
          %v1049 = vmul.f32 %v1048, -2.0
          %v1050 = vmul.f32 %v1049, 1.442695
          %v1051 = vpow.pop %v1050
          %v1052 = vsub.f32 1.0, %v1051
          %v1053 = vsub.f32 %v1048, %v384
          %v1054 = vsub.f32 %v1053, %v976
          %v1055 = vmul.f32 %v1054, 1.442695
          %v1056 = vpow.pop %v1055
          %v1057 = vmul.f32 %v466, %v1056
          %v1058 = vrcp.pop %v1048
          %v1059 = vmul.f32 %v1052, %v1058
          %v1060 = vmul.f32 %v1057, %v1059
          %v1061 = vmul.f32 %v1060, %v954
          %v1062 = vmul.f32 %v1060, %v955
          %v1063 = vmul.f32 %v1060, %v956
          %v1064 = vmul.f32 %v1061, %v460
          %v1065 = vmul.f32 %v1062, %v461
          %v1066 = vmul.f32 %v1063, %v462
          %v1067 = vadd.f32 %v1027, %v1064
          %v1068 = vadd.f32 %v1028, %v1065
          %v1069 = vadd.f32 %v1029, %v1066
          %s1070 = sadd.s32 %s261, 560
          %s1071 = scalar_lea.vmem %s217, %s1070 [#allocation2]
          %v1072 = vld [vmem:[%s1071] sm:$0xff]
          %v1073 = vld [vmem:[%s1071 + $0x10] sm:$0xff]
          %v1074 = vld [vmem:[%s1071 + $0x20] sm:$0xff]
          %v1075 = vand.u32 2147483647, %v1072
          %v1076 = vand.u32 2147483647, %v1073
          %v1077 = vand.u32 2147483647, %v1074
          %s1078 = sadd.s32 %s261, 608
          %s1079 = scalar_lea.vmem %s217, %s1078 [#allocation2]
          %v1080 = vld [vmem:[%s1079] sm:$0xff]
          %v1081 = vld [vmem:[%s1079 + $0x10] sm:$0xff]
          %v1082 = vld [vmem:[%s1079 + $0x20] sm:$0xff]
          %v1083 = vmul.f32 %v1080, %v1080
          %v1084 = vmul.f32 %v1081, %v1081
          %v1085 = vadd.f32 %v1083, %v1084
          %v1086 = vmul.f32 %v1082, %v1082
          %v1087 = vadd.f32 %v1085, %v1086
          %v1088 = vmax.f32 %v1087, 1e-12
          %v1089 = vrsqrt.pop %v1088
          %v1090 = vmul.f32 %v1080, %v1089
          %v1091 = vmul.f32 %v1081, %v1089
          %v1092 = vmul.f32 %v1082, %v1089
          %s1093 = sadd.s32 %s261, 656
          %s1094 = scalar_lea.vmem %s217, %s1093 [#allocation2]
          %v1095 = vld [vmem:[%s1094] sm:$0xff]
          %v1096 = vmax.f32 %v1095, 0.5
          %v1097 = vmin.f32 %v1096, 30.0
          %v1098 = vmul.f32 %v1090, %v332
          %v1099 = vmul.f32 %v1091, %v333
          %v1100 = vadd.f32 %v1098, %v1099
          %v1101 = vmul.f32 %v1092, %v334
          %v1102 = vadd.f32 %v1100, %v1101
          %v1103 = vmax.f32 %v1102, 0.0
          %v1104 = vmin.f32 %v1103, 1.0
          %v1105 = vsub.f32 0.0, %v1097
          %v1106 = vmul.f32 %v1105, 1.442695
          %v1107 = vpow.pop %v1106
          %v1108 = vmul.f32 %v1107, %v1107
          %v1109 = vrcp.pop %v1097
          %v1110 = vmul.f32 1.0, %v1109
          %v1111 = vmul.f32 %v1108, 2.0
          %v1112 = vadd.f32 %v1111, 1.0
          %v1113 = vsub.f32 %v1112, %v1110
          %v1114 = vsub.f32 %v1107, %v1108
          %v1115 = vmul.f32 %v1114, %v1110
          %v1116 = vsub.f32 %v1115, %v1108
          %v1117 = vsub.f32 1.0, %v1113
          %v1118 = vmax.f32 %v1117, 1e-12
          %v1119 = vrsqrt.pop %v1118
          %v1120 = vmul.f32 %v1118, %v1119
          %vm1121 = vcmp.eq.f32.partialorder %v1118, inf
          %v1122 = vsel %vm1121, %v1118, %v1120
          %vm1123 = vcmp.eq.f32.partialorder %v1118, 0.0
          %v1124 = vand.u32 %v1118, 2147483648
          %v1125 = vsel %vm1123, %v1124, %v1122
          %v1126 = vmul.f32 %v1104, 0.36
          %v1127 = vmul.f32 %v1125, 0.6944444
          %v1128 = vadd.f32 %v1126, %v1127
          %v1129 = vand.u32 2147483647, %v1126
          %vm1130 = vcmp.le.f32.partialorder %v1129, %v1127
          %v1131 = vmax.f32 %v1125, 1e-06
          %v1132 = vrcp.pop %v1131
          %v1133 = vmul.f32 %v1128, %v1132
          %v1134 = vmul.f32 %v1128, %v1133
          %v1135 = vsel %vm1130, %v1134, %v1104
          %v1136 = vmul.f32 %v1113, %v1135
          %v1137 = vadd.f32 %v1136, %v1116
          %v1138 = vmul.f32 %v1110, 6.2831855
          %v1139 = vsub.f32 1.0, %v1108
          %v1140 = vmul.f32 %v1138, %v1139
          %v1141 = vmul.f32 %v1137, %v1140
          %v1142 = vmul.f32 %v1075, %v309
          %v1143 = vmul.f32 %v1076, %v310
          %v1144 = vmul.f32 %v1077, %v311
          %v1145 = vmul.f32 %v1141, %v1142
          %v1146 = vmul.f32 %v1141, %v1143
          %v1147 = vmul.f32 %v1141, %v1144
          %v1148 = vadd.f32 %v1067, %v1145
          %v1149 = vadd.f32 %v1068, %v1146
          %v1150 = vadd.f32 %v1069, %v1147
          %v1151 = vmul.f32 %v1097, %v1090
          %v1152 = vmul.f32 %v1097, %v1091
          %v1153 = vmul.f32 %v1097, %v1092
          %v1154 = vadd.f32 %v463, %v1151
          %v1155 = vadd.f32 %v464, %v1152
          %v1156 = vadd.f32 %v465, %v1153
          %v1157 = vmul.f32 %v1154, %v1154
          %v1158 = vmul.f32 %v1155, %v1155
          %v1159 = vadd.f32 %v1157, %v1158
          %v1160 = vmul.f32 %v1156, %v1156
          %v1161 = vadd.f32 %v1159, %v1160
          %v1162 = vmax.f32 %v1161, 1e-12
          %v1163 = vrsqrt.pop %v1162
          %v1164 = vmul.f32 %v1162, %v1163
          %vm1165 = vcmp.eq.f32.partialorder %v1162, inf
          %v1166 = vsel %vm1165, %v1162, %v1164
          %vm1167 = vcmp.eq.f32.partialorder %v1162, 0.0
          %v1168 = vand.u32 %v1162, 2147483648
          %v1169 = vsel %vm1167, %v1168, %v1166
          %v1170 = vmul.f32 %v1169, -2.0
          %v1171 = vmul.f32 %v1170, 1.442695
          %v1172 = vpow.pop %v1171
          %v1173 = vsub.f32 1.0, %v1172
          %v1174 = vsub.f32 %v1169, %v384
          %v1175 = vsub.f32 %v1174, %v1097
          %v1176 = vmul.f32 %v1175, 1.442695
          %v1177 = vpow.pop %v1176
          %v1178 = vmul.f32 %v466, %v1177
          %v1179 = vrcp.pop %v1169
          %v1180 = vmul.f32 %v1173, %v1179
          %v1181 = vmul.f32 %v1178, %v1180
          %v1182 = vmul.f32 %v1181, %v1075
          %v1183 = vmul.f32 %v1181, %v1076
          %v1184 = vmul.f32 %v1181, %v1077
          %v1185 = vmul.f32 %v1182, %v460
          %v1186 = vmul.f32 %v1183, %v461
          %v1187 = vmul.f32 %v1184, %v462
          %v1188 = vadd.f32 %v1148, %v1185
          %v1189 = vadd.f32 %v1149, %v1186
          %v1190 = vadd.f32 %v1150, %v1187
          %s1191 = sadd.s32 %s261, 672
          %s1192 = scalar_lea.vmem %s217, %s1191 [#allocation2]
          %v1193 = vld [vmem:[%s1192] sm:$0xff]
          %v1194 = vld [vmem:[%s1192 + $0x10] sm:$0xff]
          %v1195 = vld [vmem:[%s1192 + $0x20] sm:$0xff]
          %v1196 = vand.u32 2147483647, %v1193
          %v1197 = vand.u32 2147483647, %v1194
          %v1198 = vand.u32 2147483647, %v1195
          %s1199 = sadd.s32 %s261, 720
          %s1200 = scalar_lea.vmem %s217, %s1199 [#allocation2]
          %v1201 = vld [vmem:[%s1200] sm:$0xff]
          %v1202 = vld [vmem:[%s1200 + $0x10] sm:$0xff]
          %v1203 = vld [vmem:[%s1200 + $0x20] sm:$0xff]
          %v1204 = vmul.f32 %v1201, %v1201
          %v1205 = vmul.f32 %v1202, %v1202
          %v1206 = vadd.f32 %v1204, %v1205
          %v1207 = vmul.f32 %v1203, %v1203
          %v1208 = vadd.f32 %v1206, %v1207
          %v1209 = vmax.f32 %v1208, 1e-12
          %v1210 = vrsqrt.pop %v1209
          %v1211 = vmul.f32 %v1201, %v1210
          %v1212 = vmul.f32 %v1202, %v1210
          %v1213 = vmul.f32 %v1203, %v1210
          %s1214 = sadd.s32 %s261, 768
          %s1215 = scalar_lea.vmem %s217, %s1214 [#allocation2]
          %v1216 = vld [vmem:[%s1215] sm:$0xff]
          %v1217 = vmax.f32 %v1216, 0.5
          %v1218 = vmin.f32 %v1217, 30.0
          %v1219 = vmul.f32 %v1211, %v332
          %v1220 = vmul.f32 %v1212, %v333
          %v1221 = vadd.f32 %v1219, %v1220
          %v1222 = vmul.f32 %v1213, %v334
          %v1223 = vadd.f32 %v1221, %v1222
          %v1224 = vmax.f32 %v1223, 0.0
          %v1225 = vmin.f32 %v1224, 1.0
          %v1226 = vsub.f32 0.0, %v1218
          %v1227 = vmul.f32 %v1226, 1.442695
          %v1228 = vpow.pop %v1227
          %v1229 = vmul.f32 %v1228, %v1228
          %v1230 = vrcp.pop %v1218
          %v1231 = vmul.f32 1.0, %v1230
          %v1232 = vmul.f32 %v1229, 2.0
          %v1233 = vadd.f32 %v1232, 1.0
          %v1234 = vsub.f32 %v1233, %v1231
          %v1235 = vsub.f32 %v1228, %v1229
          %v1236 = vmul.f32 %v1235, %v1231
          %v1237 = vsub.f32 %v1236, %v1229
          %v1238 = vsub.f32 1.0, %v1234
          %v1239 = vmax.f32 %v1238, 1e-12
          %v1240 = vrsqrt.pop %v1239
          %v1241 = vmul.f32 %v1239, %v1240
          %vm1242 = vcmp.eq.f32.partialorder %v1239, inf
          %v1243 = vsel %vm1242, %v1239, %v1241
          %vm1244 = vcmp.eq.f32.partialorder %v1239, 0.0
          %v1245 = vand.u32 %v1239, 2147483648
          %v1246 = vsel %vm1244, %v1245, %v1243
          %v1247 = vmul.f32 %v1225, 0.36
          %v1248 = vmul.f32 %v1246, 0.6944444
          %v1249 = vadd.f32 %v1247, %v1248
          %v1250 = vand.u32 2147483647, %v1247
          %vm1251 = vcmp.le.f32.partialorder %v1250, %v1248
          %v1252 = vmax.f32 %v1246, 1e-06
          %v1253 = vrcp.pop %v1252
          %v1254 = vmul.f32 %v1249, %v1253
          %v1255 = vmul.f32 %v1249, %v1254
          %v1256 = vsel %vm1251, %v1255, %v1225
          %v1257 = vmul.f32 %v1234, %v1256
          %v1258 = vadd.f32 %v1257, %v1237
          %v1259 = vmul.f32 %v1231, 6.2831855
          %v1260 = vsub.f32 1.0, %v1229
          %v1261 = vmul.f32 %v1259, %v1260
          %v1262 = vmul.f32 %v1258, %v1261
          %v1263 = vmul.f32 %v1196, %v309
          %v1264 = vmul.f32 %v1197, %v310
          %v1265 = vmul.f32 %v1198, %v311
          %v1266 = vmul.f32 %v1262, %v1263
          %v1267 = vmul.f32 %v1262, %v1264
          %v1268 = vmul.f32 %v1262, %v1265
          %v1269 = vadd.f32 %v1188, %v1266
          %v1270 = vadd.f32 %v1189, %v1267
          %v1271 = vadd.f32 %v1190, %v1268
          %v1272 = vmul.f32 %v1218, %v1211
          %v1273 = vmul.f32 %v1218, %v1212
          %v1274 = vmul.f32 %v1218, %v1213
          %v1275 = vadd.f32 %v463, %v1272
          %v1276 = vadd.f32 %v464, %v1273
          %v1277 = vadd.f32 %v465, %v1274
          %v1278 = vmul.f32 %v1275, %v1275
          %v1279 = vmul.f32 %v1276, %v1276
          %v1280 = vadd.f32 %v1278, %v1279
          %v1281 = vmul.f32 %v1277, %v1277
          %v1282 = vadd.f32 %v1280, %v1281
          %v1283 = vmax.f32 %v1282, 1e-12
          %v1284 = vrsqrt.pop %v1283
          %v1285 = vmul.f32 %v1283, %v1284
          %vm1286 = vcmp.eq.f32.partialorder %v1283, inf
          %v1287 = vsel %vm1286, %v1283, %v1285
          %vm1288 = vcmp.eq.f32.partialorder %v1283, 0.0
          %v1289 = vand.u32 %v1283, 2147483648
          %v1290 = vsel %vm1288, %v1289, %v1287
          %v1291 = vmul.f32 %v1290, -2.0
          %v1292 = vmul.f32 %v1291, 1.442695
          %v1293 = vpow.pop %v1292
          %v1294 = vsub.f32 1.0, %v1293
          %v1295 = vsub.f32 %v1290, %v384
          %v1296 = vsub.f32 %v1295, %v1218
          %v1297 = vmul.f32 %v1296, 1.442695
          %v1298 = vpow.pop %v1297
          %v1299 = vmul.f32 %v466, %v1298
          %v1300 = vrcp.pop %v1290
          %v1301 = vmul.f32 %v1294, %v1300
          %v1302 = vmul.f32 %v1299, %v1301
          %v1303 = vmul.f32 %v1302, %v1196
          %v1304 = vmul.f32 %v1302, %v1197
          %v1305 = vmul.f32 %v1302, %v1198
          %v1306 = vmul.f32 %v1303, %v460
          %v1307 = vmul.f32 %v1304, %v461
          %v1308 = vmul.f32 %v1305, %v462
          %v1309 = vadd.f32 %v1269, %v1306
          %v1310 = vadd.f32 %v1270, %v1307
          %v1311 = vadd.f32 %v1271, %v1308
          %s1312 = sadd.s32 %s261, 784
          %s1313 = scalar_lea.vmem %s217, %s1312 [#allocation2]
          %v1314 = vld [vmem:[%s1313] sm:$0xff]
          %v1315 = vld [vmem:[%s1313 + $0x10] sm:$0xff]
          %v1316 = vld [vmem:[%s1313 + $0x20] sm:$0xff]
          %v1317 = vand.u32 2147483647, %v1314
          %v1318 = vand.u32 2147483647, %v1315
          %v1319 = vand.u32 2147483647, %v1316
          %s1320 = sadd.s32 %s261, 832
          %s1321 = scalar_lea.vmem %s217, %s1320 [#allocation2]
          %v1322 = vld [vmem:[%s1321] sm:$0xff]
          %v1323 = vld [vmem:[%s1321 + $0x10] sm:$0xff]
          %v1324 = vld [vmem:[%s1321 + $0x20] sm:$0xff]
          %v1325 = vmul.f32 %v1322, %v1322
          %v1326 = vmul.f32 %v1323, %v1323
          %v1327 = vadd.f32 %v1325, %v1326
          %v1328 = vmul.f32 %v1324, %v1324
          %v1329 = vadd.f32 %v1327, %v1328
          %v1330 = vmax.f32 %v1329, 1e-12
          %v1331 = vrsqrt.pop %v1330
          %v1332 = vmul.f32 %v1322, %v1331
          %v1333 = vmul.f32 %v1323, %v1331
          %v1334 = vmul.f32 %v1324, %v1331
          %s1335 = sadd.s32 %s261, 880
          %s1336 = scalar_lea.vmem %s217, %s1335 [#allocation2]
          %v1337 = vld [vmem:[%s1336] sm:$0xff]
          %v1338 = vmax.f32 %v1337, 0.5
          %v1339 = vmin.f32 %v1338, 30.0
          %v1340 = vmul.f32 %v1332, %v332
          %v1341 = vmul.f32 %v1333, %v333
          %v1342 = vadd.f32 %v1340, %v1341
          %v1343 = vmul.f32 %v1334, %v334
          %v1344 = vadd.f32 %v1342, %v1343
          %v1345 = vmax.f32 %v1344, 0.0
          %v1346 = vmin.f32 %v1345, 1.0
          %v1347 = vsub.f32 0.0, %v1339
          %v1348 = vmul.f32 %v1347, 1.442695
          %v1349 = vpow.pop %v1348
          %v1350 = vmul.f32 %v1349, %v1349
          %v1351 = vrcp.pop %v1339
          %v1352 = vmul.f32 1.0, %v1351
          %v1353 = vmul.f32 %v1350, 2.0
          %v1354 = vadd.f32 %v1353, 1.0
          %v1355 = vsub.f32 %v1354, %v1352
          %v1356 = vsub.f32 %v1349, %v1350
          %v1357 = vmul.f32 %v1356, %v1352
          %v1358 = vsub.f32 %v1357, %v1350
          %v1359 = vsub.f32 1.0, %v1355
          %v1360 = vmax.f32 %v1359, 1e-12
          %v1361 = vrsqrt.pop %v1360
          %v1362 = vmul.f32 %v1360, %v1361
          %vm1363 = vcmp.eq.f32.partialorder %v1360, inf
          %v1364 = vsel %vm1363, %v1360, %v1362
          %vm1365 = vcmp.eq.f32.partialorder %v1360, 0.0
          %v1366 = vand.u32 %v1360, 2147483648
          %v1367 = vsel %vm1365, %v1366, %v1364
          %v1368 = vmul.f32 %v1346, 0.36
          %v1369 = vmul.f32 %v1367, 0.6944444
          %v1370 = vadd.f32 %v1368, %v1369
          %v1371 = vand.u32 2147483647, %v1368
          %vm1372 = vcmp.le.f32.partialorder %v1371, %v1369
          %v1373 = vmax.f32 %v1367, 1e-06
          %v1374 = vrcp.pop %v1373
          %v1375 = vmul.f32 %v1370, %v1374
          %v1376 = vmul.f32 %v1370, %v1375
          %v1377 = vsel %vm1372, %v1376, %v1346
          %v1378 = vmul.f32 %v1355, %v1377
          %v1379 = vadd.f32 %v1378, %v1358
          %v1380 = vmul.f32 %v1352, 6.2831855
          %v1381 = vsub.f32 1.0, %v1350
          %v1382 = vmul.f32 %v1380, %v1381
          %v1383 = vmul.f32 %v1379, %v1382
          %v1384 = vmul.f32 %v1317, %v309
          %v1385 = vmul.f32 %v1318, %v310
          %v1386 = vmul.f32 %v1319, %v311
          %v1387 = vmul.f32 %v1383, %v1384
          %v1388 = vmul.f32 %v1383, %v1385
          %v1389 = vmul.f32 %v1383, %v1386
          %v1390 = vadd.f32 %v1309, %v1387
          %v1391 = vadd.f32 %v1310, %v1388
          %v1392 = vadd.f32 %v1311, %v1389
          %v1393 = vmul.f32 %v1339, %v1332
          %v1394 = vmul.f32 %v1339, %v1333
          %v1395 = vmul.f32 %v1339, %v1334
          %v1396 = vadd.f32 %v463, %v1393
          %v1397 = vadd.f32 %v464, %v1394
          %v1398 = vadd.f32 %v465, %v1395
          %v1399 = vmul.f32 %v1396, %v1396
          %v1400 = vmul.f32 %v1397, %v1397
          %v1401 = vadd.f32 %v1399, %v1400
          %v1402 = vmul.f32 %v1398, %v1398
          %v1403 = vadd.f32 %v1401, %v1402
          %v1404 = vmax.f32 %v1403, 1e-12
          %v1405 = vrsqrt.pop %v1404
          %v1406 = vmul.f32 %v1404, %v1405
          %vm1407 = vcmp.eq.f32.partialorder %v1404, inf
          %v1408 = vsel %vm1407, %v1404, %v1406
          %vm1409 = vcmp.eq.f32.partialorder %v1404, 0.0
          %v1410 = vand.u32 %v1404, 2147483648
          %v1411 = vsel %vm1409, %v1410, %v1408
          %v1412 = vmul.f32 %v1411, -2.0
          %v1413 = vmul.f32 %v1412, 1.442695
          %v1414 = vpow.pop %v1413
          %v1415 = vsub.f32 1.0, %v1414
          %v1416 = vsub.f32 %v1411, %v384
          %v1417 = vsub.f32 %v1416, %v1339
          %v1418 = vmul.f32 %v1417, 1.442695
          %v1419 = vpow.pop %v1418
          %v1420 = vmul.f32 %v466, %v1419
          %v1421 = vrcp.pop %v1411
          %v1422 = vmul.f32 %v1415, %v1421
          %v1423 = vmul.f32 %v1420, %v1422
          %v1424 = vmul.f32 %v1423, %v1317
          %v1425 = vmul.f32 %v1423, %v1318
          %v1426 = vmul.f32 %v1423, %v1319
          %v1427 = vmul.f32 %v1424, %v460
          %v1428 = vmul.f32 %v1425, %v461
          %v1429 = vmul.f32 %v1426, %v462
          %v1430 = vadd.f32 %v1390, %v1427
          %v1431 = vadd.f32 %v1391, %v1428
          %v1432 = vadd.f32 %v1392, %v1429
          %v1433 = vmax.f32 %v1430, 0.0
          %v1434 = vmax.f32 %v1431, 0.0
          %v1435 = vmax.f32 %v1432, 0.0
          %s1436 = scalar_lea.vmem %s251, %s261 [#allocation7]
          %1437 = vst [vmem:[%s1436] sm:$0xff] %v1433
          %1438 = vst [vmem:[%s1436 + $0x10] sm:$0xff] %v1434
          %1439 = vst [vmem:[%s1436 + $0x20] sm:$0xff] %v1435
        $region41: #{tpu_custom_call.1} parent=27 // loop_footer
          %s260 = sadd.s32 1, %s256
        $region42: #{tpu_custom_call.1} parent=27 // loop_footer_branch
          %255 = sbr.rel target = $region38
        $region43: #{tpu_custom_call.1} parent=27 // loop_exit
          _
        %s1440 = sand.u32 %s82, 1
        %s1441 = scalar_lea.sflag [#allocation4], %s1440
        %s1442 = sand.u32 %s82, 1
        %s1443 = smul.addr %s1442, 48
        %s1444 = scalar_lea.vmem [#allocation7], %s1443
        // Predicated region
        $region44: #{tpu_custom_call.1} parent=27 // pred_check
          %p1445 = pneg %p92
        $region45: #{tpu_custom_call.1} parent=27 // pred_check_branch
          %1447 = sbr.rel (%p1445) target = $region47
        $region46: #{tpu_custom_call.1} parent=27 // pred_region
          #allocation13 [shape = 'u32[6]{0}', space=smem, size = 0x18, scoped, tag = 'DMA stride descriptor']
          %s1448 = smul.u32 2, %s22
          %s1450 = ssub.s32 768, 768
          %1451 = vsyncadd %s1441, %s1450
          %s1452 = smul.addr %s1448, 128
          %s1453 = scalar_lea.hbm %s2, %s1452
          %s1455 = sshll.u32 1, 14
          %s1456 = sxor.u32 4294967295, %s1455
          %s1459 = sshll.u32 7, 18
          %s1460 = sxor.u32 4294967295, %s1459
          %s1461 = sand.u32 0, %s1460
          %s1463 = sor.u32 %s1461, 0
          %s1465 = sshll.u32 3, 24
          %s1466 = sxor.u32 4294967295, %s1465
          %s1467 = sand.u32 %s1463, %s1466
          %s1469 = sor.u32 %s1467, 0
          %s1470 = sshll.u32 %s1444, 4
          %s1471 = int_to_ptr.vmem [resolvable:$true] %s1470
          %1477 = sst [smem:[#allocation13]] 256
          %s1478 = scalar_lea.smem [#allocation13], 1
          %1479 = sst [smem:[%s1478]] 512
          %s1480 = scalar_lea.smem [#allocation13], 2
          %1481 = sst [smem:[%s1480]] 2
          %s1482 = scalar_lea.smem [#allocation13], 3
          %1483 = sst [smem:[%s1482]] 128
          %s1484 = scalar_lea.smem [#allocation13], 4
          %1485 = sst [smem:[%s1484]] 128
          %s1486 = scalar_lea.smem [#allocation13], 5
          %1487 = sst [smem:[%s1486]] 8
          %1489 = dma.general %s1471, 768, %s1453, %s1441, [#allocation12], [#allocation13], %s1469, 0
        $region47: #{tpu_custom_call.1} parent=27 // pred_fallthru
          _
      $region28: #{tpu_custom_call.1} parent=5 // pred_fallthru
        _
      %p1490 = scmp.le.s32.totalorder 2, %s17
      // Predicated region
      $region48: #{tpu_custom_call.1} parent=5 // pred_check
        %p1491 = pneg %p1490
      $region49: #{tpu_custom_call.1} parent=5 // pred_check_branch
        %1493 = sbr.rel (%p1491) target = $region51
      $region50: #{tpu_custom_call.1} parent=5 // pred_region
        %s1494 = ssub.s32 %s17, 2
        // Predicated region
        $region52: #{tpu_custom_call.1} parent=50 // pred_check
          %p1495 = pneg %p98
        $region53: #{tpu_custom_call.1} parent=50 // pred_check_branch
          %1497 = sbr.rel (%p1495) target = $region55
        $region54: #{tpu_custom_call.1} parent=50 // pred_region
          %s1498 = sand.u32 %s83, 1
          %s1499 = scalar_lea.sflag [#allocation4], %s1498
          %s1500 = sand.u32 %s83, 1
          %s1501 = smul.addr %s1500, 48
          %s1502 = scalar_lea.vmem [#allocation7], %s1501
          %1503 = dma.done %s1499, 768
        $region55: #{tpu_custom_call.1} parent=50 // pred_fallthru
          _
      $region51: #{tpu_custom_call.1} parent=5 // pred_fallthru
        _
    $region6: #{tpu_custom_call.1} parent=1 // loop_footer
      %s21 = sadd.s32 1, %s17
    $region7: #{tpu_custom_call.1} parent=1 // loop_footer_branch
      %16 = sbr.rel target = $region3
    $region8: #{tpu_custom_call.1} parent=1 // loop_exit
      _
    %1504 = vsyncpa [#allocation3], 1
    %s1505 = scalar_lea.sflag [#allocation3], 1
    %1506 = vsyncpa %s1505, 1
    %1507 = vsyncpa [#allocation6], 1
    %s1508 = scalar_lea.sflag [#allocation6], 1
    %1509 = vsyncpa %s1508, 1
    %1510 = vsyncpa [#allocation4], 1
    %s1511 = scalar_lea.sflag [#allocation4], 1
    %1512 = vsyncpa %s1511, 1

</llo_original>
